<compile_context>
chip_gen: v7x
topology: tpu7x:2x2x1
jax: 0.10.0
libtpu: 0.0.40
codegen_flags: <defaults>
</compile_context>

<pallas_src>
import numpy as np
import jax
import jax.numpy as jnp
from jax import lax
from jax.experimental import pallas as pl
from jax.experimental.pallas import tpu as pltpu

# ------------------------------ configuration -------------------------------
B = 2
H = W = 8
C = 32                       # dim
NUM_HEADS = 4
HEAD_DIM = C // NUM_HEADS
WINDOW = 4                   # window_size
MLP_RATIO = 4.0
HIDDEN = int(C * MLP_RATIO)  # 128
DEPTH = 2                    # block 0 shift=0, block 1 shift=WINDOW//2
N = WINDOW * WINDOW          # tokens per window (16)
NW = (H // WINDOW) * (W // WINDOW)   # windows per image (4)
L = H * W                    # 64 tokens per image
BL = B * L                   # 128 tokens total
SCALE = HEAD_DIM ** -0.5
EPS = 1e-5
INV_SQRT2 = 0.7071067811865476
NEG_INF = -1e9               # cross-window mask value (exp underflows to 0)
CONST_ROWS = 3 * C + 8       # packed constant rows per block (104)


# --------------------------------- kernel -----------------------------------
def basic_layer_kernel(x_ref, wstack_ref, bias_ref, out_ref):
    """Both Swin blocks for ONE image's (L, C) token slab, spatial order.

    x_ref     : (L, C)                      tokens of this grid step's image
    wstack_ref: (DEPTH, 104, 128)  f32      per-block packed constants:
                  rows 0:C      -> [Wqkv^T | Wproj^T]  (C, 4C)
                  rows C:2C     -> fc1 weight^T        (C, HIDDEN)
                  rows 2C:3C    -> fc2 weight          (C, HIDDEN)
                  rows 3C:3C+8  -> LN params / linear biases (8, 128)
    bias_ref  : (DEPTH, nH, L, L)  bf16     spatial-order attention bias
                  (rel-pos bias + shift mask in-window, -1e9 cross-window)
    out_ref   : (L, C)
    """
    x = x_ref[...]                                                # (L, C)
    for d in range(DEPTH):                                        # static unroll
        wqkvp = wstack_ref[d, 0:C, :]                             # (C, 4C)
        w1t = wstack_ref[d, C:2 * C, :]                           # (C, HIDDEN)
        w2 = wstack_ref[d, 2 * C:3 * C, :]                        # (C, HIDDEN)
        vec = wstack_ref[d, 3 * C:3 * C + 8, :]                   # (8, 128)
        ln1w = vec[0:1, 0:C]
        ln1b = vec[0:1, C:2 * C]
        ln2w = vec[0:1, 2 * C:3 * C]
        ln2b = vec[0:1, 3 * C:4 * C]
        bqkv = vec[1:2, 0:3 * C]
        bproj = vec[1:2, 3 * C:4 * C]
        b1 = vec[2:3, 0:HIDDEN]
        b2 = vec[3:4, 0:C]

        # ---- LayerNorm 1 ----------------------------------------------------
        mu = jnp.mean(x, axis=-1, keepdims=True)
        var = jnp.mean((x - mu) ** 2, axis=-1, keepdims=True)
        xn = (x - mu) * lax.rsqrt(var + EPS) * ln1w + ln1b

        # ---- QKV: one lane-dense (L,32)@(32,128) MXU op (proj lanes ignored)
        qkvp = jnp.dot(xn, wqkvp, preferred_element_type=jnp.float32)  # (L,4C)
        qkv = qkvp[:, 0:3 * C] + bqkv                                   # (L,3C)

        # ---- attention: full (L,L) scores per head, window bias pre-scattered
        heads = []
        for h in range(NUM_HEADS):
            q = qkv[:, h * HEAD_DIM:(h + 1) * HEAD_DIM] * SCALE         # (L,hd)
            k = qkv[:, C + h * HEAD_DIM:C + (h + 1) * HEAD_DIM]
            v = qkv[:, 2 * C + h * HEAD_DIM:2 * C + (h + 1) * HEAD_DIM]
            s = lax.dot_general(q, k, (((1,), (1,)), ((), ())),
                                preferred_element_type=jnp.float32)     # (L,L)
            s = s + bias_ref[d, h].astype(jnp.float32)
            s = s - jnp.max(s, axis=-1, keepdims=True)
            e = jnp.exp(s)
            inv = pl.reciprocal(jnp.sum(e, axis=-1, keepdims=True), approx=True)
            heads.append(jnp.dot(e * inv, v,
                                 preferred_element_type=jnp.float32))   # (L,hd)
        o = jnp.concatenate(heads, axis=-1)                              # (L,C)

        attn_out = jnp.dot(o, wqkvp[:, 3 * C:4 * C],
                           preferred_element_type=jnp.float32) + bproj

        # ---- residual 1 + LayerNorm 2 + MLP (exact GELU) + residual 2 -------
        x1 = x + attn_out
        mu2 = jnp.mean(x1, axis=-1, keepdims=True)
        var2 = jnp.mean((x1 - mu2) ** 2, axis=-1, keepdims=True)
        hdn = (x1 - mu2) * lax.rsqrt(var2 + EPS) * ln2w + ln2b
        hdn = jnp.dot(hdn, w1t, preferred_element_type=jnp.float32) + b1
        hdn = 0.5 * hdn * (1.0 + lax.erf(hdn * INV_SQRT2))
        hdn = lax.dot_general(hdn, w2, (((1,), (1,)), ((), ())),
                              preferred_element_type=jnp.float32) + b2
        x = x1 + hdn
    out_ref[...] = x


# ----------------------------- pallas wrapper --------------------------------
def basic_layer_forward(x, wstack, bias_all):
    x2d = x.reshape(BL, C)
    out = pl.pallas_call(
        basic_layer_kernel,
        out_shape=jax.ShapeDtypeStruct((BL, C), jnp.float32),
        grid=(B,),
        in_specs=[
            pl.BlockSpec((L, C), lambda b: (b, 0)),                      # per-image tokens
            pl.BlockSpec((DEPTH, CONST_ROWS, 128), lambda b: (0, 0, 0)),  # shared consts
            pl.BlockSpec((DEPTH, NUM_HEADS, L, L), lambda b: (0, 0, 0, 0)),  # shared bias
        ],
        out_specs=pl.BlockSpec((L, C), lambda b: (b, 0)),
        compiler_params=pltpu.CompilerParams(
            dimension_semantics=("parallel",)),   # 2 TCs on v7x; neutral on v5e/v6e
    )(x2d, wstack, bias_all)
    return out.reshape(B, L, C)


# ------------------------- static index construction -------------------------
def relative_position_index():
    coords = np.stack(np.meshgrid(np.arange(WINDOW), np.arange(WINDOW),
                                  indexing='ij'))
    cf = coords.reshape(2, -1)
    rel = (cf[:, :, None] - cf[:, None, :]).transpose(1, 2, 0).astype(np.int64)
    rel[:, :, 0] += WINDOW - 1
    rel[:, :, 1] += WINDOW - 1
    rel[:, :, 0] *= 2 * WINDOW - 1
    return rel.sum(-1)                                   # (N, N)


REL_INDEX = relative_position_index()


def shift_attn_mask(shift):
    """(NW, N, N) 0 / -100 mask, identical to the PyTorch buffer."""
    if shift == 0:
        return np.zeros((NW, N, N), np.float32)
    img_mask = np.zeros((1, H, W, 1), np.float32)
    sls = (slice(0, -WINDOW), slice(-WINDOW, -shift), slice(-shift, None))
    cnt = 0
    for hs in sls:
        for ws_ in sls:
            img_mask[:, hs, ws_, :] = cnt
            cnt += 1
    mw = img_mask.reshape(1, H // WINDOW, WINDOW, W // WINDOW, WINDOW, 1)
    mw = mw.transpose(0, 1, 3, 2, 4, 5).reshape(-1, N)
    am = mw[:, None, :] - mw[:, :, None]
    return np.where(am != 0, -100.0, 0.0).astype(np.float32)


def make_perm_single(shift):
    """perm[r] = spatial token index landing in row r of this block's window
    layout (roll(-shift) followed by window_partition), for ONE image."""
    idx = np.arange(L).reshape(H, W)
    if shift > 0:
        idx = np.roll(idx, (-shift, -shift), axis=(0, 1))
    idx = idx.reshape(H // WINDOW, WINDOW, W // WINDOW, WINDOW)
    idx = idx.transpose(0, 2, 1, 3)
    return idx.reshape(-1)


# --------------------------- parameter preparation ---------------------------
def make_block_params(key, shift):
    ks = jax.random.split(key, 13)

    def nrm(k, shape, s=0.02):
        return s * jax.random.normal(k, shape, jnp.float32)

    return dict(
        shift=shift,
        ln1w=1.0 + nrm(ks[0], (C,)), ln1b=nrm(ks[1], (C,)),
        wqkv=nrm(ks[2], (3 * C, C)), bqkv=nrm(ks[3], (3 * C,)),
        wproj=nrm(ks[4], (C, C)), bproj=nrm(ks[5], (C,)),
        ln2w=1.0 + nrm(ks[6], (C,)), ln2b=nrm(ks[7], (C,)),
        w1=nrm(ks[8], (HIDDEN, C)), b1=nrm(ks[9], (HIDDEN,)),
        w2=nrm(ks[10], (C, HIDDEN)), b2=nrm(ks[11], (C,)),
        rel_table=nrm(ks[12], ((2 * WINDOW - 1) ** 2, NUM_HEADS)),
    )


def make_block_consts(bp):
    """Pack one block's weights into a (104, 128) f32 slab."""
    vec = np.zeros((8, 128), np.float32)
    vec[0, 0:C] = np.asarray(bp['ln1w'])
    vec[0, C:2 * C] = np.asarray(bp['ln1b'])
    vec[0, 2 * C:3 * C] = np.asarray(bp['ln2w'])
    vec[0, 3 * C:4 * C] = np.asarray(bp['ln2b'])
    vec[1, 0:3 * C] = np.asarray(bp['bqkv'])
    vec[1, 3 * C:4 * C] = np.asarray(bp['bproj'])
    vec[2, 0:HIDDEN] = np.asarray(bp['b1'])
    vec[3, 0:C] = np.asarray(bp['b2'])
    wqkvp = np.concatenate([np.asarray(bp['wqkv']).T,
                            np.asarray(bp['wproj']).T], axis=1)   # (C, 4C)
    w1t = np.asarray(bp['w1']).T                                  # (C, HIDDEN)
    w2 = np.asarray(bp['w2'])                                     # (C, HIDDEN)
    return np.concatenate([wqkvp, w1t, w2, vec], axis=0)          # (104, 128)


def make_bias_spatial(bp):
    """(nH, L, L) attention bias in SPATIAL token order: the window-order
    block-diagonal bias conjugated by the static window permutation."""
    shift = bp['shift']
    rel = np.asarray(bp['rel_table'])[REL_INDEX.reshape(-1)]
    rel = rel.reshape(N, N, NUM_HEADS).transpose(2, 0, 1)         # (nH, N, N)
    mask = shift_attn_mask(shift)                                 # (NW, N, N)
    win_bias = rel[None] + mask[:, None]                          # (NW, nH, N, N)
    bias_w = np.full((NUM_HEADS, L, L), NEG_INF, np.float32)
    for wi in range(NW):
        r = wi * N
        bias_w[:, r:r + N, r:r + N] = win_bias[wi]
    perm = make_perm_single(shift)
    inv = np.argsort(perm)
    # bias_spatial[i, j] = bias_w[inv[i], inv[j]]
    return bias_w[:, inv][:, :, inv]


# --------------------------- pure-JAX reference ------------------------------
def window_partition_jnp(x, ws):
    b, h, w, c = x.shape
    x = x.reshape(b, h // ws, ws, w // ws, ws, c).transpose(0, 1, 3, 2, 4, 5)
    return x.reshape(-1, ws, ws, c)


def window_reverse_jnp(windows, ws, h, w):
    b = windows.shape[0] // (h * w // ws // ws)
    x = windows.reshape(b, h // ws, w // ws, ws, ws, -1).transpose(0, 1, 3, 2, 4, 5)
    return x.reshape(b, h, w, -1)


def ln_ref(v, wgt, bias):
    mu = v.mean(-1, keepdims=True)
    var = ((v - mu) ** 2).mean(-1, keepdims=True)
    return (v - mu) / jnp.sqrt(var + EPS) * wgt + bias


def block_reference(x, bp):
    shift = bp['shift']
    rel_bias = bp['rel_table'][REL_INDEX.reshape(-1)].reshape(N, N, NUM_HEADS)
    rel_bias = jnp.transpose(rel_bias, (2, 0, 1))
    mask = jnp.asarray(shift_attn_mask(shift))
    shortcut = x
    xn = ln_ref(x, bp['ln1w'], bp['ln1b']).reshape(B, H, W, C)
    if shift > 0:
        xn = jnp.roll(xn, (-shift, -shift), axis=(1, 2))
    xw = window_partition_jnp(xn, WINDOW).reshape(-1, N, C)
    B_ = xw.shape[0]
    qkv = (xw @ bp['wqkv'].T + bp['bqkv']).reshape(B_, N, 3, NUM_HEADS, HEAD_DIM)
    qkv = qkv.transpose(2, 0, 3, 1, 4)
    q, k, v = qkv[0] * SCALE, qkv[1], qkv[2]
    attn = jnp.einsum('bhnd,bhmd->bhnm', q, k) + rel_bias[None]
    attn = attn.reshape(B_ // NW, NW, NUM_HEADS, N, N) + mask[None, :, None]
    attn = jax.nn.softmax(attn.reshape(B_, NUM_HEADS, N, N), axis=-1)
    o = jnp.einsum('bhnm,bhmd->bhnd', attn, v).transpose(0, 2, 1, 3).reshape(B_, N, C)
    o = (o @ bp['wproj'].T + bp['bproj']).reshape(-1, WINDOW, WINDOW, C)
    xr = window_reverse_jnp(o, WINDOW, H, W)
    if shift > 0:
        xr = jnp.roll(xr, (shift, shift), axis=(1, 2))
    x1 = shortcut + xr.reshape(B, L, C)
    hdn = ln_ref(x1, bp['ln2w'], bp['ln2b'])
    hdn = hdn @ bp['w1'].T + bp['b1']
    hdn = 0.5 * hdn * (1.0 + lax.erf(hdn * INV_SQRT2))
    hdn = hdn @ bp['w2'].T + bp['b2']
    return x1 + hdn


def reference_forward(x, block_params):
    for bp in block_params:
        x = block_reference(x, bp)
    return x


# ----------------------------------- main ------------------------------------
if __name__ == "__main__":
    key = jax.random.PRNGKey(0)
    keys = jax.random.split(key, DEPTH + 1)
    kx, kblk = keys[0], keys[1:]

    shifts = [0 if i % 2 == 0 else WINDOW // 2 for i in range(DEPTH)]
    block_params = [make_block_params(kblk[i], shifts[i]) for i in range(DEPTH)]

    # packed constants for both blocks: (DEPTH, 104, 128) f32
    wstack = jnp.asarray(np.stack([make_block_consts(bp) for bp in block_params]))
    # spatial-order attention bias for both blocks: (DEPTH, nH, L, L) bf16
    bias_all = jnp.asarray(np.stack([make_bias_spatial(bp) for bp in block_params]),
                           dtype=jnp.bfloat16)

    x = jax.random.normal(kx, (B, L, C), jnp.float32)

    fwd = jax.jit(basic_layer_forward)
    out = jax.block_until_ready(fwd(x, wstack, bias_all))

    ref = reference_forward(x, block_params)
    # Approximations vs. the exact reference: EUP approx reciprocal in the
    # softmax normalization and bf16 storage of the (small-magnitude) rel-pos
    # bias -> comfortably within 1e-3.
    if not np.allclose(np.asarray(out), np.asarray(ref), rtol=1e-3, atol=1e-3):
        err = float(np.max(np.abs(np.asarray(out) - np.asarray(ref))))
        raise AssertionError(f"Pallas output mismatch vs reference (max abs err {err})")
    print("KERNEL_OK")
</pallas_src>

<mosaic_0001>
module attributes {stable_mosaic.version = 11 : i64} {
  func.func @basic_layer_kernel(%arg0: i32, %arg1: memref<64x32xf32, #tpu.memory_space<vmem>>, %arg2: memref<2x104x128xf32, #tpu.memory_space<vmem>>, %arg3: memref<2x4x64x64xbf16, #tpu.memory_space<vmem>>, %arg4: memref<64x32xf32, #tpu.memory_space<vmem>>) attributes {dimension_semantics = [#tpu.dimension_semantics<parallel>], iteration_bounds = array<i64: 2>, scalar_prefetch = 0 : i64, scratch_operands = 0 : i64, tpu.core_type = #tpu.core_type<tc>, window_params = [{transform_indices = @transform_0, window_bounds = array<i64: 64, 32>}, {pipeline_mode = #tpu.pipeline_mode<synchronous>, transform_indices = @transform_1, window_bounds = array<i64: 2, 104, 128>}, {pipeline_mode = #tpu.pipeline_mode<synchronous>, transform_indices = @transform_2, window_bounds = array<i64: 2, 4, 64, 64>}, {transform_indices = @transform_3, window_bounds = array<i64: 64, 32>}]} {
    %c0 = arith.constant 0 : index
    %c0_0 = arith.constant 0 : index
    %0 = vector.load %arg1[%c0, %c0_0] : memref<64x32xf32, #tpu.memory_space<vmem>>, vector<64x32xf32>
    %c0_1 = arith.constant 0 : index
    %c0_2 = arith.constant 0 : index
    %c0_3 = arith.constant 0 : index
    %1 = vector.load %arg2[%c0_1, %c0_2, %c0_3] : memref<2x104x128xf32, #tpu.memory_space<vmem>>, vector<1x32x128xf32>
    %2 = vector.shape_cast %1 : vector<1x32x128xf32> to vector<32x128xf32>
    %c0_4 = arith.constant 0 : index
    %c32 = arith.constant 32 : index
    %c0_5 = arith.constant 0 : index
    %3 = vector.load %arg2[%c0_4, %c32, %c0_5] : memref<2x104x128xf32, #tpu.memory_space<vmem>>, vector<1x32x128xf32>
    %4 = vector.shape_cast %3 : vector<1x32x128xf32> to vector<32x128xf32>
    %c0_6 = arith.constant 0 : index
    %c64 = arith.constant 64 : index
    %c0_7 = arith.constant 0 : index
    %5 = vector.load %arg2[%c0_6, %c64, %c0_7] : memref<2x104x128xf32, #tpu.memory_space<vmem>>, vector<1x32x128xf32>
    %6 = vector.shape_cast %5 : vector<1x32x128xf32> to vector<32x128xf32>
    %c0_8 = arith.constant 0 : index
    %c96 = arith.constant 96 : index
    %c0_9 = arith.constant 0 : index
    %7 = vector.load %arg2[%c0_8, %c96, %c0_9] : memref<2x104x128xf32, #tpu.memory_space<vmem>>, vector<1x8x128xf32>
    %8 = vector.shape_cast %7 : vector<1x8x128xf32> to vector<8x128xf32>
    %9 = vector.extract_strided_slice %8 {offsets = [0, 0], sizes = [1, 32], strides = [1, 1]} : vector<8x128xf32> to vector<1x32xf32>
    %10 = vector.extract_strided_slice %8 {offsets = [0, 32], sizes = [1, 32], strides = [1, 1]} : vector<8x128xf32> to vector<1x32xf32>
    %11 = vector.extract_strided_slice %8 {offsets = [0, 64], sizes = [1, 32], strides = [1, 1]} : vector<8x128xf32> to vector<1x32xf32>
    %12 = vector.extract_strided_slice %8 {offsets = [0, 96], sizes = [1, 32], strides = [1, 1]} : vector<8x128xf32> to vector<1x32xf32>
    %13 = vector.extract_strided_slice %8 {offsets = [1, 0], sizes = [1, 96], strides = [1, 1]} : vector<8x128xf32> to vector<1x96xf32>
    %14 = vector.extract_strided_slice %8 {offsets = [1, 96], sizes = [1, 32], strides = [1, 1]} : vector<8x128xf32> to vector<1x32xf32>
    %15 = vector.extract_strided_slice %8 {offsets = [2, 0], sizes = [1, 128], strides = [1, 1]} : vector<8x128xf32> to vector<1x128xf32>
    %16 = vector.extract_strided_slice %8 {offsets = [3, 0], sizes = [1, 32], strides = [1, 1]} : vector<8x128xf32> to vector<1x32xf32>
    %cst = arith.constant dense<0.000000e+00> : vector<64xf32>
    %17 = vector.multi_reduction <add>, %0, %cst [1] : vector<64x32xf32> to vector<64xf32>
    %18 = vector.shape_cast %17 : vector<64xf32> to vector<64x1xf32>
    %cst_10 = arith.constant 3.200000e+01 : f32
    %19 = vector.broadcast %cst_10 : f32 to vector<64x1xf32>
    %20 = arith.divf %18, %19 : vector<64x1xf32>
    %21 = vector.broadcast %20 : vector<64x1xf32> to vector<64x32xf32>
    %22 = arith.subf %0, %21 : vector<64x32xf32>
    %23 = arith.mulf %22, %22 : vector<64x32xf32>
    %cst_11 = arith.constant dense<0.000000e+00> : vector<64xf32>
    %24 = vector.multi_reduction <add>, %23, %cst_11 [1] : vector<64x32xf32> to vector<64xf32>
    %25 = vector.shape_cast %24 : vector<64xf32> to vector<64x1xf32>
    %cst_12 = arith.constant 3.200000e+01 : f32
    %26 = vector.broadcast %cst_12 : f32 to vector<64x1xf32>
    %27 = arith.divf %25, %26 : vector<64x1xf32>
    %28 = vector.broadcast %20 : vector<64x1xf32> to vector<64x32xf32>
    %29 = arith.subf %0, %28 : vector<64x32xf32>
    %cst_13 = arith.constant 9.99999974E-6 : f32
    %30 = vector.broadcast %cst_13 : f32 to vector<64x1xf32>
    %31 = arith.addf %27, %30 : vector<64x1xf32>
    %32 = math.rsqrt %31 : vector<64x1xf32>
    %33 = vector.broadcast %32 : vector<64x1xf32> to vector<64x32xf32>
    %34 = arith.mulf %29, %33 : vector<64x32xf32>
    %35 = vector.broadcast %9 : vector<1x32xf32> to vector<64x32xf32>
    %36 = arith.mulf %34, %35 : vector<64x32xf32>
    %37 = vector.broadcast %10 : vector<1x32xf32> to vector<64x32xf32>
    %38 = arith.addf %36, %37 : vector<64x32xf32>
    %cst_14 = arith.constant dense<0.000000e+00> : vector<64x128xf32>
    %39 = tpu.matmul %38, %2, %cst_14 {dimension_numbers = #tpu.dot_dimension_numbers<[1], [0], [0], [1], [0, 0, 1, 1], [], []>} : vector<64x32xf32>, vector<32x128xf32>, vector<64x128xf32> -> vector<64x128xf32>
    %40 = vector.extract_strided_slice %39 {offsets = [0, 0], sizes = [64, 96], strides = [1, 1]} : vector<64x128xf32> to vector<64x96xf32>
    %41 = vector.broadcast %13 : vector<1x96xf32> to vector<64x96xf32>
    %42 = arith.addf %40, %41 : vector<64x96xf32>
    %43 = vector.extract_strided_slice %42 {offsets = [0, 0], sizes = [64, 8], strides = [1, 1]} : vector<64x96xf32> to vector<64x8xf32>
    %cst_15 = arith.constant 0.353553385 : f32
    %44 = vector.broadcast %cst_15 : f32 to vector<64x8xf32>
    %45 = arith.mulf %43, %44 : vector<64x8xf32>
    %46 = vector.extract_strided_slice %42 {offsets = [0, 32], sizes = [64, 8], strides = [1, 1]} : vector<64x96xf32> to vector<64x8xf32>
    %47 = vector.extract_strided_slice %42 {offsets = [0, 64], sizes = [64, 8], strides = [1, 1]} : vector<64x96xf32> to vector<64x8xf32>
    %cst_16 = arith.constant dense<0.000000e+00> : vector<64x64xf32>
    %48 = tpu.matmul %45, %46, %cst_16 {dimension_numbers = #tpu.dot_dimension_numbers<[1], [1], [0], [0], [0, 0, 1, 0], [], []>} : vector<64x8xf32>, vector<64x8xf32>, vector<64x64xf32> -> vector<64x64xf32>
    %c0_17 = arith.constant 0 : index
    %c0_18 = arith.constant 0 : index
    %c0_19 = arith.constant 0 : index
    %c0_20 = arith.constant 0 : index
    %49 = vector.load %arg3[%c0_17, %c0_18, %c0_19, %c0_20] : memref<2x4x64x64xbf16, #tpu.memory_space<vmem>>, vector<1x1x64x64xbf16>
    %50 = vector.shape_cast %49 : vector<1x1x64x64xbf16> to vector<64x64xbf16>
    %51 = arith.extf %50 : vector<64x64xbf16> to vector<64x64xf32>
    %52 = arith.addf %48, %51 : vector<64x64xf32>
    %cst_21 = arith.constant dense<0xFF800000> : vector<64xf32>
    %53 = vector.multi_reduction <maximumf>, %52, %cst_21 [1] : vector<64x64xf32> to vector<64xf32>
    %54 = vector.shape_cast %53 : vector<64xf32> to vector<64x1xf32>
    %55 = vector.broadcast %54 : vector<64x1xf32> to vector<64x64xf32>
    %56 = arith.subf %52, %55 : vector<64x64xf32>
    %57 = math.exp %56 : vector<64x64xf32>
    %cst_22 = arith.constant dense<0.000000e+00> : vector<64xf32>
    %58 = vector.multi_reduction <add>, %57, %cst_22 [1] : vector<64x64xf32> to vector<64xf32>
    %59 = vector.shape_cast %58 : vector<64xf32> to vector<64x1xf32>
    %60 = tpu.reciprocal %59 {approx = true} : vector<64x1xf32> -> vector<64x1xf32>
    %61 = vector.broadcast %60 : vector<64x1xf32> to vector<64x64xf32>
    %62 = arith.mulf %57, %61 : vector<64x64xf32>
    %cst_23 = arith.constant dense<0.000000e+00> : vector<64x8xf32>
    %63 = tpu.matmul %62, %47, %cst_23 {dimension_numbers = #tpu.dot_dimension_numbers<[1], [0], [0], [1], [0, 0, 1, 1], [], []>} : vector<64x64xf32>, vector<64x8xf32>, vector<64x8xf32> -> vector<64x8xf32>
    %64 = vector.extract_strided_slice %42 {offsets = [0, 8], sizes = [64, 8], strides = [1, 1]} : vector<64x96xf32> to vector<64x8xf32>
    %cst_24 = arith.constant 0.353553385 : f32
    %65 = vector.broadcast %cst_24 : f32 to vector<64x8xf32>
    %66 = arith.mulf %64, %65 : vector<64x8xf32>
    %67 = vector.extract_strided_slice %42 {offsets = [0, 40], sizes = [64, 8], strides = [1, 1]} : vector<64x96xf32> to vector<64x8xf32>
    %68 = vector.extract_strided_slice %42 {offsets = [0, 72], sizes = [64, 8], strides = [1, 1]} : vector<64x96xf32> to vector<64x8xf32>
    %cst_25 = arith.constant dense<0.000000e+00> : vector<64x64xf32>
    %69 = tpu.matmul %66, %67, %cst_25 {dimension_numbers = #tpu.dot_dimension_numbers<[1], [1], [0], [0], [0, 0, 1, 0], [], []>} : vector<64x8xf32>, vector<64x8xf32>, vector<64x64xf32> -> vector<64x64xf32>
    %c0_26 = arith.constant 0 : index
    %c1 = arith.constant 1 : index
    %c0_27 = arith.constant 0 : index
    %c0_28 = arith.constant 0 : index
    %70 = vector.load %arg3[%c0_26, %c1, %c0_27, %c0_28] : memref<2x4x64x64xbf16, #tpu.memory_space<vmem>>, vector<1x1x64x64xbf16>
    %71 = vector.shape_cast %70 : vector<1x1x64x64xbf16> to vector<64x64xbf16>
    %72 = arith.extf %71 : vector<64x64xbf16> to vector<64x64xf32>
    %73 = arith.addf %69, %72 : vector<64x64xf32>
    %cst_29 = arith.constant dense<0xFF800000> : vector<64xf32>
    %74 = vector.multi_reduction <maximumf>, %73, %cst_29 [1] : vector<64x64xf32> to vector<64xf32>
    %75 = vector.shape_cast %74 : vector<64xf32> to vector<64x1xf32>
    %76 = vector.broadcast %75 : vector<64x1xf32> to vector<64x64xf32>
    %77 = arith.subf %73, %76 : vector<64x64xf32>
    %78 = math.exp %77 : vector<64x64xf32>
    %cst_30 = arith.constant dense<0.000000e+00> : vector<64xf32>
    %79 = vector.multi_reduction <add>, %78, %cst_30 [1] : vector<64x64xf32> to vector<64xf32>
    %80 = vector.shape_cast %79 : vector<64xf32> to vector<64x1xf32>
    %81 = tpu.reciprocal %80 {approx = true} : vector<64x1xf32> -> vector<64x1xf32>
    %82 = vector.broadcast %81 : vector<64x1xf32> to vector<64x64xf32>
    %83 = arith.mulf %78, %82 : vector<64x64xf32>
    %cst_31 = arith.constant dense<0.000000e+00> : vector<64x8xf32>
    %84 = tpu.matmul %83, %68, %cst_31 {dimension_numbers = #tpu.dot_dimension_numbers<[1], [0], [0], [1], [0, 0, 1, 1], [], []>} : vector<64x64xf32>, vector<64x8xf32>, vector<64x8xf32> -> vector<64x8xf32>
    %85 = vector.extract_strided_slice %42 {offsets = [0, 16], sizes = [64, 8], strides = [1, 1]} : vector<64x96xf32> to vector<64x8xf32>
    %cst_32 = arith.constant 0.353553385 : f32
    %86 = vector.broadcast %cst_32 : f32 to vector<64x8xf32>
    %87 = arith.mulf %85, %86 : vector<64x8xf32>
    %88 = vector.extract_strided_slice %42 {offsets = [0, 48], sizes = [64, 8], strides = [1, 1]} : vector<64x96xf32> to vector<64x8xf32>
    %89 = vector.extract_strided_slice %42 {offsets = [0, 80], sizes = [64, 8], strides = [1, 1]} : vector<64x96xf32> to vector<64x8xf32>
    %cst_33 = arith.constant dense<0.000000e+00> : vector<64x64xf32>
    %90 = tpu.matmul %87, %88, %cst_33 {dimension_numbers = #tpu.dot_dimension_numbers<[1], [1], [0], [0], [0, 0, 1, 0], [], []>} : vector<64x8xf32>, vector<64x8xf32>, vector<64x64xf32> -> vector<64x64xf32>
    %c0_34 = arith.constant 0 : index
    %c2 = arith.constant 2 : index
    %c0_35 = arith.constant 0 : index
    %c0_36 = arith.constant 0 : index
    %91 = vector.load %arg3[%c0_34, %c2, %c0_35, %c0_36] : memref<2x4x64x64xbf16, #tpu.memory_space<vmem>>, vector<1x1x64x64xbf16>
    %92 = vector.shape_cast %91 : vector<1x1x64x64xbf16> to vector<64x64xbf16>
    %93 = arith.extf %92 : vector<64x64xbf16> to vector<64x64xf32>
    %94 = arith.addf %90, %93 : vector<64x64xf32>
    %cst_37 = arith.constant dense<0xFF800000> : vector<64xf32>
    %95 = vector.multi_reduction <maximumf>, %94, %cst_37 [1] : vector<64x64xf32> to vector<64xf32>
    %96 = vector.shape_cast %95 : vector<64xf32> to vector<64x1xf32>
    %97 = vector.broadcast %96 : vector<64x1xf32> to vector<64x64xf32>
    %98 = arith.subf %94, %97 : vector<64x64xf32>
    %99 = math.exp %98 : vector<64x64xf32>
    %cst_38 = arith.constant dense<0.000000e+00> : vector<64xf32>
    %100 = vector.multi_reduction <add>, %99, %cst_38 [1] : vector<64x64xf32> to vector<64xf32>
    %101 = vector.shape_cast %100 : vector<64xf32> to vector<64x1xf32>
    %102 = tpu.reciprocal %101 {approx = true} : vector<64x1xf32> -> vector<64x1xf32>
    %103 = vector.broadcast %102 : vector<64x1xf32> to vector<64x64xf32>
    %104 = arith.mulf %99, %103 : vector<64x64xf32>
    %cst_39 = arith.constant dense<0.000000e+00> : vector<64x8xf32>
    %105 = tpu.matmul %104, %89, %cst_39 {dimension_numbers = #tpu.dot_dimension_numbers<[1], [0], [0], [1], [0, 0, 1, 1], [], []>} : vector<64x64xf32>, vector<64x8xf32>, vector<64x8xf32> -> vector<64x8xf32>
    %106 = vector.extract_strided_slice %42 {offsets = [0, 24], sizes = [64, 8], strides = [1, 1]} : vector<64x96xf32> to vector<64x8xf32>
    %cst_40 = arith.constant 0.353553385 : f32
    %107 = vector.broadcast %cst_40 : f32 to vector<64x8xf32>
    %108 = arith.mulf %106, %107 : vector<64x8xf32>
    %109 = vector.extract_strided_slice %42 {offsets = [0, 56], sizes = [64, 8], strides = [1, 1]} : vector<64x96xf32> to vector<64x8xf32>
    %110 = vector.extract_strided_slice %42 {offsets = [0, 88], sizes = [64, 8], strides = [1, 1]} : vector<64x96xf32> to vector<64x8xf32>
    %cst_41 = arith.constant dense<0.000000e+00> : vector<64x64xf32>
    %111 = tpu.matmul %108, %109, %cst_41 {dimension_numbers = #tpu.dot_dimension_numbers<[1], [1], [0], [0], [0, 0, 1, 0], [], []>} : vector<64x8xf32>, vector<64x8xf32>, vector<64x64xf32> -> vector<64x64xf32>
    %c0_42 = arith.constant 0 : index
    %c3 = arith.constant 3 : index
    %c0_43 = arith.constant 0 : index
    %c0_44 = arith.constant 0 : index
    %112 = vector.load %arg3[%c0_42, %c3, %c0_43, %c0_44] : memref<2x4x64x64xbf16, #tpu.memory_space<vmem>>, vector<1x1x64x64xbf16>
    %113 = vector.shape_cast %112 : vector<1x1x64x64xbf16> to vector<64x64xbf16>
    %114 = arith.extf %113 : vector<64x64xbf16> to vector<64x64xf32>
    %115 = arith.addf %111, %114 : vector<64x64xf32>
    %cst_45 = arith.constant dense<0xFF800000> : vector<64xf32>
    %116 = vector.multi_reduction <maximumf>, %115, %cst_45 [1] : vector<64x64xf32> to vector<64xf32>
    %117 = vector.shape_cast %116 : vector<64xf32> to vector<64x1xf32>
    %118 = vector.broadcast %117 : vector<64x1xf32> to vector<64x64xf32>
    %119 = arith.subf %115, %118 : vector<64x64xf32>
    %120 = math.exp %119 : vector<64x64xf32>
    %cst_46 = arith.constant dense<0.000000e+00> : vector<64xf32>
    %121 = vector.multi_reduction <add>, %120, %cst_46 [1] : vector<64x64xf32> to vector<64xf32>
    %122 = vector.shape_cast %121 : vector<64xf32> to vector<64x1xf32>
    %123 = tpu.reciprocal %122 {approx = true} : vector<64x1xf32> -> vector<64x1xf32>
    %124 = vector.broadcast %123 : vector<64x1xf32> to vector<64x64xf32>
    %125 = arith.mulf %120, %124 : vector<64x64xf32>
    %cst_47 = arith.constant dense<0.000000e+00> : vector<64x8xf32>
    %126 = tpu.matmul %125, %110, %cst_47 {dimension_numbers = #tpu.dot_dimension_numbers<[1], [0], [0], [1], [0, 0, 1, 1], [], []>} : vector<64x64xf32>, vector<64x8xf32>, vector<64x8xf32> -> vector<64x8xf32>
    %127 = tpu.concatenate %63, %84, %105, %126 in 1 : vector<64x8xf32>, vector<64x8xf32>, vector<64x8xf32>, vector<64x8xf32> -> vector<64x32xf32>
    %128 = vector.extract_strided_slice %2 {offsets = [0, 96], sizes = [32, 32], strides = [1, 1]} : vector<32x128xf32> to vector<32x32xf32>
    %cst_48 = arith.constant dense<0.000000e+00> : vector<64x32xf32>
    %129 = tpu.matmul %127, %128, %cst_48 {dimension_numbers = #tpu.dot_dimension_numbers<[1], [0], [0], [1], [0, 0, 1, 1], [], []>} : vector<64x32xf32>, vector<32x32xf32>, vector<64x32xf32> -> vector<64x32xf32>
    %130 = vector.broadcast %14 : vector<1x32xf32> to vector<64x32xf32>
    %131 = arith.addf %129, %130 : vector<64x32xf32>
    %132 = arith.addf %0, %131 : vector<64x32xf32>
    %cst_49 = arith.constant dense<0.000000e+00> : vector<64xf32>
    %133 = vector.multi_reduction <add>, %132, %cst_49 [1] : vector<64x32xf32> to vector<64xf32>
    %134 = vector.shape_cast %133 : vector<64xf32> to vector<64x1xf32>
    %cst_50 = arith.constant 3.200000e+01 : f32
    %135 = vector.broadcast %cst_50 : f32 to vector<64x1xf32>
    %136 = arith.divf %134, %135 : vector<64x1xf32>
    %137 = vector.broadcast %136 : vector<64x1xf32> to vector<64x32xf32>
    %138 = arith.subf %132, %137 : vector<64x32xf32>
    %139 = arith.mulf %138, %138 : vector<64x32xf32>
    %cst_51 = arith.constant dense<0.000000e+00> : vector<64xf32>
    %140 = vector.multi_reduction <add>, %139, %cst_51 [1] : vector<64x32xf32> to vector<64xf32>
    %141 = vector.shape_cast %140 : vector<64xf32> to vector<64x1xf32>
    %cst_52 = arith.constant 3.200000e+01 : f32
    %142 = vector.broadcast %cst_52 : f32 to vector<64x1xf32>
    %143 = arith.divf %141, %142 : vector<64x1xf32>
    %144 = vector.broadcast %136 : vector<64x1xf32> to vector<64x32xf32>
    %145 = arith.subf %132, %144 : vector<64x32xf32>
    %cst_53 = arith.constant 9.99999974E-6 : f32
    %146 = vector.broadcast %cst_53 : f32 to vector<64x1xf32>
    %147 = arith.addf %143, %146 : vector<64x1xf32>
    %148 = math.rsqrt %147 : vector<64x1xf32>
    %149 = vector.broadcast %148 : vector<64x1xf32> to vector<64x32xf32>
    %150 = arith.mulf %145, %149 : vector<64x32xf32>
    %151 = vector.broadcast %11 : vector<1x32xf32> to vector<64x32xf32>
    %152 = arith.mulf %150, %151 : vector<64x32xf32>
    %153 = vector.broadcast %12 : vector<1x32xf32> to vector<64x32xf32>
    %154 = arith.addf %152, %153 : vector<64x32xf32>
    %cst_54 = arith.constant dense<0.000000e+00> : vector<64x128xf32>
    %155 = tpu.matmul %154, %4, %cst_54 {dimension_numbers = #tpu.dot_dimension_numbers<[1], [0], [0], [1], [0, 0, 1, 1], [], []>} : vector<64x32xf32>, vector<32x128xf32>, vector<64x128xf32> -> vector<64x128xf32>
    %156 = vector.broadcast %15 : vector<1x128xf32> to vector<64x128xf32>
    %157 = arith.addf %155, %156 : vector<64x128xf32>
    %cst_55 = arith.constant 5.000000e-01 : f32
    %158 = vector.broadcast %cst_55 : f32 to vector<64x128xf32>
    %159 = arith.mulf %158, %157 : vector<64x128xf32>
    %cst_56 = arith.constant 0.707106769 : f32
    %160 = vector.broadcast %cst_56 : f32 to vector<64x128xf32>
    %161 = arith.mulf %157, %160 : vector<64x128xf32>
    %162 = math.erf %161 : vector<64x128xf32>
    %cst_57 = arith.constant 1.000000e+00 : f32
    %163 = vector.broadcast %cst_57 : f32 to vector<64x128xf32>
    %164 = arith.addf %163, %162 : vector<64x128xf32>
    %165 = arith.mulf %159, %164 : vector<64x128xf32>
    %cst_58 = arith.constant dense<0.000000e+00> : vector<64x32xf32>
    %166 = tpu.matmul %165, %6, %cst_58 {dimension_numbers = #tpu.dot_dimension_numbers<[1], [1], [0], [0], [0, 0, 1, 0], [], []>} : vector<64x128xf32>, vector<32x128xf32>, vector<64x32xf32> -> vector<64x32xf32>
    %167 = vector.broadcast %16 : vector<1x32xf32> to vector<64x32xf32>
    %168 = arith.addf %166, %167 : vector<64x32xf32>
    %169 = arith.addf %132, %168 : vector<64x32xf32>
    %c1_59 = arith.constant 1 : index
    %c0_60 = arith.constant 0 : index
    %c0_61 = arith.constant 0 : index
    %170 = vector.load %arg2[%c1_59, %c0_60, %c0_61] : memref<2x104x128xf32, #tpu.memory_space<vmem>>, vector<1x32x128xf32>
    %171 = vector.shape_cast %170 : vector<1x32x128xf32> to vector<32x128xf32>
    %c1_62 = arith.constant 1 : index
    %c32_63 = arith.constant 32 : index
    %c0_64 = arith.constant 0 : index
    %172 = vector.load %arg2[%c1_62, %c32_63, %c0_64] : memref<2x104x128xf32, #tpu.memory_space<vmem>>, vector<1x32x128xf32>
    %173 = vector.shape_cast %172 : vector<1x32x128xf32> to vector<32x128xf32>
    %c1_65 = arith.constant 1 : index
    %c64_66 = arith.constant 64 : index
    %c0_67 = arith.constant 0 : index
    %174 = vector.load %arg2[%c1_65, %c64_66, %c0_67] : memref<2x104x128xf32, #tpu.memory_space<vmem>>, vector<1x32x128xf32>
    %175 = vector.shape_cast %174 : vector<1x32x128xf32> to vector<32x128xf32>
    %c1_68 = arith.constant 1 : index
    %c96_69 = arith.constant 96 : index
    %c0_70 = arith.constant 0 : index
    %176 = vector.load %arg2[%c1_68, %c96_69, %c0_70] : memref<2x104x128xf32, #tpu.memory_space<vmem>>, vector<1x8x128xf32>
    %177 = vector.shape_cast %176 : vector<1x8x128xf32> to vector<8x128xf32>
    %178 = vector.extract_strided_slice %177 {offsets = [0, 0], sizes = [1, 32], strides = [1, 1]} : vector<8x128xf32> to vector<1x32xf32>
    %179 = vector.extract_strided_slice %177 {offsets = [0, 32], sizes = [1, 32], strides = [1, 1]} : vector<8x128xf32> to vector<1x32xf32>
    %180 = vector.extract_strided_slice %177 {offsets = [0, 64], sizes = [1, 32], strides = [1, 1]} : vector<8x128xf32> to vector<1x32xf32>
    %181 = vector.extract_strided_slice %177 {offsets = [0, 96], sizes = [1, 32], strides = [1, 1]} : vector<8x128xf32> to vector<1x32xf32>
    %182 = vector.extract_strided_slice %177 {offsets = [1, 0], sizes = [1, 96], strides = [1, 1]} : vector<8x128xf32> to vector<1x96xf32>
    %183 = vector.extract_strided_slice %177 {offsets = [1, 96], sizes = [1, 32], strides = [1, 1]} : vector<8x128xf32> to vector<1x32xf32>
    %184 = vector.extract_strided_slice %177 {offsets = [2, 0], sizes = [1, 128], strides = [1, 1]} : vector<8x128xf32> to vector<1x128xf32>
    %185 = vector.extract_strided_slice %177 {offsets = [3, 0], sizes = [1, 32], strides = [1, 1]} : vector<8x128xf32> to vector<1x32xf32>
    %cst_71 = arith.constant dense<0.000000e+00> : vector<64xf32>
    %186 = vector.multi_reduction <add>, %169, %cst_71 [1] : vector<64x32xf32> to vector<64xf32>
    %187 = vector.shape_cast %186 : vector<64xf32> to vector<64x1xf32>
    %cst_72 = arith.constant 3.200000e+01 : f32
    %188 = vector.broadcast %cst_72 : f32 to vector<64x1xf32>
    %189 = arith.divf %187, %188 : vector<64x1xf32>
    %190 = vector.broadcast %189 : vector<64x1xf32> to vector<64x32xf32>
    %191 = arith.subf %169, %190 : vector<64x32xf32>
    %192 = arith.mulf %191, %191 : vector<64x32xf32>
    %cst_73 = arith.constant dense<0.000000e+00> : vector<64xf32>
    %193 = vector.multi_reduction <add>, %192, %cst_73 [1] : vector<64x32xf32> to vector<64xf32>
    %194 = vector.shape_cast %193 : vector<64xf32> to vector<64x1xf32>
    %cst_74 = arith.constant 3.200000e+01 : f32
    %195 = vector.broadcast %cst_74 : f32 to vector<64x1xf32>
    %196 = arith.divf %194, %195 : vector<64x1xf32>
    %197 = vector.broadcast %189 : vector<64x1xf32> to vector<64x32xf32>
    %198 = arith.subf %169, %197 : vector<64x32xf32>
    %cst_75 = arith.constant 9.99999974E-6 : f32
    %199 = vector.broadcast %cst_75 : f32 to vector<64x1xf32>
    %200 = arith.addf %196, %199 : vector<64x1xf32>
    %201 = math.rsqrt %200 : vector<64x1xf32>
    %202 = vector.broadcast %201 : vector<64x1xf32> to vector<64x32xf32>
    %203 = arith.mulf %198, %202 : vector<64x32xf32>
    %204 = vector.broadcast %178 : vector<1x32xf32> to vector<64x32xf32>
    %205 = arith.mulf %203, %204 : vector<64x32xf32>
    %206 = vector.broadcast %179 : vector<1x32xf32> to vector<64x32xf32>
    %207 = arith.addf %205, %206 : vector<64x32xf32>
    %cst_76 = arith.constant dense<0.000000e+00> : vector<64x128xf32>
    %208 = tpu.matmul %207, %171, %cst_76 {dimension_numbers = #tpu.dot_dimension_numbers<[1], [0], [0], [1], [0, 0, 1, 1], [], []>} : vector<64x32xf32>, vector<32x128xf32>, vector<64x128xf32> -> vector<64x128xf32>
    %209 = vector.extract_strided_slice %208 {offsets = [0, 0], sizes = [64, 96], strides = [1, 1]} : vector<64x128xf32> to vector<64x96xf32>
    %210 = vector.broadcast %182 : vector<1x96xf32> to vector<64x96xf32>
    %211 = arith.addf %209, %210 : vector<64x96xf32>
    %212 = vector.extract_strided_slice %211 {offsets = [0, 0], sizes = [64, 8], strides = [1, 1]} : vector<64x96xf32> to vector<64x8xf32>
    %cst_77 = arith.constant 0.353553385 : f32
    %213 = vector.broadcast %cst_77 : f32 to vector<64x8xf32>
    %214 = arith.mulf %212, %213 : vector<64x8xf32>
    %215 = vector.extract_strided_slice %211 {offsets = [0, 32], sizes = [64, 8], strides = [1, 1]} : vector<64x96xf32> to vector<64x8xf32>
    %216 = vector.extract_strided_slice %211 {offsets = [0, 64], sizes = [64, 8], strides = [1, 1]} : vector<64x96xf32> to vector<64x8xf32>
    %cst_78 = arith.constant dense<0.000000e+00> : vector<64x64xf32>
    %217 = tpu.matmul %214, %215, %cst_78 {dimension_numbers = #tpu.dot_dimension_numbers<[1], [1], [0], [0], [0, 0, 1, 0], [], []>} : vector<64x8xf32>, vector<64x8xf32>, vector<64x64xf32> -> vector<64x64xf32>
    %c1_79 = arith.constant 1 : index
    %c0_80 = arith.constant 0 : index
    %c0_81 = arith.constant 0 : index
    %c0_82 = arith.constant 0 : index
    %218 = vector.load %arg3[%c1_79, %c0_80, %c0_81, %c0_82] : memref<2x4x64x64xbf16, #tpu.memory_space<vmem>>, vector<1x1x64x64xbf16>
    %219 = vector.shape_cast %218 : vector<1x1x64x64xbf16> to vector<64x64xbf16>
    %220 = arith.extf %219 : vector<64x64xbf16> to vector<64x64xf32>
    %221 = arith.addf %217, %220 : vector<64x64xf32>
    %cst_83 = arith.constant dense<0xFF800000> : vector<64xf32>
    %222 = vector.multi_reduction <maximumf>, %221, %cst_83 [1] : vector<64x64xf32> to vector<64xf32>
    %223 = vector.shape_cast %222 : vector<64xf32> to vector<64x1xf32>
    %224 = vector.broadcast %223 : vector<64x1xf32> to vector<64x64xf32>
    %225 = arith.subf %221, %224 : vector<64x64xf32>
    %226 = math.exp %225 : vector<64x64xf32>
    %cst_84 = arith.constant dense<0.000000e+00> : vector<64xf32>
    %227 = vector.multi_reduction <add>, %226, %cst_84 [1] : vector<64x64xf32> to vector<64xf32>
    %228 = vector.shape_cast %227 : vector<64xf32> to vector<64x1xf32>
    %229 = tpu.reciprocal %228 {approx = true} : vector<64x1xf32> -> vector<64x1xf32>
    %230 = vector.broadcast %229 : vector<64x1xf32> to vector<64x64xf32>
    %231 = arith.mulf %226, %230 : vector<64x64xf32>
    %cst_85 = arith.constant dense<0.000000e+00> : vector<64x8xf32>
    %232 = tpu.matmul %231, %216, %cst_85 {dimension_numbers = #tpu.dot_dimension_numbers<[1], [0], [0], [1], [0, 0, 1, 1], [], []>} : vector<64x64xf32>, vector<64x8xf32>, vector<64x8xf32> -> vector<64x8xf32>
    %233 = vector.extract_strided_slice %211 {offsets = [0, 8], sizes = [64, 8], strides = [1, 1]} : vector<64x96xf32> to vector<64x8xf32>
    %cst_86 = arith.constant 0.353553385 : f32
    %234 = vector.broadcast %cst_86 : f32 to vector<64x8xf32>
    %235 = arith.mulf %233, %234 : vector<64x8xf32>
    %236 = vector.extract_strided_slice %211 {offsets = [0, 40], sizes = [64, 8], strides = [1, 1]} : vector<64x96xf32> to vector<64x8xf32>
    %237 = vector.extract_strided_slice %211 {offsets = [0, 72], sizes = [64, 8], strides = [1, 1]} : vector<64x96xf32> to vector<64x8xf32>
    %cst_87 = arith.constant dense<0.000000e+00> : vector<64x64xf32>
    %238 = tpu.matmul %235, %236, %cst_87 {dimension_numbers = #tpu.dot_dimension_numbers<[1], [1], [0], [0], [0, 0, 1, 0], [], []>} : vector<64x8xf32>, vector<64x8xf32>, vector<64x64xf32> -> vector<64x64xf32>
    %c1_88 = arith.constant 1 : index
    %c1_89 = arith.constant 1 : index
    %c0_90 = arith.constant 0 : index
    %c0_91 = arith.constant 0 : index
    %239 = vector.load %arg3[%c1_88, %c1_89, %c0_90, %c0_91] : memref<2x4x64x64xbf16, #tpu.memory_space<vmem>>, vector<1x1x64x64xbf16>
    %240 = vector.shape_cast %239 : vector<1x1x64x64xbf16> to vector<64x64xbf16>
    %241 = arith.extf %240 : vector<64x64xbf16> to vector<64x64xf32>
    %242 = arith.addf %238, %241 : vector<64x64xf32>
    %cst_92 = arith.constant dense<0xFF800000> : vector<64xf32>
    %243 = vector.multi_reduction <maximumf>, %242, %cst_92 [1] : vector<64x64xf32> to vector<64xf32>
    %244 = vector.shape_cast %243 : vector<64xf32> to vector<64x1xf32>
    %245 = vector.broadcast %244 : vector<64x1xf32> to vector<64x64xf32>
    %246 = arith.subf %242, %245 : vector<64x64xf32>
    %247 = math.exp %246 : vector<64x64xf32>
    %cst_93 = arith.constant dense<0.000000e+00> : vector<64xf32>
    %248 = vector.multi_reduction <add>, %247, %cst_93 [1] : vector<64x64xf32> to vector<64xf32>
    %249 = vector.shape_cast %248 : vector<64xf32> to vector<64x1xf32>
    %250 = tpu.reciprocal %249 {approx = true} : vector<64x1xf32> -> vector<64x1xf32>
    %251 = vector.broadcast %250 : vector<64x1xf32> to vector<64x64xf32>
    %252 = arith.mulf %247, %251 : vector<64x64xf32>
    %cst_94 = arith.constant dense<0.000000e+00> : vector<64x8xf32>
    %253 = tpu.matmul %252, %237, %cst_94 {dimension_numbers = #tpu.dot_dimension_numbers<[1], [0], [0], [1], [0, 0, 1, 1], [], []>} : vector<64x64xf32>, vector<64x8xf32>, vector<64x8xf32> -> vector<64x8xf32>
    %254 = vector.extract_strided_slice %211 {offsets = [0, 16], sizes = [64, 8], strides = [1, 1]} : vector<64x96xf32> to vector<64x8xf32>
    %cst_95 = arith.constant 0.353553385 : f32
    %255 = vector.broadcast %cst_95 : f32 to vector<64x8xf32>
    %256 = arith.mulf %254, %255 : vector<64x8xf32>
    %257 = vector.extract_strided_slice %211 {offsets = [0, 48], sizes = [64, 8], strides = [1, 1]} : vector<64x96xf32> to vector<64x8xf32>
    %258 = vector.extract_strided_slice %211 {offsets = [0, 80], sizes = [64, 8], strides = [1, 1]} : vector<64x96xf32> to vector<64x8xf32>
    %cst_96 = arith.constant dense<0.000000e+00> : vector<64x64xf32>
    %259 = tpu.matmul %256, %257, %cst_96 {dimension_numbers = #tpu.dot_dimension_numbers<[1], [1], [0], [0], [0, 0, 1, 0], [], []>} : vector<64x8xf32>, vector<64x8xf32>, vector<64x64xf32> -> vector<64x64xf32>
    %c1_97 = arith.constant 1 : index
    %c2_98 = arith.constant 2 : index
    %c0_99 = arith.constant 0 : index
    %c0_100 = arith.constant 0 : index
    %260 = vector.load %arg3[%c1_97, %c2_98, %c0_99, %c0_100] : memref<2x4x64x64xbf16, #tpu.memory_space<vmem>>, vector<1x1x64x64xbf16>
    %261 = vector.shape_cast %260 : vector<1x1x64x64xbf16> to vector<64x64xbf16>
    %262 = arith.extf %261 : vector<64x64xbf16> to vector<64x64xf32>
    %263 = arith.addf %259, %262 : vector<64x64xf32>
    %cst_101 = arith.constant dense<0xFF800000> : vector<64xf32>
    %264 = vector.multi_reduction <maximumf>, %263, %cst_101 [1] : vector<64x64xf32> to vector<64xf32>
    %265 = vector.shape_cast %264 : vector<64xf32> to vector<64x1xf32>
    %266 = vector.broadcast %265 : vector<64x1xf32> to vector<64x64xf32>
    %267 = arith.subf %263, %266 : vector<64x64xf32>
    %268 = math.exp %267 : vector<64x64xf32>
    %cst_102 = arith.constant dense<0.000000e+00> : vector<64xf32>
    %269 = vector.multi_reduction <add>, %268, %cst_102 [1] : vector<64x64xf32> to vector<64xf32>
    %270 = vector.shape_cast %269 : vector<64xf32> to vector<64x1xf32>
    %271 = tpu.reciprocal %270 {approx = true} : vector<64x1xf32> -> vector<64x1xf32>
    %272 = vector.broadcast %271 : vector<64x1xf32> to vector<64x64xf32>
    %273 = arith.mulf %268, %272 : vector<64x64xf32>
    %cst_103 = arith.constant dense<0.000000e+00> : vector<64x8xf32>
    %274 = tpu.matmul %273, %258, %cst_103 {dimension_numbers = #tpu.dot_dimension_numbers<[1], [0], [0], [1], [0, 0, 1, 1], [], []>} : vector<64x64xf32>, vector<64x8xf32>, vector<64x8xf32> -> vector<64x8xf32>
    %275 = vector.extract_strided_slice %211 {offsets = [0, 24], sizes = [64, 8], strides = [1, 1]} : vector<64x96xf32> to vector<64x8xf32>
    %cst_104 = arith.constant 0.353553385 : f32
    %276 = vector.broadcast %cst_104 : f32 to vector<64x8xf32>
    %277 = arith.mulf %275, %276 : vector<64x8xf32>
    %278 = vector.extract_strided_slice %211 {offsets = [0, 56], sizes = [64, 8], strides = [1, 1]} : vector<64x96xf32> to vector<64x8xf32>
    %279 = vector.extract_strided_slice %211 {offsets = [0, 88], sizes = [64, 8], strides = [1, 1]} : vector<64x96xf32> to vector<64x8xf32>
    %cst_105 = arith.constant dense<0.000000e+00> : vector<64x64xf32>
    %280 = tpu.matmul %277, %278, %cst_105 {dimension_numbers = #tpu.dot_dimension_numbers<[1], [1], [0], [0], [0, 0, 1, 0], [], []>} : vector<64x8xf32>, vector<64x8xf32>, vector<64x64xf32> -> vector<64x64xf32>
    %c1_106 = arith.constant 1 : index
    %c3_107 = arith.constant 3 : index
    %c0_108 = arith.constant 0 : index
    %c0_109 = arith.constant 0 : index
    %281 = vector.load %arg3[%c1_106, %c3_107, %c0_108, %c0_109] : memref<2x4x64x64xbf16, #tpu.memory_space<vmem>>, vector<1x1x64x64xbf16>
    %282 = vector.shape_cast %281 : vector<1x1x64x64xbf16> to vector<64x64xbf16>
    %283 = arith.extf %282 : vector<64x64xbf16> to vector<64x64xf32>
    %284 = arith.addf %280, %283 : vector<64x64xf32>
    %cst_110 = arith.constant dense<0xFF800000> : vector<64xf32>
    %285 = vector.multi_reduction <maximumf>, %284, %cst_110 [1] : vector<64x64xf32> to vector<64xf32>
    %286 = vector.shape_cast %285 : vector<64xf32> to vector<64x1xf32>
    %287 = vector.broadcast %286 : vector<64x1xf32> to vector<64x64xf32>
    %288 = arith.subf %284, %287 : vector<64x64xf32>
    %289 = math.exp %288 : vector<64x64xf32>
    %cst_111 = arith.constant dense<0.000000e+00> : vector<64xf32>
    %290 = vector.multi_reduction <add>, %289, %cst_111 [1] : vector<64x64xf32> to vector<64xf32>
    %291 = vector.shape_cast %290 : vector<64xf32> to vector<64x1xf32>
    %292 = tpu.reciprocal %291 {approx = true} : vector<64x1xf32> -> vector<64x1xf32>
    %293 = vector.broadcast %292 : vector<64x1xf32> to vector<64x64xf32>
    %294 = arith.mulf %289, %293 : vector<64x64xf32>
    %cst_112 = arith.constant dense<0.000000e+00> : vector<64x8xf32>
    %295 = tpu.matmul %294, %279, %cst_112 {dimension_numbers = #tpu.dot_dimension_numbers<[1], [0], [0], [1], [0, 0, 1, 1], [], []>} : vector<64x64xf32>, vector<64x8xf32>, vector<64x8xf32> -> vector<64x8xf32>
    %296 = tpu.concatenate %232, %253, %274, %295 in 1 : vector<64x8xf32>, vector<64x8xf32>, vector<64x8xf32>, vector<64x8xf32> -> vector<64x32xf32>
    %297 = vector.extract_strided_slice %171 {offsets = [0, 96], sizes = [32, 32], strides = [1, 1]} : vector<32x128xf32> to vector<32x32xf32>
    %cst_113 = arith.constant dense<0.000000e+00> : vector<64x32xf32>
    %298 = tpu.matmul %296, %297, %cst_113 {dimension_numbers = #tpu.dot_dimension_numbers<[1], [0], [0], [1], [0, 0, 1, 1], [], []>} : vector<64x32xf32>, vector<32x32xf32>, vector<64x32xf32> -> vector<64x32xf32>
    %299 = vector.broadcast %183 : vector<1x32xf32> to vector<64x32xf32>
    %300 = arith.addf %298, %299 : vector<64x32xf32>
    %301 = arith.addf %169, %300 : vector<64x32xf32>
    %cst_114 = arith.constant dense<0.000000e+00> : vector<64xf32>
    %302 = vector.multi_reduction <add>, %301, %cst_114 [1] : vector<64x32xf32> to vector<64xf32>
    %303 = vector.shape_cast %302 : vector<64xf32> to vector<64x1xf32>
    %cst_115 = arith.constant 3.200000e+01 : f32
    %304 = vector.broadcast %cst_115 : f32 to vector<64x1xf32>
    %305 = arith.divf %303, %304 : vector<64x1xf32>
    %306 = vector.broadcast %305 : vector<64x1xf32> to vector<64x32xf32>
    %307 = arith.subf %301, %306 : vector<64x32xf32>
    %308 = arith.mulf %307, %307 : vector<64x32xf32>
    %cst_116 = arith.constant dense<0.000000e+00> : vector<64xf32>
    %309 = vector.multi_reduction <add>, %308, %cst_116 [1] : vector<64x32xf32> to vector<64xf32>
    %310 = vector.shape_cast %309 : vector<64xf32> to vector<64x1xf32>
    %cst_117 = arith.constant 3.200000e+01 : f32
    %311 = vector.broadcast %cst_117 : f32 to vector<64x1xf32>
    %312 = arith.divf %310, %311 : vector<64x1xf32>
    %313 = vector.broadcast %305 : vector<64x1xf32> to vector<64x32xf32>
    %314 = arith.subf %301, %313 : vector<64x32xf32>
    %cst_118 = arith.constant 9.99999974E-6 : f32
    %315 = vector.broadcast %cst_118 : f32 to vector<64x1xf32>
    %316 = arith.addf %312, %315 : vector<64x1xf32>
    %317 = math.rsqrt %316 : vector<64x1xf32>
    %318 = vector.broadcast %317 : vector<64x1xf32> to vector<64x32xf32>
    %319 = arith.mulf %314, %318 : vector<64x32xf32>
    %320 = vector.broadcast %180 : vector<1x32xf32> to vector<64x32xf32>
    %321 = arith.mulf %319, %320 : vector<64x32xf32>
    %322 = vector.broadcast %181 : vector<1x32xf32> to vector<64x32xf32>
    %323 = arith.addf %321, %322 : vector<64x32xf32>
    %cst_119 = arith.constant dense<0.000000e+00> : vector<64x128xf32>
    %324 = tpu.matmul %323, %173, %cst_119 {dimension_numbers = #tpu.dot_dimension_numbers<[1], [0], [0], [1], [0, 0, 1, 1], [], []>} : vector<64x32xf32>, vector<32x128xf32>, vector<64x128xf32> -> vector<64x128xf32>
    %325 = vector.broadcast %184 : vector<1x128xf32> to vector<64x128xf32>
    %326 = arith.addf %324, %325 : vector<64x128xf32>
    %cst_120 = arith.constant 5.000000e-01 : f32
    %327 = vector.broadcast %cst_120 : f32 to vector<64x128xf32>
    %328 = arith.mulf %327, %326 : vector<64x128xf32>
    %cst_121 = arith.constant 0.707106769 : f32
    %329 = vector.broadcast %cst_121 : f32 to vector<64x128xf32>
    %330 = arith.mulf %326, %329 : vector<64x128xf32>
    %331 = math.erf %330 : vector<64x128xf32>
    %cst_122 = arith.constant 1.000000e+00 : f32
    %332 = vector.broadcast %cst_122 : f32 to vector<64x128xf32>
    %333 = arith.addf %332, %331 : vector<64x128xf32>
    %334 = arith.mulf %328, %333 : vector<64x128xf32>
    %cst_123 = arith.constant dense<0.000000e+00> : vector<64x32xf32>
    %335 = tpu.matmul %334, %175, %cst_123 {dimension_numbers = #tpu.dot_dimension_numbers<[1], [1], [0], [0], [0, 0, 1, 0], [], []>} : vector<64x128xf32>, vector<32x128xf32>, vector<64x32xf32> -> vector<64x32xf32>
    %336 = vector.broadcast %185 : vector<1x32xf32> to vector<64x32xf32>
    %337 = arith.addf %335, %336 : vector<64x32xf32>
    %338 = arith.addf %301, %337 : vector<64x32xf32>
    %c0_124 = arith.constant 0 : index
    %c0_125 = arith.constant 0 : index
    %339 = vector.load %arg4[%c0_124, %c0_125] : memref<64x32xf32, #tpu.memory_space<vmem>>, vector<64x32xf32>
    tpu.vector_store %arg4[%c0_124, %c0_125], %338 {strides = array<i32>} : memref<64x32xf32, #tpu.memory_space<vmem>>, vector<64x32xf32>,
    return
  }
  func.func @transform_0(%arg0: i32) -> (i32, i32) {
    %c0_i32 = arith.constant 0 : i32
    %c0_i32_0 = arith.constant 0 : i32
    return %arg0, %c0_i32 : i32, i32
  }
  func.func @transform_1(%arg0: i32) -> (i32, i32, i32) {
    %c0_i32 = arith.constant 0 : i32
    %c0_i32_0 = arith.constant 0 : i32
    %c0_i32_1 = arith.constant 0 : i32
    %c0_i32_2 = arith.constant 0 : i32
    return %c0_i32, %c0_i32_0, %c0_i32_1 : i32, i32, i32
  }
  func.func @transform_2(%arg0: i32) -> (i32, i32, i32, i32) {
    %c0_i32 = arith.constant 0 : i32
    %c0_i32_0 = arith.constant 0 : i32
    %c0_i32_1 = arith.constant 0 : i32
    %c0_i32_2 = arith.constant 0 : i32
    %c0_i32_3 = arith.constant 0 : i32
    return %c0_i32, %c0_i32_0, %c0_i32_1, %c0_i32_2 : i32, i32, i32, i32
  }
  func.func @transform_3(%arg0: i32) -> (i32, i32) {
    %c0_i32 = arith.constant 0 : i32
    %c0_i32_0 = arith.constant 0 : i32
    return %arg0, %c0_i32 : i32, i32
  }
}

</mosaic_0001>

<llo_original>
// kernel: basic_layer_forward.1
$region0: #{basic_layer_forward.1}
  #allocation0 [shape = 'u32[]', space=smem, size = 0x4, offset = 0x4, fixed_abs, tag = 'smem constant byte address 0x4 - core index']
  #allocation1 [shape = 'u32[144,128]{1,0:T(1,128)}', space=vmem, size = 0x12000, scoped, tag = 'internal scratch']
  %s0 = inlined_call_operand.vmem [shape: f32[128,32], index: 0, kind: input, shape index: {}]
  %s1 = inlined_call_operand.hbm [shape: f32[2,104,128], index: 1, kind: input, shape index: {}]
  %s2 = inlined_call_operand.hbm [shape: bf16[2,4,64,64], index: 2, kind: input, shape index: {}]
  %s3 = inlined_call_operand.vmem [shape: f32[128,32], index: 3, kind: output, shape index: {}]
  %s4 = sld [smem:[#allocation0]]
  $region53: #{basic_layer_forward.1} parent=0
    _
  %s6 = ssub.s32 1, %s4
  %s7 = scalar_select 0, %s6, %s4
  $region1: #{basic_layer_forward.1} parent=0
    #allocation2 [shape = 'u8[106496]{0}', space=vmem, size = 0x1a000, scoped, tag = 'input window, operand 1, single buffered']
    #allocation3 [shape = 's32[2]{0}', space=sflag, size = 0x8, scoped, tag = 'scoped memory for basic_layer_forward.1']
    #allocation4 [shape = 'u8[131072]{0}', space=vmem, size = 0x20000, scoped, tag = 'input window, operand 2, single buffered']
    #allocation5 [shape = 's32[1]{0}', space=sflag, size = 0x4, scoped, tag = 'scoped memory for basic_layer_forward.1']
    %8 = vsyncpa [#allocation3], 0
    %9 = vsyncpa [#allocation5], 0
    loop: start=0, step=1, limit=4
    $region2: #{basic_layer_forward.1} parent=1 // loop_pre_header
      _
    $region3: #{basic_layer_forward.1} parent=1 // loop_header
      %s11 = sphi 0, %s15
      %p12 = scmp.ge.s32.totalorder %s11, 4
      %s21 = sphi 0, %s23
      %s24 = sphi 0, %s21
      %s25 = sphi 0, %s24
      %s41 = sphi 0, %s25
      %s45 = sphi 0, %s45
      %s47 = sphi 0, %s45
      %s48 = sphi 0, %s47
      %s62 = sphi 0, %s48
      %s66 = sphi 0, %s66
      %s68 = sphi 0, %s66
      %s69 = sphi 0, %s68
      %s83 = sphi 0, %s69
      %s89 = sphi 0, %s91
      %s92 = sphi 0, %s89
      %s93 = sphi 0, %s92
      %s109 = sphi 0, %s93
    $region4: #{basic_layer_forward.1} parent=1 // loop_header_branch
      %14 = sbr.rel (%p12) target = $region8
    $region5: #{basic_layer_forward.1} parent=1 // loop_body
      %s16 = ssub.s32 %s11, 1
      %s17 = ssub.s32 %s11, 2
      %s18 = sadd.s32 %s11, 1
      %s19 = ssub.s32 %s11, %s18
      %p20 = scmp.eq.s32.totalorder %s19, 0
      %s22 = sadd.s32 %s21, 1
      %s23 = scalar_select %p20, %s21, %s22
      %p26 = pneg %p20
      %p27 = scmp.eq.s32.totalorder %s11, 1
      %p28 = por %p26, %p27
      %p29 = scmp.ne.s32.totalorder %s21, %s24
      %p30 = scmp.eq.s32.totalorder %s11, 0
      %p31 = por %p29, %p30
      %p32 = scmp.ne.s32.totalorder %s21, %s24
      %p33 = scmp.eq.s32.totalorder %s16, 1
      %p34 = por %p32, %p33
      %p35 = scmp.ne.s32.totalorder %s24, %s25
      %p36 = scmp.eq.s32.totalorder %s16, 0
      %p37 = por %p35, %p36
      %p38 = scmp.ne.s32.totalorder %s24, %s25
      %p39 = scmp.eq.s32.totalorder %s17, 1
      %p40 = por %p38, %p39
      %p42 = scmp.ne.s32.totalorder %s25, %s41
      %p43 = scmp.eq.s32.totalorder %s17, 0
      %p44 = por %p42, %p43
      %s46 = sadd.s32 %s45, 1
      %p49 = scmp.eq.s32.totalorder %s11, 1
      %p50 = scmp.ne.s32.totalorder %s45, %s47
      %p51 = scmp.eq.s32.totalorder %s11, 0
      %p52 = por %p50, %p51
      %p53 = scmp.ne.s32.totalorder %s45, %s47
      %p54 = scmp.eq.s32.totalorder %s16, 1
      %p55 = por %p53, %p54
      %p56 = scmp.ne.s32.totalorder %s47, %s48
      %p57 = scmp.eq.s32.totalorder %s16, 0
      %p58 = por %p56, %p57
      %p59 = scmp.ne.s32.totalorder %s47, %s48
      %p60 = scmp.eq.s32.totalorder %s17, 1
      %p61 = por %p59, %p60
      %p63 = scmp.ne.s32.totalorder %s48, %s62
      %p64 = scmp.eq.s32.totalorder %s17, 0
      %p65 = por %p63, %p64
      %s67 = sadd.s32 %s66, 1
      %p70 = scmp.eq.s32.totalorder %s11, 1
      %p71 = scmp.ne.s32.totalorder %s66, %s68
      %p72 = scmp.eq.s32.totalorder %s11, 0
      %p73 = por %p71, %p72
      %p74 = scmp.ne.s32.totalorder %s66, %s68
      %p75 = scmp.eq.s32.totalorder %s16, 1
      %p76 = por %p74, %p75
      %p77 = scmp.ne.s32.totalorder %s68, %s69
      %p78 = scmp.eq.s32.totalorder %s16, 0
      %p79 = por %p77, %p78
      %p80 = scmp.ne.s32.totalorder %s68, %s69
      %p81 = scmp.eq.s32.totalorder %s17, 1
      %p82 = por %p80, %p81
      %p84 = scmp.ne.s32.totalorder %s69, %s83
      %p85 = scmp.eq.s32.totalorder %s17, 0
      %p86 = por %p84, %p85
      %s87 = ssub.s32 %s11, %s18
      %p88 = scmp.eq.s32.totalorder %s87, 0
      %s90 = sadd.s32 %s89, 1
      %s91 = scalar_select %p88, %s89, %s90
      %p94 = pneg %p88
      %p95 = scmp.eq.s32.totalorder %s11, 1
      %p96 = por %p94, %p95
      %p97 = scmp.ne.s32.totalorder %s89, %s92
      %p98 = scmp.eq.s32.totalorder %s11, 0
      %p99 = por %p97, %p98
      %p100 = scmp.ne.s32.totalorder %s89, %s92
      %p101 = scmp.eq.s32.totalorder %s16, 1
      %p102 = por %p100, %p101
      %p103 = scmp.ne.s32.totalorder %s92, %s93
      %p104 = scmp.eq.s32.totalorder %s16, 0
      %p105 = por %p103, %p104
      %p106 = scmp.ne.s32.totalorder %s92, %s93
      %p107 = scmp.eq.s32.totalorder %s17, 1
      %p108 = por %p106, %p107
      %p110 = scmp.ne.s32.totalorder %s93, %s109
      %p111 = scmp.eq.s32.totalorder %s17, 0
      %p112 = por %p110, %p111
      %p113 = scmp.le.s32.totalorder 1, %s11
      %p114 = scmp.lt.s32.totalorder %s11, 3
      %p115 = pnand %p113, %p114
      %p116 = pneg %p115
      // Predicated region
      $region9: #{basic_layer_forward.1} parent=5 // pred_check
        _
      $region10: #{basic_layer_forward.1} parent=5 // pred_check_branch
        %118 = sbr.rel (%p115) target = $region12
      $region11: #{basic_layer_forward.1} parent=5 // pred_region
        %s119 = ssub.s32 %s11, 1
        // Predicated region
        $region13: #{basic_layer_forward.1} parent=11 // pred_check
          %p120 = pneg %p58
        $region14: #{basic_layer_forward.1} parent=11 // pred_check_branch
          %122 = sbr.rel (%p120) target = $region16
        $region15: #{basic_layer_forward.1} parent=11 // pred_region
          %s124 = ssub.s32 3328, 3328
          %125 = vsyncadd [#allocation3], %s124
          %s126 = sshll.u32 [#allocation2], 4
          %s127 = int_to_ptr.vmem [resolvable:$true] %s126
          %132 = dma.hbm_to_vmem [thread:$0]  %s1, 3328, %s127, [#allocation3], 128, 128, 8
        $region16: #{basic_layer_forward.1} parent=11 // pred_fallthru
          _
        // Predicated region
        $region17: #{basic_layer_forward.1} parent=11 // pred_check
          %p133 = pneg %p79
        $region18: #{basic_layer_forward.1} parent=11 // pred_check_branch
          %135 = sbr.rel (%p133) target = $region20
        $region19: #{basic_layer_forward.1} parent=11 // pred_region
          %s137 = ssub.s32 4096, 4096
          %138 = vsyncadd [#allocation5], %s137
          %s139 = sshll.u32 [#allocation4], 4
          %s140 = int_to_ptr.vmem [resolvable:$true] %s139
          %145 = dma.hbm_to_vmem [thread:$0]  %s2, 4096, %s140, [#allocation5], 64, 64, 4
        $region20: #{basic_layer_forward.1} parent=11 // pred_fallthru
          _
      $region12: #{basic_layer_forward.1} parent=5 // pred_fallthru
        _
      %p146 = scmp.lt.s32.totalorder %s11, 2
      // Predicated region
      $region21: #{basic_layer_forward.1} parent=5 // pred_check
        %p147 = pneg %p146
      $region22: #{basic_layer_forward.1} parent=5 // pred_check_branch
        %149 = sbr.rel (%p147) target = $region24
      $region23: #{basic_layer_forward.1} parent=5 // pred_region
        // Predicated region
        $region25: #{basic_layer_forward.1} parent=23 // pred_check
          %p150 = pneg %p31
        $region26: #{basic_layer_forward.1} parent=23 // pred_check_branch
          %152 = sbr.rel (%p150) target = $region28
        $region27: #{basic_layer_forward.1} parent=23 // pred_region
          %s153 = smul.u32 8, %s11
          %p154 = scmp.lt.s32.totalorder %s153, 15
          %s155 = scalar_select %p154, %s153, 15
          %s156 = smul.addr %s155, 8
          %s157 = scalar_lea.vmem %s0, %s156
          %s158 = smul.u32 8, %s11
        $region28: #{basic_layer_forward.1} parent=23 // pred_fallthru
          _
      $region24: #{basic_layer_forward.1} parent=5 // pred_fallthru
        _
      %p159 = scmp.le.s32.totalorder 1, %s11
      %p160 = scmp.lt.s32.totalorder %s11, 3
      %p161 = pnand %p159, %p160
      %p162 = pneg %p161
      // Predicated region
      $region29: #{basic_layer_forward.1} parent=5 // pred_check
        _
      $region30: #{basic_layer_forward.1} parent=5 // pred_check_branch
        %164 = sbr.rel (%p161) target = $region32
      $region31: #{basic_layer_forward.1} parent=5 // pred_region
        %s165 = ssub.s32 %s11, 1
        // Predicated region
        $region33: #{basic_layer_forward.1} parent=31 // pred_check
          %p166 = pneg %p58
        $region34: #{basic_layer_forward.1} parent=31 // pred_check_branch
          %168 = sbr.rel (%p166) target = $region36
        $region35: #{basic_layer_forward.1} parent=31 // pred_region
          %169 = dma.done [#allocation3], 3328
        $region36: #{basic_layer_forward.1} parent=31 // pred_fallthru
          _
        // Predicated region
        $region37: #{basic_layer_forward.1} parent=31 // pred_check
          %p170 = pneg %p79
        $region38: #{basic_layer_forward.1} parent=31 // pred_check_branch
          %172 = sbr.rel (%p170) target = $region40
        $region39: #{basic_layer_forward.1} parent=31 // pred_region
          %173 = dma.done [#allocation5], 4096
        $region40: #{basic_layer_forward.1} parent=31 // pred_fallthru
          _
        %s174 = smul.u32 8, %s16
        %p175 = scmp.lt.s32.totalorder %s174, 15
        %s176 = scalar_select %p175, %s174, 15
        %s177 = smul.addr %s176, 8
        %s178 = scalar_lea.vmem %s0, %s177
        %p179 = pneg %p37
        %p180 = pneg %p34
        %p181 = pneg %p58
        %p182 = pneg %p55
        %p183 = pneg %p79
        %p184 = pneg %p76
        %p185 = pneg %p105
        %p186 = pneg %p102
        %s187 = smul.u32 8, %s16
        %p188 = scmp.lt.s32.totalorder %s187, 15
        %s189 = scalar_select %p188, %s187, 15
        %s190 = smul.addr %s189, 8
        %s191 = scalar_lea.vmem %s3, %s190
        %s192 = smul.u32 8, %s16
        %p193 = scmp.lt.s32.totalorder %s192, 15
        %s194 = scalar_select %p193, %s192, 15
        %s195 = smul.addr %s194, 8
        %s196 = scalar_lea.vmem %s0, %s195
        %s197 = smul.u32 8, %s16
        %s198 = smul.u32 8, %s16
        %p199 = scmp.lt.s32.totalorder %s198, 15
        %s200 = scalar_select %p199, %s198, 15
        %s201 = smul.addr %s200, 8
        %s202 = scalar_lea.vmem %s3, %s201
        %s203 = smul.u32 8, %s16
        %v204 = vld [vmem:[%s196] sm:$0xff]
        %v205 = vld [vmem:[%s196 + $0x8] sm:$0xff]
        %v206 = vld [vmem:[%s196 + $0x10] sm:$0xff]
        %v207 = vld [vmem:[%s196 + $0x18] sm:$0xff]
        %v208 = vld [vmem:[%s196 + $0x20] sm:$0xff]
        %v209 = vld [vmem:[%s196 + $0x28] sm:$0xff]
        %v210 = vld [vmem:[%s196 + $0x30] sm:$0xff]
        %v211 = vld [vmem:[%s196 + $0x38] sm:$0xff]
        %v212 = vld [vmem:[#allocation2] sm:$0xff]
        %v213 = vld [vmem:[#allocation2 + $0x8] sm:$0xff]
        %v214 = vld [vmem:[#allocation2 + $0x10] sm:$0xff]
        %v215 = vld [vmem:[#allocation2 + $0x18] sm:$0xff]
        %v216 = vld [vmem:[#allocation2 + $0x20] sm:$0xff]
        %v217 = vld [vmem:[#allocation2 + $0x28] sm:$0xff]
        %v218 = vld [vmem:[#allocation2 + $0x30] sm:$0xff]
        %v219 = vld [vmem:[#allocation2 + $0x38] sm:$0xff]
        %v220 = vld [vmem:[#allocation2 + $0x40] sm:$0xff]
        %v221 = vld [vmem:[#allocation2 + $0x48] sm:$0xff]
        %v222 = vld [vmem:[#allocation2 + $0x50] sm:$0xff]
        %v223 = vld [vmem:[#allocation2 + $0x58] sm:$0xff]
        %v224 = vld [vmem:[#allocation2 + $0x60] sm:$0xff]
        %vm225 = vcmask 261120
        %v226 = vsel %vm225, %v204, 0.0
        %227 = vadd.xlane.f32.xlu0 %v226
        %v228 = vpop.xlane.xlu0 %227
        %v229 = vsel %vm225, %v205, 0.0
        %230 = vadd.xlane.f32.xlu0 %v229
        %v231 = vpop.xlane.xlu0 %230
        %v232 = vsel %vm225, %v206, 0.0
        %233 = vadd.xlane.f32.xlu0 %v232
        %v234 = vpop.xlane.xlu0 %233
        %v235 = vsel %vm225, %v207, 0.0
        %236 = vadd.xlane.f32.xlu0 %v235
        %v237 = vpop.xlane.xlu0 %236
        %v238 = vsel %vm225, %v208, 0.0
        %239 = vadd.xlane.f32.xlu0 %v238
        %v240 = vpop.xlane.xlu0 %239
        %v241 = vsel %vm225, %v209, 0.0
        %242 = vadd.xlane.f32.xlu0 %v241
        %v243 = vpop.xlane.xlu0 %242
        %v244 = vsel %vm225, %v210, 0.0
        %245 = vadd.xlane.f32.xlu0 %v244
        %v246 = vpop.xlane.xlu0 %245
        %v247 = vsel %vm225, %v211, 0.0
        %248 = vadd.xlane.f32.xlu0 %v247
        %v249 = vpop.xlane.xlu0 %248
        %v250 = vrcp.pop 32.0
        %v251 = vmul.f32 %v228, %v250
        %v252 = vmul.f32 %v231, %v250
        %v253 = vmul.f32 %v234, %v250
        %v254 = vmul.f32 %v237, %v250
        %v255 = vmul.f32 %v240, %v250
        %v256 = vmul.f32 %v243, %v250
        %v257 = vmul.f32 %v246, %v250
        %v258 = vmul.f32 %v249, %v250
        %v259 = vsub.f32 %v204, %v251
        %v260 = vsub.f32 %v205, %v252
        %v261 = vsub.f32 %v206, %v253
        %v262 = vsub.f32 %v207, %v254
        %v263 = vsub.f32 %v208, %v255
        %v264 = vsub.f32 %v209, %v256
        %v265 = vsub.f32 %v210, %v257
        %v266 = vsub.f32 %v211, %v258
        %v267 = vmul.f32 %v259, %v259
        %v268 = vmul.f32 %v260, %v260
        %v269 = vmul.f32 %v261, %v261
        %v270 = vmul.f32 %v262, %v262
        %v271 = vmul.f32 %v263, %v263
        %v272 = vmul.f32 %v264, %v264
        %v273 = vmul.f32 %v265, %v265
        %v274 = vmul.f32 %v266, %v266
        %v275 = vsel %vm225, %v267, 0.0
        %276 = vadd.xlane.f32.xlu0 %v275
        %v277 = vpop.xlane.xlu0 %276
        %v278 = vsel %vm225, %v268, 0.0
        %279 = vadd.xlane.f32.xlu0 %v278
        %v280 = vpop.xlane.xlu0 %279
        %v281 = vsel %vm225, %v269, 0.0
        %282 = vadd.xlane.f32.xlu0 %v281
        %v283 = vpop.xlane.xlu0 %282
        %v284 = vsel %vm225, %v270, 0.0
        %285 = vadd.xlane.f32.xlu0 %v284
        %v286 = vpop.xlane.xlu0 %285
        %v287 = vsel %vm225, %v271, 0.0
        %288 = vadd.xlane.f32.xlu0 %v287
        %v289 = vpop.xlane.xlu0 %288
        %v290 = vsel %vm225, %v272, 0.0
        %291 = vadd.xlane.f32.xlu0 %v290
        %v292 = vpop.xlane.xlu0 %291
        %v293 = vsel %vm225, %v273, 0.0
        %294 = vadd.xlane.f32.xlu0 %v293
        %v295 = vpop.xlane.xlu0 %294
        %v296 = vsel %vm225, %v274, 0.0
        %297 = vadd.xlane.f32.xlu0 %v296
        %v298 = vpop.xlane.xlu0 %297
        %v299 = vmul.f32 %v277, %v250
        %v300 = vmul.f32 %v280, %v250
        %v301 = vmul.f32 %v283, %v250
        %v302 = vmul.f32 %v286, %v250
        %v303 = vmul.f32 %v289, %v250
        %v304 = vmul.f32 %v292, %v250
        %v305 = vmul.f32 %v295, %v250
        %v306 = vmul.f32 %v298, %v250
        %v307 = vadd.f32 %v299, 1e-05
        %v308 = vadd.f32 %v300, 1e-05
        %v309 = vadd.f32 %v301, 1e-05
        %v310 = vadd.f32 %v302, 1e-05
        %v311 = vadd.f32 %v303, 1e-05
        %v312 = vadd.f32 %v304, 1e-05
        %v313 = vadd.f32 %v305, 1e-05
        %v314 = vadd.f32 %v306, 1e-05
        %v315 = vrsqrt.pop %v307
        %v316 = vrsqrt.pop %v308
        %v317 = vrsqrt.pop %v309
        %v318 = vrsqrt.pop %v310
        %v319 = vrsqrt.pop %v311
        %v320 = vrsqrt.pop %v312
        %v321 = vrsqrt.pop %v313
        %v322 = vrsqrt.pop %v314
        %v323 = vmul.f32 %v259, %v315
        %v324 = vmul.f32 %v260, %v316
        %v325 = vmul.f32 %v261, %v317
        %v326 = vmul.f32 %v262, %v318
        %v327 = vmul.f32 %v263, %v319
        %v328 = vmul.f32 %v264, %v320
        %v329 = vmul.f32 %v265, %v321
        %v330 = vmul.f32 %v266, %v322
        %v331 = vlaneseq
        %v332 = vshrl.u32 %v331, 7
        %v333 = vsub.s32 0, %v332
        %v334 = vrot.slane %v224, %v333
        %v335 = vmul.f32 %v323, %v334
        %v336 = vmul.f32 %v324, %v334
        %v337 = vmul.f32 %v325, %v334
        %v338 = vmul.f32 %v326, %v334
        %v339 = vmul.f32 %v327, %v334
        %v340 = vmul.f32 %v328, %v334
        %v341 = vmul.f32 %v329, %v334
        %v342 = vmul.f32 %v330, %v334
        %344 = vrot.lane.b32.xlu0 %v334, 96
        %v345 = vpop.permute.xlu0 %344
        %v347 = vadd.f32 %v335, %v345
        %v348 = vadd.f32 %v336, %v345
        %v349 = vadd.f32 %v337, %v345
        %v350 = vadd.f32 %v338, %v345
        %v351 = vadd.f32 %v339, %v345
        %v352 = vadd.f32 %v340, %v345
        %v353 = vadd.f32 %v341, %v345
        %v354 = vadd.f32 %v342, %v345
        %v356 = vsel %vm225, %v347, 0
        %v359 = vsel %vm225, %v348, 0
        %v362 = vsel %vm225, %v349, 0
        %v365 = vsel %vm225, %v350, 0
        %v368 = vsel %vm225, %v351, 0
        %v371 = vsel %vm225, %v352, 0
        %v374 = vsel %vm225, %v353, 0
        %v377 = vsel %vm225, %v354, 0
        %379 = vmatprep.subr.mxu0 0.0
        %380 = vmatpush1.msra.mxu0 %v212
        %381 = vmatprep.subr.mxu0 0.0
        %382 = vmatpush1.msra.mxu0 %v213
        %383 = vmatprep.subr.mxu0 0.0
        %384 = vmatpush1.msra.mxu0 %v214
        %385 = vmatprep.subr.mxu0 0.0
        %386 = vmatpush1.msra.mxu0 %v215
        %387 = vmatprep.subr.mxu0 0.0
        %388 = vmatpush1.msra.mxu0 0.0
        %389 = vmatprep.subr.mxu0 0.0
        %390 = vmatpush1.msra.mxu0 0.0
        %391 = vmatprep.subr.mxu0 0.0
        %392 = vmatpush1.msra.mxu0 0.0
        %393 = vmatprep.subr.mxu0 0.0
        %394 = vmatpush1.msra.mxu0 0.0
        %395 = vmatprep.subr.mxu0 0.0
        %396 = vmatpush1.msra.mxu0 0.0
        %397 = vmatprep.subr.mxu0 0.0
        %398 = vmatpush1.msra.mxu0 0.0
        %399 = vmatprep.subr.mxu0 0.0
        %400 = vmatpush1.msra.mxu0 0.0
        %401 = vmatprep.subr.mxu0 0.0
        %402 = vmatpush1.msra.mxu0 0.0
        %403 = vmatprep.subr.mxu0 0.0
        %404 = vmatpush1.msra.mxu0 0.0
        %405 = vmatprep.subr.mxu0 0.0
        %406 = vmatpush1.msra.mxu0 0.0
        %407 = vmatprep.subr.mxu0 0.0
        %408 = vmatpush1.msra.mxu0 0.0
        %409 = vmatprep.subr.mxu0 0.0
        %410 = vmatpush1.msra.mxu0 0.0
        %411 = vmatprep.subr.mxu0 0.0
        %412 = vmatpush1.msra.mxu0 0.0
        %413 = vmatprep.subr.mxu0 0.0
        %414 = vmatpush1.msra.mxu0 0.0
        %415 = vmatprep.subr.mxu0 0.0
        %416 = vmatpush1.msra.mxu0 0.0
        %417 = vmatprep.subr.mxu0 0.0
        %418 = vmatpush1.msra.mxu0 0.0
        %419 = vmatprep.subr.mxu0 0.0
        %420 = vmatpush1.msra.mxu0 0.0
        %421 = vmatprep.subr.mxu0 0.0
        %422 = vmatpush1.msra.mxu0 0.0
        %423 = vmatprep.subr.mxu0 0.0
        %424 = vmatpush1.msra.mxu0 0.0
        %425 = vmatprep.subr.mxu0 0.0
        %426 = vmatpush1.msra.mxu0 0.0
        %427 = vmatprep.subr.mxu0 0.0
        %428 = vmatpush1.msra.mxu0 0.0
        %429 = vmatprep.subr.mxu0 0.0
        %430 = vmatpush1.msra.mxu0 0.0
        %431 = vmatprep.subr.mxu0 0.0
        %432 = vmatpush1.msra.mxu0 0.0
        %433 = vmatprep.subr.mxu0 0.0
        %434 = vmatpush1.msra.mxu0 0.0
        %435 = vmatprep.subr.mxu0 0.0
        %436 = vmatpush1.msra.mxu0 0.0
        %437 = vmatprep.subr.mxu0 0.0
        %438 = vmatpush1.msra.mxu0 0.0
        %439 = vmatprep.subr.mxu0 0.0
        %440 = vmatpush1.msra.mxu0 0.0
        %441 = vmatprep.subr.mxu0 0.0
        %442 = vmatpush1.msra.mxu0 0.0
        %443 = vmatprep.mubr.f32.mxu0 0.0
        %444 = vmatmul.mubr.f32.gmra.mrb[0].mxu0 %v356
        %v445 = vpop.f32.mrb[0].mxu0
        %v446 = vadd.f32 0.0, %v445
        %v447 = vpop.f32.mrb[0].mxu0
        %448 = vmatprep.mubr.f32.mxu0 0.0
        %449 = vmatmul.mubr.f32.gmra.mrb[0].mxu0 %v359
        %v450 = vpop.f32.mrb[0].mxu0
        %v451 = vadd.f32 0.0, %v450
        %v452 = vpop.f32.mrb[0].mxu0
        %453 = vmatprep.mubr.f32.mxu0 0.0
        %454 = vmatmul.mubr.f32.gmra.mrb[0].mxu0 %v362
        %v455 = vpop.f32.mrb[0].mxu0
        %v456 = vadd.f32 0.0, %v455
        %v457 = vpop.f32.mrb[0].mxu0
        %458 = vmatprep.mubr.f32.mxu0 0.0
        %459 = vmatmul.mubr.f32.gmra.mrb[0].mxu0 %v365
        %v460 = vpop.f32.mrb[0].mxu0
        %v461 = vadd.f32 0.0, %v460
        %v462 = vpop.f32.mrb[0].mxu0
        %463 = vmatprep.mubr.f32.mxu0 0.0
        %464 = vmatmul.mubr.f32.gmra.mrb[0].mxu0 %v368
        %v465 = vpop.f32.mrb[0].mxu0
        %v466 = vadd.f32 0.0, %v465
        %v467 = vpop.f32.mrb[0].mxu0
        %468 = vmatprep.mubr.f32.mxu0 0.0
        %469 = vmatmul.mubr.f32.gmra.mrb[0].mxu0 %v371
        %v470 = vpop.f32.mrb[0].mxu0
        %v471 = vadd.f32 0.0, %v470
        %v472 = vpop.f32.mrb[0].mxu0
        %473 = vmatprep.mubr.f32.mxu0 0.0
        %474 = vmatmul.mubr.f32.gmra.mrb[0].mxu0 %v374
        %v475 = vpop.f32.mrb[0].mxu0
        %v476 = vadd.f32 0.0, %v475
        %v477 = vpop.f32.mrb[0].mxu0
        %478 = vmatprep.mubr.f32.mxu0 0.0
        %479 = vmatmul.mubr.f32.gmra.mrb[0].mxu0 %v377
        %v480 = vpop.f32.mrb[0].mxu0
        %v481 = vadd.f32 0.0, %v480
        %v482 = vpop.f32.mrb[0].mxu0
        %483 = vdwg.mxu0
        %v484 = vlaneseq
        %v485 = vshrl.u32 %v484, 7
        %v486 = vsub.s32 1, %v485
        %v487 = vrot.slane %v224, %v486
        %v488 = vadd.f32 %v446, %v487
        %v489 = vadd.f32 %v451, %v487
        %v490 = vadd.f32 %v456, %v487
        %v491 = vadd.f32 %v461, %v487
        %v492 = vadd.f32 %v466, %v487
        %v493 = vadd.f32 %v471, %v487
        %v494 = vadd.f32 %v476, %v487
        %v495 = vadd.f32 %v481, %v487
        %v496 = vmul.f32 %v488, 0.35355338
        %v497 = vmul.f32 %v489, 0.35355338
        %v498 = vmul.f32 %v490, 0.35355338
        %v499 = vmul.f32 %v491, 0.35355338
        %v500 = vmul.f32 %v492, 0.35355338
        %v501 = vmul.f32 %v493, 0.35355338
        %v502 = vmul.f32 %v494, 0.35355338
        %v503 = vmul.f32 %v495, 0.35355338
        %v504 = vld [vmem:[#allocation4] sm:$0xf]
        %v505 = vld [vmem:[#allocation4 + $0x4] sm:$0xf]
        %v506 = vld [vmem:[#allocation4 + $0x8] sm:$0xf]
        %v507 = vld [vmem:[#allocation4 + $0xc] sm:$0xf]
        %v508 = vld [vmem:[#allocation4 + $0x10] sm:$0xf]
        %v509 = vld [vmem:[#allocation4 + $0x14] sm:$0xf]
        %v510 = vld [vmem:[#allocation4 + $0x18] sm:$0xf]
        %v511 = vld [vmem:[#allocation4 + $0x1c] sm:$0xf]
        %v512 = vunpack.c.l.bf16 %v504
        %v513 = vunpack.c.l.bf16 %v505
        %v514 = vunpack.c.l.bf16 %v506
        %v515 = vunpack.c.l.bf16 %v507
        %v516 = vunpack.c.l.bf16 %v508
        %v517 = vunpack.c.l.bf16 %v509
        %v518 = vunpack.c.l.bf16 %v510
        %v519 = vunpack.c.l.bf16 %v511
        %528 = vrot.lane.b32.xlu0 %v488, 96
        %v529 = vpop.permute.xlu0 %528
        %530 = vrot.lane.b32.xlu0 %v489, 96
        %v531 = vpop.permute.xlu0 %530
        %532 = vrot.lane.b32.xlu0 %v490, 96
        %v533 = vpop.permute.xlu0 %532
        %534 = vrot.lane.b32.xlu0 %v491, 96
        %v535 = vpop.permute.xlu0 %534
        %536 = vrot.lane.b32.xlu0 %v492, 96
        %v537 = vpop.permute.xlu0 %536
        %538 = vrot.lane.b32.xlu0 %v493, 96
        %v539 = vpop.permute.xlu0 %538
        %540 = vrot.lane.b32.xlu0 %v494, 96
        %v541 = vpop.permute.xlu0 %540
        %542 = vrot.lane.b32.xlu0 %v495, 96
        %v543 = vpop.permute.xlu0 %542
        %vm544 = vcmask 64512
        %v546 = vsel %vm544, %v496, 0
        %v549 = vsel %vm544, %v497, 0
        %v552 = vsel %vm544, %v498, 0
        %v555 = vsel %vm544, %v499, 0
        %v558 = vsel %vm544, %v500, 0
        %v561 = vsel %vm544, %v501, 0
        %v564 = vsel %vm544, %v502, 0
        %v567 = vsel %vm544, %v503, 0
        %v569 = vsel %vm544, %v529, 0
        %v571 = vsel %vm544, %v531, 0
        %v573 = vsel %vm544, %v533, 0
        %v575 = vsel %vm544, %v535, 0
        %v577 = vsel %vm544, %v537, 0
        %v579 = vsel %vm544, %v539, 0
        %v581 = vsel %vm544, %v541, 0
        %v583 = vsel %vm544, %v543, 0
        %585 = vmatprep.subr.mxu0 0.0
        %586 = vmatpush1.xpose.msra.mxu0 %v569
        %587 = vmatprep.subr.mxu0 0.0
        %588 = vmatpush1.xpose.msra.mxu0 %v571
        %589 = vmatprep.subr.mxu0 0.0
        %590 = vmatpush1.xpose.msra.mxu0 %v573
        %591 = vmatprep.subr.mxu0 0.0
        %592 = vmatpush1.xpose.msra.mxu0 %v575
        %593 = vmatprep.subr.mxu0 0.0
        %594 = vmatpush1.xpose.msra.mxu0 %v577
        %595 = vmatprep.subr.mxu0 0.0
        %596 = vmatpush1.xpose.msra.mxu0 %v579
        %597 = vmatprep.subr.mxu0 0.0
        %598 = vmatpush1.xpose.msra.mxu0 %v581
        %599 = vmatprep.subr.mxu0 0.0
        %600 = vmatpush1.xpose.msra.mxu0 %v583
        %601 = vmatprep.subr.mxu0 0.0
        %602 = vmatpush1.xpose.msra.mxu0 0.0
        %603 = vmatprep.subr.mxu0 0.0
        %604 = vmatpush1.xpose.msra.mxu0 0.0
        %605 = vmatprep.subr.mxu0 0.0
        %606 = vmatpush1.xpose.msra.mxu0 0.0
        %607 = vmatprep.subr.mxu0 0.0
        %608 = vmatpush1.xpose.msra.mxu0 0.0
        %609 = vmatprep.subr.mxu0 0.0
        %610 = vmatpush1.xpose.msra.mxu0 0.0
        %611 = vmatprep.subr.mxu0 0.0
        %612 = vmatpush1.xpose.msra.mxu0 0.0
        %613 = vmatprep.subr.mxu0 0.0
        %614 = vmatpush1.xpose.msra.mxu0 0.0
        %615 = vmatprep.subr.mxu0 0.0
        %616 = vmatpush1.xpose.msra.mxu0 0.0
        %617 = vmatprep.subr.mxu0 0.0
        %618 = vmatpush1.xpose.msra.mxu0 0.0
        %619 = vmatprep.subr.mxu0 0.0
        %620 = vmatpush1.xpose.msra.mxu0 0.0
        %621 = vmatprep.subr.mxu0 0.0
        %622 = vmatpush1.xpose.msra.mxu0 0.0
        %623 = vmatprep.subr.mxu0 0.0
        %624 = vmatpush1.xpose.msra.mxu0 0.0
        %625 = vmatprep.subr.mxu0 0.0
        %626 = vmatpush1.xpose.msra.mxu0 0.0
        %627 = vmatprep.subr.mxu0 0.0
        %628 = vmatpush1.xpose.msra.mxu0 0.0
        %629 = vmatprep.subr.mxu0 0.0
        %630 = vmatpush1.xpose.msra.mxu0 0.0
        %631 = vmatprep.subr.mxu0 0.0
        %632 = vmatpush1.xpose.msra.mxu0 0.0
        %633 = vmatprep.subr.mxu0 0.0
        %634 = vmatpush1.xpose.msra.mxu0 0.0
        %635 = vmatprep.subr.mxu0 0.0
        %636 = vmatpush1.xpose.msra.mxu0 0.0
        %637 = vmatprep.subr.mxu0 0.0
        %638 = vmatpush1.xpose.msra.mxu0 0.0
        %639 = vmatprep.subr.mxu0 0.0
        %640 = vmatpush1.xpose.msra.mxu0 0.0
        %641 = vmatprep.subr.mxu0 0.0
        %642 = vmatpush1.xpose.msra.mxu0 0.0
        %643 = vmatprep.subr.mxu0 0.0
        %644 = vmatpush1.xpose.msra.mxu0 0.0
        %645 = vmatprep.subr.mxu0 0.0
        %646 = vmatpush1.xpose.msra.mxu0 0.0
        %647 = vmatprep.subr.mxu0 0.0
        %648 = vmatpush1.xpose.msra.mxu0 0.0
        %649 = vmatprep.mubr.f32.mxu0 0.0
        %650 = vmatmul.mubr.f32.gmra.mrb[0].mxu0 %v546
        %v651 = vpop.f32.mrb[0].mxu0
        %v652 = vadd.f32 %v512, %v651
        %v653 = vpop.f32.mrb[0].mxu0
        %654 = vmatprep.mubr.f32.mxu0 0.0
        %655 = vmatmul.mubr.f32.gmra.mrb[0].mxu0 %v549
        %v656 = vpop.f32.mrb[0].mxu0
        %v657 = vadd.f32 %v513, %v656
        %v658 = vpop.f32.mrb[0].mxu0
        %659 = vmatprep.mubr.f32.mxu0 0.0
        %660 = vmatmul.mubr.f32.gmra.mrb[0].mxu0 %v552
        %v661 = vpop.f32.mrb[0].mxu0
        %v662 = vadd.f32 %v514, %v661
        %v663 = vpop.f32.mrb[0].mxu0
        %664 = vmatprep.mubr.f32.mxu0 0.0
        %665 = vmatmul.mubr.f32.gmra.mrb[0].mxu0 %v555
        %v666 = vpop.f32.mrb[0].mxu0
        %v667 = vadd.f32 %v515, %v666
        %v668 = vpop.f32.mrb[0].mxu0
        %669 = vmatprep.mubr.f32.mxu0 0.0
        %670 = vmatmul.mubr.f32.gmra.mrb[0].mxu0 %v558
        %v671 = vpop.f32.mrb[0].mxu0
        %v672 = vadd.f32 %v516, %v671
        %v673 = vpop.f32.mrb[0].mxu0
        %674 = vmatprep.mubr.f32.mxu0 0.0
        %675 = vmatmul.mubr.f32.gmra.mrb[0].mxu0 %v561
        %v676 = vpop.f32.mrb[0].mxu0
        %v677 = vadd.f32 %v517, %v676
        %v678 = vpop.f32.mrb[0].mxu0
        %679 = vmatprep.mubr.f32.mxu0 0.0
        %680 = vmatmul.mubr.f32.gmra.mrb[0].mxu0 %v564
        %v681 = vpop.f32.mrb[0].mxu0
        %v682 = vadd.f32 %v518, %v681
        %v683 = vpop.f32.mrb[0].mxu0
        %684 = vmatprep.mubr.f32.mxu0 0.0
        %685 = vmatmul.mubr.f32.gmra.mrb[0].mxu0 %v567
        %v686 = vpop.f32.mrb[0].mxu0
        %v687 = vadd.f32 %v519, %v686
        %v688 = vpop.f32.mrb[0].mxu0
        %689 = vdwg.mxu0
        %vm690 = vcmask 523264
        %v691 = vsel %vm690, %v652, -inf
        %692 = vmax.xlane.f32.xlu0 %v691
        %v693 = vpop.xlane.xlu0 %692
        %v694 = vsel %vm690, %v657, -inf
        %695 = vmax.xlane.f32.xlu0 %v694
        %v696 = vpop.xlane.xlu0 %695
        %v697 = vsel %vm690, %v662, -inf
        %698 = vmax.xlane.f32.xlu0 %v697
        %v699 = vpop.xlane.xlu0 %698
        %v700 = vsel %vm690, %v667, -inf
        %701 = vmax.xlane.f32.xlu0 %v700
        %v702 = vpop.xlane.xlu0 %701
        %v703 = vsel %vm690, %v672, -inf
        %704 = vmax.xlane.f32.xlu0 %v703
        %v705 = vpop.xlane.xlu0 %704
        %v706 = vsel %vm690, %v677, -inf
        %707 = vmax.xlane.f32.xlu0 %v706
        %v708 = vpop.xlane.xlu0 %707
        %v709 = vsel %vm690, %v682, -inf
        %710 = vmax.xlane.f32.xlu0 %v709
        %v711 = vpop.xlane.xlu0 %710
        %v712 = vsel %vm690, %v687, -inf
        %713 = vmax.xlane.f32.xlu0 %v712
        %v714 = vpop.xlane.xlu0 %713
        %v715 = vsub.f32 %v652, %v693
        %v716 = vsub.f32 %v657, %v696
        %v717 = vsub.f32 %v662, %v699
        %v718 = vsub.f32 %v667, %v702
        %v719 = vsub.f32 %v672, %v705
        %v720 = vsub.f32 %v677, %v708
        %v721 = vsub.f32 %v682, %v711
        %v722 = vsub.f32 %v687, %v714
        %v723 = vmul.f32 %v715, 1.442695
        %v724 = vpow.pop %v723
        %v725 = vmul.f32 %v716, 1.442695
        %v726 = vpow.pop %v725
        %v727 = vmul.f32 %v717, 1.442695
        %v728 = vpow.pop %v727
        %v729 = vmul.f32 %v718, 1.442695
        %v730 = vpow.pop %v729
        %v731 = vmul.f32 %v719, 1.442695
        %v732 = vpow.pop %v731
        %v733 = vmul.f32 %v720, 1.442695
        %v734 = vpow.pop %v733
        %v735 = vmul.f32 %v721, 1.442695
        %v736 = vpow.pop %v735
        %v737 = vmul.f32 %v722, 1.442695
        %v738 = vpow.pop %v737
        %v739 = vsel %vm690, %v724, 0.0
        %740 = vadd.xlane.f32.xlu0 %v739
        %v741 = vpop.xlane.xlu0 %740
        %v742 = vsel %vm690, %v726, 0.0
        %743 = vadd.xlane.f32.xlu0 %v742
        %v744 = vpop.xlane.xlu0 %743
        %v745 = vsel %vm690, %v728, 0.0
        %746 = vadd.xlane.f32.xlu0 %v745
        %v747 = vpop.xlane.xlu0 %746
        %v748 = vsel %vm690, %v730, 0.0
        %749 = vadd.xlane.f32.xlu0 %v748
        %v750 = vpop.xlane.xlu0 %749
        %v751 = vsel %vm690, %v732, 0.0
        %752 = vadd.xlane.f32.xlu0 %v751
        %v753 = vpop.xlane.xlu0 %752
        %v754 = vsel %vm690, %v734, 0.0
        %755 = vadd.xlane.f32.xlu0 %v754
        %v756 = vpop.xlane.xlu0 %755
        %v757 = vsel %vm690, %v736, 0.0
        %758 = vadd.xlane.f32.xlu0 %v757
        %v759 = vpop.xlane.xlu0 %758
        %v760 = vsel %vm690, %v738, 0.0
        %761 = vadd.xlane.f32.xlu0 %v760
        %v762 = vpop.xlane.xlu0 %761
        %v763 = vrcp.pop %v741
        %v764 = vrcp.pop %v744
        %v765 = vrcp.pop %v747
        %v766 = vrcp.pop %v750
        %v767 = vrcp.pop %v753
        %v768 = vrcp.pop %v756
        %v769 = vrcp.pop %v759
        %v770 = vrcp.pop %v762
        %v771 = vmul.f32 %v724, %v763
        %v772 = vmul.f32 %v726, %v764
        %v773 = vmul.f32 %v728, %v765
        %v774 = vmul.f32 %v730, %v766
        %v775 = vmul.f32 %v732, %v767
        %v776 = vmul.f32 %v734, %v768
        %v777 = vmul.f32 %v736, %v769
        %v778 = vmul.f32 %v738, %v770
        %779 = vrot.lane.b32.xlu0 %v488, 64
        %v780 = vpop.permute.xlu0 %779
        %781 = vrot.lane.b32.xlu0 %v489, 64
        %v782 = vpop.permute.xlu0 %781
        %783 = vrot.lane.b32.xlu0 %v490, 64
        %v784 = vpop.permute.xlu0 %783
        %785 = vrot.lane.b32.xlu0 %v491, 64
        %v786 = vpop.permute.xlu0 %785
        %787 = vrot.lane.b32.xlu0 %v492, 64
        %v788 = vpop.permute.xlu0 %787
        %789 = vrot.lane.b32.xlu0 %v493, 64
        %v790 = vpop.permute.xlu0 %789
        %791 = vrot.lane.b32.xlu0 %v494, 64
        %v792 = vpop.permute.xlu0 %791
        %793 = vrot.lane.b32.xlu0 %v495, 64
        %v794 = vpop.permute.xlu0 %793
        %v804 = vsel %vm690, %v771, 0
        %v807 = vsel %vm690, %v772, 0
        %v810 = vsel %vm690, %v773, 0
        %v813 = vsel %vm690, %v774, 0
        %v816 = vsel %vm690, %v775, 0
        %v819 = vsel %vm690, %v776, 0
        %v822 = vsel %vm690, %v777, 0
        %v825 = vsel %vm690, %v778, 0
        %827 = vmatprep.subr.mxu0 0.0
        %828 = vmatpush1.msra.mxu0 %v780
        %829 = vmatprep.subr.mxu0 0.0
        %830 = vmatpush1.msra.mxu0 %v782
        %831 = vmatprep.subr.mxu0 0.0
        %832 = vmatpush1.msra.mxu0 %v784
        %833 = vmatprep.subr.mxu0 0.0
        %834 = vmatpush1.msra.mxu0 %v786
        %835 = vmatprep.subr.mxu0 0.0
        %836 = vmatpush1.msra.mxu0 %v788
        %837 = vmatprep.subr.mxu0 0.0
        %838 = vmatpush1.msra.mxu0 %v790
        %839 = vmatprep.subr.mxu0 0.0
        %840 = vmatpush1.msra.mxu0 %v792
        %841 = vmatprep.subr.mxu0 0.0
        %842 = vmatpush1.msra.mxu0 %v794
        %843 = vmatprep.subr.mxu0 0.0
        %844 = vmatpush1.msra.mxu0 0.0
        %845 = vmatprep.subr.mxu0 0.0
        %846 = vmatpush1.msra.mxu0 0.0
        %847 = vmatprep.subr.mxu0 0.0
        %848 = vmatpush1.msra.mxu0 0.0
        %849 = vmatprep.subr.mxu0 0.0
        %850 = vmatpush1.msra.mxu0 0.0
        %851 = vmatprep.subr.mxu0 0.0
        %852 = vmatpush1.msra.mxu0 0.0
        %853 = vmatprep.subr.mxu0 0.0
        %854 = vmatpush1.msra.mxu0 0.0
        %855 = vmatprep.subr.mxu0 0.0
        %856 = vmatpush1.msra.mxu0 0.0
        %857 = vmatprep.subr.mxu0 0.0
        %858 = vmatpush1.msra.mxu0 0.0
        %859 = vmatprep.subr.mxu0 0.0
        %860 = vmatpush1.msra.mxu0 0.0
        %861 = vmatprep.subr.mxu0 0.0
        %862 = vmatpush1.msra.mxu0 0.0
        %863 = vmatprep.subr.mxu0 0.0
        %864 = vmatpush1.msra.mxu0 0.0
        %865 = vmatprep.subr.mxu0 0.0
        %866 = vmatpush1.msra.mxu0 0.0
        %867 = vmatprep.subr.mxu0 0.0
        %868 = vmatpush1.msra.mxu0 0.0
        %869 = vmatprep.subr.mxu0 0.0
        %870 = vmatpush1.msra.mxu0 0.0
        %871 = vmatprep.subr.mxu0 0.0
        %872 = vmatpush1.msra.mxu0 0.0
        %873 = vmatprep.subr.mxu0 0.0
        %874 = vmatpush1.msra.mxu0 0.0
        %875 = vmatprep.subr.mxu0 0.0
        %876 = vmatpush1.msra.mxu0 0.0
        %877 = vmatprep.subr.mxu0 0.0
        %878 = vmatpush1.msra.mxu0 0.0
        %879 = vmatprep.subr.mxu0 0.0
        %880 = vmatpush1.msra.mxu0 0.0
        %881 = vmatprep.subr.mxu0 0.0
        %882 = vmatpush1.msra.mxu0 0.0
        %883 = vmatprep.subr.mxu0 0.0
        %884 = vmatpush1.msra.mxu0 0.0
        %885 = vmatprep.subr.mxu0 0.0
        %886 = vmatpush1.msra.mxu0 0.0
        %887 = vmatprep.subr.mxu0 0.0
        %888 = vmatpush1.msra.mxu0 0.0
        %889 = vmatprep.subr.mxu0 0.0
        %890 = vmatpush1.msra.mxu0 0.0
        %891 = vmatprep.mubr.f32.mxu0 0.0
        %892 = vmatmul.mubr.f32.gmra.mrb[0].mxu0 %v804
        %v893 = vpop.f32.mrb[0].mxu0
        %v894 = vadd.f32 0.0, %v893
        %v895 = vpop.f32.mrb[0].mxu0
        %896 = vmatprep.mubr.f32.mxu0 0.0
        %897 = vmatmul.mubr.f32.gmra.mrb[0].mxu0 %v807
        %v898 = vpop.f32.mrb[0].mxu0
        %v899 = vadd.f32 0.0, %v898
        %v900 = vpop.f32.mrb[0].mxu0
        %901 = vmatprep.mubr.f32.mxu0 0.0
        %902 = vmatmul.mubr.f32.gmra.mrb[0].mxu0 %v810
        %v903 = vpop.f32.mrb[0].mxu0
        %v904 = vadd.f32 0.0, %v903
        %v905 = vpop.f32.mrb[0].mxu0
        %906 = vmatprep.mubr.f32.mxu0 0.0
        %907 = vmatmul.mubr.f32.gmra.mrb[0].mxu0 %v813
        %v908 = vpop.f32.mrb[0].mxu0
        %v909 = vadd.f32 0.0, %v908
        %v910 = vpop.f32.mrb[0].mxu0
        %911 = vmatprep.mubr.f32.mxu0 0.0
        %912 = vmatmul.mubr.f32.gmra.mrb[0].mxu0 %v816
        %v913 = vpop.f32.mrb[0].mxu0
        %v914 = vadd.f32 0.0, %v913
        %v915 = vpop.f32.mrb[0].mxu0
        %916 = vmatprep.mubr.f32.mxu0 0.0
        %917 = vmatmul.mubr.f32.gmra.mrb[0].mxu0 %v819
        %v918 = vpop.f32.mrb[0].mxu0
        %v919 = vadd.f32 0.0, %v918
        %v920 = vpop.f32.mrb[0].mxu0
        %921 = vmatprep.mubr.f32.mxu0 0.0
        %922 = vmatmul.mubr.f32.gmra.mrb[0].mxu0 %v822
        %v923 = vpop.f32.mrb[0].mxu0
        %v924 = vadd.f32 0.0, %v923
        %v925 = vpop.f32.mrb[0].mxu0
        %926 = vmatprep.mubr.f32.mxu0 0.0
        %927 = vmatmul.mubr.f32.gmra.mrb[0].mxu0 %v825
        %v928 = vpop.f32.mrb[0].mxu0
        %v929 = vadd.f32 0.0, %v928
        %v930 = vpop.f32.mrb[0].mxu0
        %931 = vdwg.mxu0
        %s932 = scalar_lea.vmem [#allocation4], 32
        %v933 = vld [vmem:[%s932] sm:$0xf]
        %v934 = vld [vmem:[%s932 + $0x4] sm:$0xf]
        %v935 = vld [vmem:[%s932 + $0x8] sm:$0xf]
        %v936 = vld [vmem:[%s932 + $0xc] sm:$0xf]
        %v937 = vld [vmem:[%s932 + $0x10] sm:$0xf]
        %v938 = vld [vmem:[%s932 + $0x14] sm:$0xf]
        %v939 = vld [vmem:[%s932 + $0x18] sm:$0xf]
        %v940 = vld [vmem:[%s932 + $0x1c] sm:$0xf]
        %v941 = vunpack.c.l.bf16 %v933
        %v942 = vunpack.c.l.bf16 %v934
        %v943 = vunpack.c.l.bf16 %v935
        %v944 = vunpack.c.l.bf16 %v936
        %v945 = vunpack.c.l.bf16 %v937
        %v946 = vunpack.c.l.bf16 %v938
        %v947 = vunpack.c.l.bf16 %v939
        %v948 = vunpack.c.l.bf16 %v940
        %949 = vrot.lane.b32.xlu0 %v496, 120
        %v950 = vpop.permute.xlu0 %949
        %951 = vrot.lane.b32.xlu0 %v497, 120
        %v952 = vpop.permute.xlu0 %951
        %953 = vrot.lane.b32.xlu0 %v498, 120
        %v954 = vpop.permute.xlu0 %953
        %955 = vrot.lane.b32.xlu0 %v499, 120
        %v956 = vpop.permute.xlu0 %955
        %957 = vrot.lane.b32.xlu0 %v500, 120
        %v958 = vpop.permute.xlu0 %957
        %959 = vrot.lane.b32.xlu0 %v501, 120
        %v960 = vpop.permute.xlu0 %959
        %961 = vrot.lane.b32.xlu0 %v502, 120
        %v962 = vpop.permute.xlu0 %961
        %963 = vrot.lane.b32.xlu0 %v503, 120
        %v964 = vpop.permute.xlu0 %963
        %965 = vrot.lane.b32.xlu0 %v488, 88
        %v966 = vpop.permute.xlu0 %965
        %967 = vrot.lane.b32.xlu0 %v489, 88
        %v968 = vpop.permute.xlu0 %967
        %969 = vrot.lane.b32.xlu0 %v490, 88
        %v970 = vpop.permute.xlu0 %969
        %971 = vrot.lane.b32.xlu0 %v491, 88
        %v972 = vpop.permute.xlu0 %971
        %973 = vrot.lane.b32.xlu0 %v492, 88
        %v974 = vpop.permute.xlu0 %973
        %975 = vrot.lane.b32.xlu0 %v493, 88
        %v976 = vpop.permute.xlu0 %975
        %977 = vrot.lane.b32.xlu0 %v494, 88
        %v978 = vpop.permute.xlu0 %977
        %979 = vrot.lane.b32.xlu0 %v495, 88
        %v980 = vpop.permute.xlu0 %979
        %v981 = vsel %vm544, %v950, 0
        %v983 = vsel %vm544, %v952, 0
        %v985 = vsel %vm544, %v954, 0
        %v987 = vsel %vm544, %v956, 0
        %v989 = vsel %vm544, %v958, 0
        %v991 = vsel %vm544, %v960, 0
        %v993 = vsel %vm544, %v962, 0
        %v995 = vsel %vm544, %v964, 0
        %v997 = vsel %vm544, %v966, 0
        %v999 = vsel %vm544, %v968, 0
        %v1001 = vsel %vm544, %v970, 0
        %v1003 = vsel %vm544, %v972, 0
        %v1005 = vsel %vm544, %v974, 0
        %v1007 = vsel %vm544, %v976, 0
        %v1009 = vsel %vm544, %v978, 0
        %v1011 = vsel %vm544, %v980, 0
        %1013 = vmatprep.subr.mxu0 0.0
        %1014 = vmatpush1.xpose.msra.mxu0 %v997
        %1015 = vmatprep.subr.mxu0 0.0
        %1016 = vmatpush1.xpose.msra.mxu0 %v999
        %1017 = vmatprep.subr.mxu0 0.0
        %1018 = vmatpush1.xpose.msra.mxu0 %v1001
        %1019 = vmatprep.subr.mxu0 0.0
        %1020 = vmatpush1.xpose.msra.mxu0 %v1003
        %1021 = vmatprep.subr.mxu0 0.0
        %1022 = vmatpush1.xpose.msra.mxu0 %v1005
        %1023 = vmatprep.subr.mxu0 0.0
        %1024 = vmatpush1.xpose.msra.mxu0 %v1007
        %1025 = vmatprep.subr.mxu0 0.0
        %1026 = vmatpush1.xpose.msra.mxu0 %v1009
        %1027 = vmatprep.subr.mxu0 0.0
        %1028 = vmatpush1.xpose.msra.mxu0 %v1011
        %1029 = vmatprep.subr.mxu0 0.0
        %1030 = vmatpush1.xpose.msra.mxu0 0.0
        %1031 = vmatprep.subr.mxu0 0.0
        %1032 = vmatpush1.xpose.msra.mxu0 0.0
        %1033 = vmatprep.subr.mxu0 0.0
        %1034 = vmatpush1.xpose.msra.mxu0 0.0
        %1035 = vmatprep.subr.mxu0 0.0
        %1036 = vmatpush1.xpose.msra.mxu0 0.0
        %1037 = vmatprep.subr.mxu0 0.0
        %1038 = vmatpush1.xpose.msra.mxu0 0.0
        %1039 = vmatprep.subr.mxu0 0.0
        %1040 = vmatpush1.xpose.msra.mxu0 0.0
        %1041 = vmatprep.subr.mxu0 0.0
        %1042 = vmatpush1.xpose.msra.mxu0 0.0
        %1043 = vmatprep.subr.mxu0 0.0
        %1044 = vmatpush1.xpose.msra.mxu0 0.0
        %1045 = vmatprep.subr.mxu0 0.0
        %1046 = vmatpush1.xpose.msra.mxu0 0.0
        %1047 = vmatprep.subr.mxu0 0.0
        %1048 = vmatpush1.xpose.msra.mxu0 0.0
        %1049 = vmatprep.subr.mxu0 0.0
        %1050 = vmatpush1.xpose.msra.mxu0 0.0
        %1051 = vmatprep.subr.mxu0 0.0
        %1052 = vmatpush1.xpose.msra.mxu0 0.0
        %1053 = vmatprep.subr.mxu0 0.0
        %1054 = vmatpush1.xpose.msra.mxu0 0.0
        %1055 = vmatprep.subr.mxu0 0.0
        %1056 = vmatpush1.xpose.msra.mxu0 0.0
        %1057 = vmatprep.subr.mxu0 0.0
        %1058 = vmatpush1.xpose.msra.mxu0 0.0
        %1059 = vmatprep.subr.mxu0 0.0
        %1060 = vmatpush1.xpose.msra.mxu0 0.0
        %1061 = vmatprep.subr.mxu0 0.0
        %1062 = vmatpush1.xpose.msra.mxu0 0.0
        %1063 = vmatprep.subr.mxu0 0.0
        %1064 = vmatpush1.xpose.msra.mxu0 0.0
        %1065 = vmatprep.subr.mxu0 0.0
        %1066 = vmatpush1.xpose.msra.mxu0 0.0
        %1067 = vmatprep.subr.mxu0 0.0
        %1068 = vmatpush1.xpose.msra.mxu0 0.0
        %1069 = vmatprep.subr.mxu0 0.0
        %1070 = vmatpush1.xpose.msra.mxu0 0.0
        %1071 = vmatprep.subr.mxu0 0.0
        %1072 = vmatpush1.xpose.msra.mxu0 0.0
        %1073 = vmatprep.subr.mxu0 0.0
        %1074 = vmatpush1.xpose.msra.mxu0 0.0
        %1075 = vmatprep.subr.mxu0 0.0
        %1076 = vmatpush1.xpose.msra.mxu0 0.0
        %1077 = vmatprep.mubr.f32.mxu0 0.0
        %1078 = vmatmul.mubr.f32.gmra.mrb[0].mxu0 %v981
        %v1079 = vpop.f32.mrb[0].mxu0
        %v1080 = vadd.f32 %v941, %v1079
        %v1081 = vpop.f32.mrb[0].mxu0
        %1082 = vmatprep.mubr.f32.mxu0 0.0
        %1083 = vmatmul.mubr.f32.gmra.mrb[0].mxu0 %v983
        %v1084 = vpop.f32.mrb[0].mxu0
        %v1085 = vadd.f32 %v942, %v1084
        %v1086 = vpop.f32.mrb[0].mxu0
        %1087 = vmatprep.mubr.f32.mxu0 0.0
        %1088 = vmatmul.mubr.f32.gmra.mrb[0].mxu0 %v985
        %v1089 = vpop.f32.mrb[0].mxu0
        %v1090 = vadd.f32 %v943, %v1089
        %v1091 = vpop.f32.mrb[0].mxu0
        %1092 = vmatprep.mubr.f32.mxu0 0.0
        %1093 = vmatmul.mubr.f32.gmra.mrb[0].mxu0 %v987
        %v1094 = vpop.f32.mrb[0].mxu0
        %v1095 = vadd.f32 %v944, %v1094
        %v1096 = vpop.f32.mrb[0].mxu0
        %1097 = vmatprep.mubr.f32.mxu0 0.0
        %1098 = vmatmul.mubr.f32.gmra.mrb[0].mxu0 %v989
        %v1099 = vpop.f32.mrb[0].mxu0
        %v1100 = vadd.f32 %v945, %v1099
        %v1101 = vpop.f32.mrb[0].mxu0
        %1102 = vmatprep.mubr.f32.mxu0 0.0
        %1103 = vmatmul.mubr.f32.gmra.mrb[0].mxu0 %v991
        %v1104 = vpop.f32.mrb[0].mxu0
        %v1105 = vadd.f32 %v946, %v1104
        %v1106 = vpop.f32.mrb[0].mxu0
        %1107 = vmatprep.mubr.f32.mxu0 0.0
        %1108 = vmatmul.mubr.f32.gmra.mrb[0].mxu0 %v993
        %v1109 = vpop.f32.mrb[0].mxu0
        %v1110 = vadd.f32 %v947, %v1109
        %v1111 = vpop.f32.mrb[0].mxu0
        %1112 = vmatprep.mubr.f32.mxu0 0.0
        %1113 = vmatmul.mubr.f32.gmra.mrb[0].mxu0 %v995
        %v1114 = vpop.f32.mrb[0].mxu0
        %v1115 = vadd.f32 %v948, %v1114
        %v1116 = vpop.f32.mrb[0].mxu0
        %1117 = vdwg.mxu0
        %v1118 = vsel %vm690, %v1080, -inf
        %1119 = vmax.xlane.f32.xlu0 %v1118
        %v1120 = vpop.xlane.xlu0 %1119
        %v1121 = vsel %vm690, %v1085, -inf
        %1122 = vmax.xlane.f32.xlu0 %v1121
        %v1123 = vpop.xlane.xlu0 %1122
        %v1124 = vsel %vm690, %v1090, -inf
        %1125 = vmax.xlane.f32.xlu0 %v1124
        %v1126 = vpop.xlane.xlu0 %1125
        %v1127 = vsel %vm690, %v1095, -inf
        %1128 = vmax.xlane.f32.xlu0 %v1127
        %v1129 = vpop.xlane.xlu0 %1128
        %v1130 = vsel %vm690, %v1100, -inf
        %1131 = vmax.xlane.f32.xlu0 %v1130
        %v1132 = vpop.xlane.xlu0 %1131
        %v1133 = vsel %vm690, %v1105, -inf
        %1134 = vmax.xlane.f32.xlu0 %v1133
        %v1135 = vpop.xlane.xlu0 %1134
        %v1136 = vsel %vm690, %v1110, -inf
        %1137 = vmax.xlane.f32.xlu0 %v1136
        %v1138 = vpop.xlane.xlu0 %1137
        %v1139 = vsel %vm690, %v1115, -inf
        %1140 = vmax.xlane.f32.xlu0 %v1139
        %v1141 = vpop.xlane.xlu0 %1140
        %v1142 = vsub.f32 %v1080, %v1120
        %v1143 = vsub.f32 %v1085, %v1123
        %v1144 = vsub.f32 %v1090, %v1126
        %v1145 = vsub.f32 %v1095, %v1129
        %v1146 = vsub.f32 %v1100, %v1132
        %v1147 = vsub.f32 %v1105, %v1135
        %v1148 = vsub.f32 %v1110, %v1138
        %v1149 = vsub.f32 %v1115, %v1141
        %v1150 = vmul.f32 %v1142, 1.442695
        %v1151 = vpow.pop %v1150
        %v1152 = vmul.f32 %v1143, 1.442695
        %v1153 = vpow.pop %v1152
        %v1154 = vmul.f32 %v1144, 1.442695
        %v1155 = vpow.pop %v1154
        %v1156 = vmul.f32 %v1145, 1.442695
        %v1157 = vpow.pop %v1156
        %v1158 = vmul.f32 %v1146, 1.442695
        %v1159 = vpow.pop %v1158
        %v1160 = vmul.f32 %v1147, 1.442695
        %v1161 = vpow.pop %v1160
        %v1162 = vmul.f32 %v1148, 1.442695
        %v1163 = vpow.pop %v1162
        %v1164 = vmul.f32 %v1149, 1.442695
        %v1165 = vpow.pop %v1164
        %v1166 = vsel %vm690, %v1151, 0.0
        %1167 = vadd.xlane.f32.xlu0 %v1166
        %v1168 = vpop.xlane.xlu0 %1167
        %v1169 = vsel %vm690, %v1153, 0.0
        %1170 = vadd.xlane.f32.xlu0 %v1169
        %v1171 = vpop.xlane.xlu0 %1170
        %v1172 = vsel %vm690, %v1155, 0.0
        %1173 = vadd.xlane.f32.xlu0 %v1172
        %v1174 = vpop.xlane.xlu0 %1173
        %v1175 = vsel %vm690, %v1157, 0.0
        %1176 = vadd.xlane.f32.xlu0 %v1175
        %v1177 = vpop.xlane.xlu0 %1176
        %v1178 = vsel %vm690, %v1159, 0.0
        %1179 = vadd.xlane.f32.xlu0 %v1178
        %v1180 = vpop.xlane.xlu0 %1179
        %v1181 = vsel %vm690, %v1161, 0.0
        %1182 = vadd.xlane.f32.xlu0 %v1181
        %v1183 = vpop.xlane.xlu0 %1182
        %v1184 = vsel %vm690, %v1163, 0.0
        %1185 = vadd.xlane.f32.xlu0 %v1184
        %v1186 = vpop.xlane.xlu0 %1185
        %v1187 = vsel %vm690, %v1165, 0.0
        %1188 = vadd.xlane.f32.xlu0 %v1187
        %v1189 = vpop.xlane.xlu0 %1188
        %v1190 = vrcp.pop %v1168
        %v1191 = vrcp.pop %v1171
        %v1192 = vrcp.pop %v1174
        %v1193 = vrcp.pop %v1177
        %v1194 = vrcp.pop %v1180
        %v1195 = vrcp.pop %v1183
        %v1196 = vrcp.pop %v1186
        %v1197 = vrcp.pop %v1189
        %v1198 = vmul.f32 %v1151, %v1190
        %v1199 = vmul.f32 %v1153, %v1191
        %v1200 = vmul.f32 %v1155, %v1192
        %v1201 = vmul.f32 %v1157, %v1193
        %v1202 = vmul.f32 %v1159, %v1194
        %v1203 = vmul.f32 %v1161, %v1195
        %v1204 = vmul.f32 %v1163, %v1196
        %v1205 = vmul.f32 %v1165, %v1197
        %1206 = vrot.lane.b32.xlu0 %v488, 56
        %v1207 = vpop.permute.xlu0 %1206
        %1208 = vrot.lane.b32.xlu0 %v489, 56
        %v1209 = vpop.permute.xlu0 %1208
        %1210 = vrot.lane.b32.xlu0 %v490, 56
        %v1211 = vpop.permute.xlu0 %1210
        %1212 = vrot.lane.b32.xlu0 %v491, 56
        %v1213 = vpop.permute.xlu0 %1212
        %1214 = vrot.lane.b32.xlu0 %v492, 56
        %v1215 = vpop.permute.xlu0 %1214
        %1216 = vrot.lane.b32.xlu0 %v493, 56
        %v1217 = vpop.permute.xlu0 %1216
        %1218 = vrot.lane.b32.xlu0 %v494, 56
        %v1219 = vpop.permute.xlu0 %1218
        %1220 = vrot.lane.b32.xlu0 %v495, 56
        %v1221 = vpop.permute.xlu0 %1220
        %v1231 = vsel %vm690, %v1198, 0
        %v1234 = vsel %vm690, %v1199, 0
        %v1237 = vsel %vm690, %v1200, 0
        %v1240 = vsel %vm690, %v1201, 0
        %v1243 = vsel %vm690, %v1202, 0
        %v1246 = vsel %vm690, %v1203, 0
        %v1249 = vsel %vm690, %v1204, 0
        %v1252 = vsel %vm690, %v1205, 0
        %1254 = vmatprep.subr.mxu0 0.0
        %1255 = vmatpush1.msra.mxu0 %v1207
        %1256 = vmatprep.subr.mxu0 0.0
        %1257 = vmatpush1.msra.mxu0 %v1209
        %1258 = vmatprep.subr.mxu0 0.0
        %1259 = vmatpush1.msra.mxu0 %v1211
        %1260 = vmatprep.subr.mxu0 0.0
        %1261 = vmatpush1.msra.mxu0 %v1213
        %1262 = vmatprep.subr.mxu0 0.0
        %1263 = vmatpush1.msra.mxu0 %v1215
        %1264 = vmatprep.subr.mxu0 0.0
        %1265 = vmatpush1.msra.mxu0 %v1217
        %1266 = vmatprep.subr.mxu0 0.0
        %1267 = vmatpush1.msra.mxu0 %v1219
        %1268 = vmatprep.subr.mxu0 0.0
        %1269 = vmatpush1.msra.mxu0 %v1221
        %1270 = vmatprep.subr.mxu0 0.0
        %1271 = vmatpush1.msra.mxu0 0.0
        %1272 = vmatprep.subr.mxu0 0.0
        %1273 = vmatpush1.msra.mxu0 0.0
        %1274 = vmatprep.subr.mxu0 0.0
        %1275 = vmatpush1.msra.mxu0 0.0
        %1276 = vmatprep.subr.mxu0 0.0
        %1277 = vmatpush1.msra.mxu0 0.0
        %1278 = vmatprep.subr.mxu0 0.0
        %1279 = vmatpush1.msra.mxu0 0.0
        %1280 = vmatprep.subr.mxu0 0.0
        %1281 = vmatpush1.msra.mxu0 0.0
        %1282 = vmatprep.subr.mxu0 0.0
        %1283 = vmatpush1.msra.mxu0 0.0
        %1284 = vmatprep.subr.mxu0 0.0
        %1285 = vmatpush1.msra.mxu0 0.0
        %1286 = vmatprep.subr.mxu0 0.0
        %1287 = vmatpush1.msra.mxu0 0.0
        %1288 = vmatprep.subr.mxu0 0.0
        %1289 = vmatpush1.msra.mxu0 0.0
        %1290 = vmatprep.subr.mxu0 0.0
        %1291 = vmatpush1.msra.mxu0 0.0
        %1292 = vmatprep.subr.mxu0 0.0
        %1293 = vmatpush1.msra.mxu0 0.0
        %1294 = vmatprep.subr.mxu0 0.0
        %1295 = vmatpush1.msra.mxu0 0.0
        %1296 = vmatprep.subr.mxu0 0.0
        %1297 = vmatpush1.msra.mxu0 0.0
        %1298 = vmatprep.subr.mxu0 0.0
        %1299 = vmatpush1.msra.mxu0 0.0
        %1300 = vmatprep.subr.mxu0 0.0
        %1301 = vmatpush1.msra.mxu0 0.0
        %1302 = vmatprep.subr.mxu0 0.0
        %1303 = vmatpush1.msra.mxu0 0.0
        %1304 = vmatprep.subr.mxu0 0.0
        %1305 = vmatpush1.msra.mxu0 0.0
        %1306 = vmatprep.subr.mxu0 0.0
        %1307 = vmatpush1.msra.mxu0 0.0
        %1308 = vmatprep.subr.mxu0 0.0
        %1309 = vmatpush1.msra.mxu0 0.0
        %1310 = vmatprep.subr.mxu0 0.0
        %1311 = vmatpush1.msra.mxu0 0.0
        %1312 = vmatprep.subr.mxu0 0.0
        %1313 = vmatpush1.msra.mxu0 0.0
        %1314 = vmatprep.subr.mxu0 0.0
        %1315 = vmatpush1.msra.mxu0 0.0
        %1316 = vmatprep.subr.mxu0 0.0
        %1317 = vmatpush1.msra.mxu0 0.0
        %1318 = vmatprep.mubr.f32.mxu0 0.0
        %1319 = vmatmul.mubr.f32.gmra.mrb[0].mxu0 %v1231
        %v1320 = vpop.f32.mrb[0].mxu0
        %v1321 = vadd.f32 0.0, %v1320
        %v1322 = vpop.f32.mrb[0].mxu0
        %1323 = vmatprep.mubr.f32.mxu0 0.0
        %1324 = vmatmul.mubr.f32.gmra.mrb[0].mxu0 %v1234
        %v1325 = vpop.f32.mrb[0].mxu0
        %v1326 = vadd.f32 0.0, %v1325
        %v1327 = vpop.f32.mrb[0].mxu0
        %1328 = vmatprep.mubr.f32.mxu0 0.0
        %1329 = vmatmul.mubr.f32.gmra.mrb[0].mxu0 %v1237
        %v1330 = vpop.f32.mrb[0].mxu0
        %v1331 = vadd.f32 0.0, %v1330
        %v1332 = vpop.f32.mrb[0].mxu0
        %1333 = vmatprep.mubr.f32.mxu0 0.0
        %1334 = vmatmul.mubr.f32.gmra.mrb[0].mxu0 %v1240
        %v1335 = vpop.f32.mrb[0].mxu0
        %v1336 = vadd.f32 0.0, %v1335
        %v1337 = vpop.f32.mrb[0].mxu0
        %1338 = vmatprep.mubr.f32.mxu0 0.0
        %1339 = vmatmul.mubr.f32.gmra.mrb[0].mxu0 %v1243
        %v1340 = vpop.f32.mrb[0].mxu0
        %v1341 = vadd.f32 0.0, %v1340
        %v1342 = vpop.f32.mrb[0].mxu0
        %1343 = vmatprep.mubr.f32.mxu0 0.0
        %1344 = vmatmul.mubr.f32.gmra.mrb[0].mxu0 %v1246
        %v1345 = vpop.f32.mrb[0].mxu0
        %v1346 = vadd.f32 0.0, %v1345
        %v1347 = vpop.f32.mrb[0].mxu0
        %1348 = vmatprep.mubr.f32.mxu0 0.0
        %1349 = vmatmul.mubr.f32.gmra.mrb[0].mxu0 %v1249
        %v1350 = vpop.f32.mrb[0].mxu0
        %v1351 = vadd.f32 0.0, %v1350
        %v1352 = vpop.f32.mrb[0].mxu0
        %1353 = vmatprep.mubr.f32.mxu0 0.0
        %1354 = vmatmul.mubr.f32.gmra.mrb[0].mxu0 %v1252
        %v1355 = vpop.f32.mrb[0].mxu0
        %v1356 = vadd.f32 0.0, %v1355
        %v1357 = vpop.f32.mrb[0].mxu0
        %1358 = vdwg.mxu0
        %s1359 = scalar_lea.vmem [#allocation4], 64
        %v1360 = vld [vmem:[%s1359] sm:$0xf]
        %v1361 = vld [vmem:[%s1359 + $0x4] sm:$0xf]
        %v1362 = vld [vmem:[%s1359 + $0x8] sm:$0xf]
        %v1363 = vld [vmem:[%s1359 + $0xc] sm:$0xf]
        %v1364 = vld [vmem:[%s1359 + $0x10] sm:$0xf]
        %v1365 = vld [vmem:[%s1359 + $0x14] sm:$0xf]
        %v1366 = vld [vmem:[%s1359 + $0x18] sm:$0xf]
        %v1367 = vld [vmem:[%s1359 + $0x1c] sm:$0xf]
        %v1368 = vunpack.c.l.bf16 %v1360
        %v1369 = vunpack.c.l.bf16 %v1361
        %v1370 = vunpack.c.l.bf16 %v1362
        %v1371 = vunpack.c.l.bf16 %v1363
        %v1372 = vunpack.c.l.bf16 %v1364
        %v1373 = vunpack.c.l.bf16 %v1365
        %v1374 = vunpack.c.l.bf16 %v1366
        %v1375 = vunpack.c.l.bf16 %v1367
        %1376 = vrot.lane.b32.xlu0 %v496, 112
        %v1377 = vpop.permute.xlu0 %1376
        %1378 = vrot.lane.b32.xlu0 %v497, 112
        %v1379 = vpop.permute.xlu0 %1378
        %1380 = vrot.lane.b32.xlu0 %v498, 112
        %v1381 = vpop.permute.xlu0 %1380
        %1382 = vrot.lane.b32.xlu0 %v499, 112
        %v1383 = vpop.permute.xlu0 %1382
        %1384 = vrot.lane.b32.xlu0 %v500, 112
        %v1385 = vpop.permute.xlu0 %1384
        %1386 = vrot.lane.b32.xlu0 %v501, 112
        %v1387 = vpop.permute.xlu0 %1386
        %1388 = vrot.lane.b32.xlu0 %v502, 112
        %v1389 = vpop.permute.xlu0 %1388
        %1390 = vrot.lane.b32.xlu0 %v503, 112
        %v1391 = vpop.permute.xlu0 %1390
        %1392 = vrot.lane.b32.xlu0 %v488, 80
        %v1393 = vpop.permute.xlu0 %1392
        %1394 = vrot.lane.b32.xlu0 %v489, 80
        %v1395 = vpop.permute.xlu0 %1394
        %1396 = vrot.lane.b32.xlu0 %v490, 80
        %v1397 = vpop.permute.xlu0 %1396
        %1398 = vrot.lane.b32.xlu0 %v491, 80
        %v1399 = vpop.permute.xlu0 %1398
        %1400 = vrot.lane.b32.xlu0 %v492, 80
        %v1401 = vpop.permute.xlu0 %1400
        %1402 = vrot.lane.b32.xlu0 %v493, 80
        %v1403 = vpop.permute.xlu0 %1402
        %1404 = vrot.lane.b32.xlu0 %v494, 80
        %v1405 = vpop.permute.xlu0 %1404
        %1406 = vrot.lane.b32.xlu0 %v495, 80
        %v1407 = vpop.permute.xlu0 %1406
        %v1408 = vsel %vm544, %v1377, 0
        %v1410 = vsel %vm544, %v1379, 0
        %v1412 = vsel %vm544, %v1381, 0
        %v1414 = vsel %vm544, %v1383, 0
        %v1416 = vsel %vm544, %v1385, 0
        %v1418 = vsel %vm544, %v1387, 0
        %v1420 = vsel %vm544, %v1389, 0
        %v1422 = vsel %vm544, %v1391, 0
        %v1424 = vsel %vm544, %v1393, 0
        %v1426 = vsel %vm544, %v1395, 0
        %v1428 = vsel %vm544, %v1397, 0
        %v1430 = vsel %vm544, %v1399, 0
        %v1432 = vsel %vm544, %v1401, 0
        %v1434 = vsel %vm544, %v1403, 0
        %v1436 = vsel %vm544, %v1405, 0
        %v1438 = vsel %vm544, %v1407, 0
        %1440 = vmatprep.subr.mxu0 0.0
        %1441 = vmatpush1.xpose.msra.mxu0 %v1424
        %1442 = vmatprep.subr.mxu0 0.0
        %1443 = vmatpush1.xpose.msra.mxu0 %v1426
        %1444 = vmatprep.subr.mxu0 0.0
        %1445 = vmatpush1.xpose.msra.mxu0 %v1428
        %1446 = vmatprep.subr.mxu0 0.0
        %1447 = vmatpush1.xpose.msra.mxu0 %v1430
        %1448 = vmatprep.subr.mxu0 0.0
        %1449 = vmatpush1.xpose.msra.mxu0 %v1432
        %1450 = vmatprep.subr.mxu0 0.0
        %1451 = vmatpush1.xpose.msra.mxu0 %v1434
        %1452 = vmatprep.subr.mxu0 0.0
        %1453 = vmatpush1.xpose.msra.mxu0 %v1436
        %1454 = vmatprep.subr.mxu0 0.0
        %1455 = vmatpush1.xpose.msra.mxu0 %v1438
        %1456 = vmatprep.subr.mxu0 0.0
        %1457 = vmatpush1.xpose.msra.mxu0 0.0
        %1458 = vmatprep.subr.mxu0 0.0
        %1459 = vmatpush1.xpose.msra.mxu0 0.0
        %1460 = vmatprep.subr.mxu0 0.0
        %1461 = vmatpush1.xpose.msra.mxu0 0.0
        %1462 = vmatprep.subr.mxu0 0.0
        %1463 = vmatpush1.xpose.msra.mxu0 0.0
        %1464 = vmatprep.subr.mxu0 0.0
        %1465 = vmatpush1.xpose.msra.mxu0 0.0
        %1466 = vmatprep.subr.mxu0 0.0
        %1467 = vmatpush1.xpose.msra.mxu0 0.0
        %1468 = vmatprep.subr.mxu0 0.0
        %1469 = vmatpush1.xpose.msra.mxu0 0.0
        %1470 = vmatprep.subr.mxu0 0.0
        %1471 = vmatpush1.xpose.msra.mxu0 0.0
        %1472 = vmatprep.subr.mxu0 0.0
        %1473 = vmatpush1.xpose.msra.mxu0 0.0
        %1474 = vmatprep.subr.mxu0 0.0
        %1475 = vmatpush1.xpose.msra.mxu0 0.0
        %1476 = vmatprep.subr.mxu0 0.0
        %1477 = vmatpush1.xpose.msra.mxu0 0.0
        %1478 = vmatprep.subr.mxu0 0.0
        %1479 = vmatpush1.xpose.msra.mxu0 0.0
        %1480 = vmatprep.subr.mxu0 0.0
        %1481 = vmatpush1.xpose.msra.mxu0 0.0
        %1482 = vmatprep.subr.mxu0 0.0
        %1483 = vmatpush1.xpose.msra.mxu0 0.0
        %1484 = vmatprep.subr.mxu0 0.0
        %1485 = vmatpush1.xpose.msra.mxu0 0.0
        %1486 = vmatprep.subr.mxu0 0.0
        %1487 = vmatpush1.xpose.msra.mxu0 0.0
        %1488 = vmatprep.subr.mxu0 0.0
        %1489 = vmatpush1.xpose.msra.mxu0 0.0
        %1490 = vmatprep.subr.mxu0 0.0
        %1491 = vmatpush1.xpose.msra.mxu0 0.0
        %1492 = vmatprep.subr.mxu0 0.0
        %1493 = vmatpush1.xpose.msra.mxu0 0.0
        %1494 = vmatprep.subr.mxu0 0.0
        %1495 = vmatpush1.xpose.msra.mxu0 0.0
        %1496 = vmatprep.subr.mxu0 0.0
        %1497 = vmatpush1.xpose.msra.mxu0 0.0
        %1498 = vmatprep.subr.mxu0 0.0
        %1499 = vmatpush1.xpose.msra.mxu0 0.0
        %1500 = vmatprep.subr.mxu0 0.0
        %1501 = vmatpush1.xpose.msra.mxu0 0.0
        %1502 = vmatprep.subr.mxu0 0.0
        %1503 = vmatpush1.xpose.msra.mxu0 0.0
        %1504 = vmatprep.mubr.f32.mxu0 0.0
        %1505 = vmatmul.mubr.f32.gmra.mrb[0].mxu0 %v1408
        %v1506 = vpop.f32.mrb[0].mxu0
        %v1507 = vadd.f32 %v1368, %v1506
        %v1508 = vpop.f32.mrb[0].mxu0
        %1509 = vmatprep.mubr.f32.mxu0 0.0
        %1510 = vmatmul.mubr.f32.gmra.mrb[0].mxu0 %v1410
        %v1511 = vpop.f32.mrb[0].mxu0
        %v1512 = vadd.f32 %v1369, %v1511
        %v1513 = vpop.f32.mrb[0].mxu0
        %1514 = vmatprep.mubr.f32.mxu0 0.0
        %1515 = vmatmul.mubr.f32.gmra.mrb[0].mxu0 %v1412
        %v1516 = vpop.f32.mrb[0].mxu0
        %v1517 = vadd.f32 %v1370, %v1516
        %v1518 = vpop.f32.mrb[0].mxu0
        %1519 = vmatprep.mubr.f32.mxu0 0.0
        %1520 = vmatmul.mubr.f32.gmra.mrb[0].mxu0 %v1414
        %v1521 = vpop.f32.mrb[0].mxu0
        %v1522 = vadd.f32 %v1371, %v1521
        %v1523 = vpop.f32.mrb[0].mxu0
        %1524 = vmatprep.mubr.f32.mxu0 0.0
        %1525 = vmatmul.mubr.f32.gmra.mrb[0].mxu0 %v1416
        %v1526 = vpop.f32.mrb[0].mxu0
        %v1527 = vadd.f32 %v1372, %v1526
        %v1528 = vpop.f32.mrb[0].mxu0
        %1529 = vmatprep.mubr.f32.mxu0 0.0
        %1530 = vmatmul.mubr.f32.gmra.mrb[0].mxu0 %v1418
        %v1531 = vpop.f32.mrb[0].mxu0
        %v1532 = vadd.f32 %v1373, %v1531
        %v1533 = vpop.f32.mrb[0].mxu0
        %1534 = vmatprep.mubr.f32.mxu0 0.0
        %1535 = vmatmul.mubr.f32.gmra.mrb[0].mxu0 %v1420
        %v1536 = vpop.f32.mrb[0].mxu0
        %v1537 = vadd.f32 %v1374, %v1536
        %v1538 = vpop.f32.mrb[0].mxu0
        %1539 = vmatprep.mubr.f32.mxu0 0.0
        %1540 = vmatmul.mubr.f32.gmra.mrb[0].mxu0 %v1422
        %v1541 = vpop.f32.mrb[0].mxu0
        %v1542 = vadd.f32 %v1375, %v1541
        %v1543 = vpop.f32.mrb[0].mxu0
        %1544 = vdwg.mxu0
        %v1545 = vsel %vm690, %v1507, -inf
        %1546 = vmax.xlane.f32.xlu0 %v1545
        %v1547 = vpop.xlane.xlu0 %1546
        %v1548 = vsel %vm690, %v1512, -inf
        %1549 = vmax.xlane.f32.xlu0 %v1548
        %v1550 = vpop.xlane.xlu0 %1549
        %v1551 = vsel %vm690, %v1517, -inf
        %1552 = vmax.xlane.f32.xlu0 %v1551
        %v1553 = vpop.xlane.xlu0 %1552
        %v1554 = vsel %vm690, %v1522, -inf
        %1555 = vmax.xlane.f32.xlu0 %v1554
        %v1556 = vpop.xlane.xlu0 %1555
        %v1557 = vsel %vm690, %v1527, -inf
        %1558 = vmax.xlane.f32.xlu0 %v1557
        %v1559 = vpop.xlane.xlu0 %1558
        %v1560 = vsel %vm690, %v1532, -inf
        %1561 = vmax.xlane.f32.xlu0 %v1560
        %v1562 = vpop.xlane.xlu0 %1561
        %v1563 = vsel %vm690, %v1537, -inf
        %1564 = vmax.xlane.f32.xlu0 %v1563
        %v1565 = vpop.xlane.xlu0 %1564
        %v1566 = vsel %vm690, %v1542, -inf
        %1567 = vmax.xlane.f32.xlu0 %v1566
        %v1568 = vpop.xlane.xlu0 %1567
        %v1569 = vsub.f32 %v1507, %v1547
        %v1570 = vsub.f32 %v1512, %v1550
        %v1571 = vsub.f32 %v1517, %v1553
        %v1572 = vsub.f32 %v1522, %v1556
        %v1573 = vsub.f32 %v1527, %v1559
        %v1574 = vsub.f32 %v1532, %v1562
        %v1575 = vsub.f32 %v1537, %v1565
        %v1576 = vsub.f32 %v1542, %v1568
        %v1577 = vmul.f32 %v1569, 1.442695
        %v1578 = vpow.pop %v1577
        %v1579 = vmul.f32 %v1570, 1.442695
        %v1580 = vpow.pop %v1579
        %v1581 = vmul.f32 %v1571, 1.442695
        %v1582 = vpow.pop %v1581
        %v1583 = vmul.f32 %v1572, 1.442695
        %v1584 = vpow.pop %v1583
        %v1585 = vmul.f32 %v1573, 1.442695
        %v1586 = vpow.pop %v1585
        %v1587 = vmul.f32 %v1574, 1.442695
        %v1588 = vpow.pop %v1587
        %v1589 = vmul.f32 %v1575, 1.442695
        %v1590 = vpow.pop %v1589
        %v1591 = vmul.f32 %v1576, 1.442695
        %v1592 = vpow.pop %v1591
        %v1593 = vsel %vm690, %v1578, 0.0
        %1594 = vadd.xlane.f32.xlu0 %v1593
        %v1595 = vpop.xlane.xlu0 %1594
        %v1596 = vsel %vm690, %v1580, 0.0
        %1597 = vadd.xlane.f32.xlu0 %v1596
        %v1598 = vpop.xlane.xlu0 %1597
        %v1599 = vsel %vm690, %v1582, 0.0
        %1600 = vadd.xlane.f32.xlu0 %v1599
        %v1601 = vpop.xlane.xlu0 %1600
        %v1602 = vsel %vm690, %v1584, 0.0
        %1603 = vadd.xlane.f32.xlu0 %v1602
        %v1604 = vpop.xlane.xlu0 %1603
        %v1605 = vsel %vm690, %v1586, 0.0
        %1606 = vadd.xlane.f32.xlu0 %v1605
        %v1607 = vpop.xlane.xlu0 %1606
        %v1608 = vsel %vm690, %v1588, 0.0
        %1609 = vadd.xlane.f32.xlu0 %v1608
        %v1610 = vpop.xlane.xlu0 %1609
        %v1611 = vsel %vm690, %v1590, 0.0
        %1612 = vadd.xlane.f32.xlu0 %v1611
        %v1613 = vpop.xlane.xlu0 %1612
        %v1614 = vsel %vm690, %v1592, 0.0
        %1615 = vadd.xlane.f32.xlu0 %v1614
        %v1616 = vpop.xlane.xlu0 %1615
        %v1617 = vrcp.pop %v1595
        %v1618 = vrcp.pop %v1598
        %v1619 = vrcp.pop %v1601
        %v1620 = vrcp.pop %v1604
        %v1621 = vrcp.pop %v1607
        %v1622 = vrcp.pop %v1610
        %v1623 = vrcp.pop %v1613
        %v1624 = vrcp.pop %v1616
        %v1625 = vmul.f32 %v1578, %v1617
        %v1626 = vmul.f32 %v1580, %v1618
        %v1627 = vmul.f32 %v1582, %v1619
        %v1628 = vmul.f32 %v1584, %v1620
        %v1629 = vmul.f32 %v1586, %v1621
        %v1630 = vmul.f32 %v1588, %v1622
        %v1631 = vmul.f32 %v1590, %v1623
        %v1632 = vmul.f32 %v1592, %v1624
        %1633 = vrot.lane.b32.xlu0 %v488, 48
        %v1634 = vpop.permute.xlu0 %1633
        %1635 = vrot.lane.b32.xlu0 %v489, 48
        %v1636 = vpop.permute.xlu0 %1635
        %1637 = vrot.lane.b32.xlu0 %v490, 48
        %v1638 = vpop.permute.xlu0 %1637
        %1639 = vrot.lane.b32.xlu0 %v491, 48
        %v1640 = vpop.permute.xlu0 %1639
        %1641 = vrot.lane.b32.xlu0 %v492, 48
        %v1642 = vpop.permute.xlu0 %1641
        %1643 = vrot.lane.b32.xlu0 %v493, 48
        %v1644 = vpop.permute.xlu0 %1643
        %1645 = vrot.lane.b32.xlu0 %v494, 48
        %v1646 = vpop.permute.xlu0 %1645
        %1647 = vrot.lane.b32.xlu0 %v495, 48
        %v1648 = vpop.permute.xlu0 %1647
        %v1658 = vsel %vm690, %v1625, 0
        %v1661 = vsel %vm690, %v1626, 0
        %v1664 = vsel %vm690, %v1627, 0
        %v1667 = vsel %vm690, %v1628, 0
        %v1670 = vsel %vm690, %v1629, 0
        %v1673 = vsel %vm690, %v1630, 0
        %v1676 = vsel %vm690, %v1631, 0
        %v1679 = vsel %vm690, %v1632, 0
        %1681 = vmatprep.subr.mxu0 0.0
        %1682 = vmatpush1.msra.mxu0 %v1634
        %1683 = vmatprep.subr.mxu0 0.0
        %1684 = vmatpush1.msra.mxu0 %v1636
        %1685 = vmatprep.subr.mxu0 0.0
        %1686 = vmatpush1.msra.mxu0 %v1638
        %1687 = vmatprep.subr.mxu0 0.0
        %1688 = vmatpush1.msra.mxu0 %v1640
        %1689 = vmatprep.subr.mxu0 0.0
        %1690 = vmatpush1.msra.mxu0 %v1642
        %1691 = vmatprep.subr.mxu0 0.0
        %1692 = vmatpush1.msra.mxu0 %v1644
        %1693 = vmatprep.subr.mxu0 0.0
        %1694 = vmatpush1.msra.mxu0 %v1646
        %1695 = vmatprep.subr.mxu0 0.0
        %1696 = vmatpush1.msra.mxu0 %v1648
        %1697 = vmatprep.subr.mxu0 0.0
        %1698 = vmatpush1.msra.mxu0 0.0
        %1699 = vmatprep.subr.mxu0 0.0
        %1700 = vmatpush1.msra.mxu0 0.0
        %1701 = vmatprep.subr.mxu0 0.0
        %1702 = vmatpush1.msra.mxu0 0.0
        %1703 = vmatprep.subr.mxu0 0.0
        %1704 = vmatpush1.msra.mxu0 0.0
        %1705 = vmatprep.subr.mxu0 0.0
        %1706 = vmatpush1.msra.mxu0 0.0
        %1707 = vmatprep.subr.mxu0 0.0
        %1708 = vmatpush1.msra.mxu0 0.0
        %1709 = vmatprep.subr.mxu0 0.0
        %1710 = vmatpush1.msra.mxu0 0.0
        %1711 = vmatprep.subr.mxu0 0.0
        %1712 = vmatpush1.msra.mxu0 0.0
        %1713 = vmatprep.subr.mxu0 0.0
        %1714 = vmatpush1.msra.mxu0 0.0
        %1715 = vmatprep.subr.mxu0 0.0
        %1716 = vmatpush1.msra.mxu0 0.0
        %1717 = vmatprep.subr.mxu0 0.0
        %1718 = vmatpush1.msra.mxu0 0.0
        %1719 = vmatprep.subr.mxu0 0.0
        %1720 = vmatpush1.msra.mxu0 0.0
        %1721 = vmatprep.subr.mxu0 0.0
        %1722 = vmatpush1.msra.mxu0 0.0
        %1723 = vmatprep.subr.mxu0 0.0
        %1724 = vmatpush1.msra.mxu0 0.0
        %1725 = vmatprep.subr.mxu0 0.0
        %1726 = vmatpush1.msra.mxu0 0.0
        %1727 = vmatprep.subr.mxu0 0.0
        %1728 = vmatpush1.msra.mxu0 0.0
        %1729 = vmatprep.subr.mxu0 0.0
        %1730 = vmatpush1.msra.mxu0 0.0
        %1731 = vmatprep.subr.mxu0 0.0
        %1732 = vmatpush1.msra.mxu0 0.0
        %1733 = vmatprep.subr.mxu0 0.0
        %1734 = vmatpush1.msra.mxu0 0.0
        %1735 = vmatprep.subr.mxu0 0.0
        %1736 = vmatpush1.msra.mxu0 0.0
        %1737 = vmatprep.subr.mxu0 0.0
        %1738 = vmatpush1.msra.mxu0 0.0
        %1739 = vmatprep.subr.mxu0 0.0
        %1740 = vmatpush1.msra.mxu0 0.0
        %1741 = vmatprep.subr.mxu0 0.0
        %1742 = vmatpush1.msra.mxu0 0.0
        %1743 = vmatprep.subr.mxu0 0.0
        %1744 = vmatpush1.msra.mxu0 0.0
        %1745 = vmatprep.mubr.f32.mxu0 0.0
        %1746 = vmatmul.mubr.f32.gmra.mrb[0].mxu0 %v1658
        %v1747 = vpop.f32.mrb[0].mxu0
        %v1748 = vadd.f32 0.0, %v1747
        %v1749 = vpop.f32.mrb[0].mxu0
        %1750 = vmatprep.mubr.f32.mxu0 0.0
        %1751 = vmatmul.mubr.f32.gmra.mrb[0].mxu0 %v1661
        %v1752 = vpop.f32.mrb[0].mxu0
        %v1753 = vadd.f32 0.0, %v1752
        %v1754 = vpop.f32.mrb[0].mxu0
        %1755 = vmatprep.mubr.f32.mxu0 0.0
        %1756 = vmatmul.mubr.f32.gmra.mrb[0].mxu0 %v1664
        %v1757 = vpop.f32.mrb[0].mxu0
        %v1758 = vadd.f32 0.0, %v1757
        %v1759 = vpop.f32.mrb[0].mxu0
        %1760 = vmatprep.mubr.f32.mxu0 0.0
        %1761 = vmatmul.mubr.f32.gmra.mrb[0].mxu0 %v1667
        %v1762 = vpop.f32.mrb[0].mxu0
        %v1763 = vadd.f32 0.0, %v1762
        %v1764 = vpop.f32.mrb[0].mxu0
        %1765 = vmatprep.mubr.f32.mxu0 0.0
        %1766 = vmatmul.mubr.f32.gmra.mrb[0].mxu0 %v1670
        %v1767 = vpop.f32.mrb[0].mxu0
        %v1768 = vadd.f32 0.0, %v1767
        %v1769 = vpop.f32.mrb[0].mxu0
        %1770 = vmatprep.mubr.f32.mxu0 0.0
        %1771 = vmatmul.mubr.f32.gmra.mrb[0].mxu0 %v1673
        %v1772 = vpop.f32.mrb[0].mxu0
        %v1773 = vadd.f32 0.0, %v1772
        %v1774 = vpop.f32.mrb[0].mxu0
        %1775 = vmatprep.mubr.f32.mxu0 0.0
        %1776 = vmatmul.mubr.f32.gmra.mrb[0].mxu0 %v1676
        %v1777 = vpop.f32.mrb[0].mxu0
        %v1778 = vadd.f32 0.0, %v1777
        %v1779 = vpop.f32.mrb[0].mxu0
        %1780 = vmatprep.mubr.f32.mxu0 0.0
        %1781 = vmatmul.mubr.f32.gmra.mrb[0].mxu0 %v1679
        %v1782 = vpop.f32.mrb[0].mxu0
        %v1783 = vadd.f32 0.0, %v1782
        %v1784 = vpop.f32.mrb[0].mxu0
        %1785 = vdwg.mxu0
        %s1786 = scalar_lea.vmem [#allocation4], 96
        %v1787 = vld [vmem:[%s1786] sm:$0xf]
        %v1788 = vld [vmem:[%s1786 + $0x4] sm:$0xf]
        %v1789 = vld [vmem:[%s1786 + $0x8] sm:$0xf]
        %v1790 = vld [vmem:[%s1786 + $0xc] sm:$0xf]
        %v1791 = vld [vmem:[%s1786 + $0x10] sm:$0xf]
        %v1792 = vld [vmem:[%s1786 + $0x14] sm:$0xf]
        %v1793 = vld [vmem:[%s1786 + $0x18] sm:$0xf]
        %v1794 = vld [vmem:[%s1786 + $0x1c] sm:$0xf]
        %v1795 = vunpack.c.l.bf16 %v1787
        %v1796 = vunpack.c.l.bf16 %v1788
        %v1797 = vunpack.c.l.bf16 %v1789
        %v1798 = vunpack.c.l.bf16 %v1790
        %v1799 = vunpack.c.l.bf16 %v1791
        %v1800 = vunpack.c.l.bf16 %v1792
        %v1801 = vunpack.c.l.bf16 %v1793
        %v1802 = vunpack.c.l.bf16 %v1794
        %1803 = vrot.lane.b32.xlu0 %v496, 104
        %v1804 = vpop.permute.xlu0 %1803
        %1805 = vrot.lane.b32.xlu0 %v497, 104
        %v1806 = vpop.permute.xlu0 %1805
        %1807 = vrot.lane.b32.xlu0 %v498, 104
        %v1808 = vpop.permute.xlu0 %1807
        %1809 = vrot.lane.b32.xlu0 %v499, 104
        %v1810 = vpop.permute.xlu0 %1809
        %1811 = vrot.lane.b32.xlu0 %v500, 104
        %v1812 = vpop.permute.xlu0 %1811
        %1813 = vrot.lane.b32.xlu0 %v501, 104
        %v1814 = vpop.permute.xlu0 %1813
        %1815 = vrot.lane.b32.xlu0 %v502, 104
        %v1816 = vpop.permute.xlu0 %1815
        %1817 = vrot.lane.b32.xlu0 %v503, 104
        %v1818 = vpop.permute.xlu0 %1817
        %1819 = vrot.lane.b32.xlu0 %v488, 72
        %v1820 = vpop.permute.xlu0 %1819
        %1821 = vrot.lane.b32.xlu0 %v489, 72
        %v1822 = vpop.permute.xlu0 %1821
        %1823 = vrot.lane.b32.xlu0 %v490, 72
        %v1824 = vpop.permute.xlu0 %1823
        %1825 = vrot.lane.b32.xlu0 %v491, 72
        %v1826 = vpop.permute.xlu0 %1825
        %1827 = vrot.lane.b32.xlu0 %v492, 72
        %v1828 = vpop.permute.xlu0 %1827
        %1829 = vrot.lane.b32.xlu0 %v493, 72
        %v1830 = vpop.permute.xlu0 %1829
        %1831 = vrot.lane.b32.xlu0 %v494, 72
        %v1832 = vpop.permute.xlu0 %1831
        %1833 = vrot.lane.b32.xlu0 %v495, 72
        %v1834 = vpop.permute.xlu0 %1833
        %v1835 = vsel %vm544, %v1804, 0
        %v1837 = vsel %vm544, %v1806, 0
        %v1839 = vsel %vm544, %v1808, 0
        %v1841 = vsel %vm544, %v1810, 0
        %v1843 = vsel %vm544, %v1812, 0
        %v1845 = vsel %vm544, %v1814, 0
        %v1847 = vsel %vm544, %v1816, 0
        %v1849 = vsel %vm544, %v1818, 0
        %v1851 = vsel %vm544, %v1820, 0
        %v1853 = vsel %vm544, %v1822, 0
        %v1855 = vsel %vm544, %v1824, 0
        %v1857 = vsel %vm544, %v1826, 0
        %v1859 = vsel %vm544, %v1828, 0
        %v1861 = vsel %vm544, %v1830, 0
        %v1863 = vsel %vm544, %v1832, 0
        %v1865 = vsel %vm544, %v1834, 0
        %1867 = vmatprep.subr.mxu0 0.0
        %1868 = vmatpush1.xpose.msra.mxu0 %v1851
        %1869 = vmatprep.subr.mxu0 0.0
        %1870 = vmatpush1.xpose.msra.mxu0 %v1853
        %1871 = vmatprep.subr.mxu0 0.0
        %1872 = vmatpush1.xpose.msra.mxu0 %v1855
        %1873 = vmatprep.subr.mxu0 0.0
        %1874 = vmatpush1.xpose.msra.mxu0 %v1857
        %1875 = vmatprep.subr.mxu0 0.0
        %1876 = vmatpush1.xpose.msra.mxu0 %v1859
        %1877 = vmatprep.subr.mxu0 0.0
        %1878 = vmatpush1.xpose.msra.mxu0 %v1861
        %1879 = vmatprep.subr.mxu0 0.0
        %1880 = vmatpush1.xpose.msra.mxu0 %v1863
        %1881 = vmatprep.subr.mxu0 0.0
        %1882 = vmatpush1.xpose.msra.mxu0 %v1865
        %1883 = vmatprep.subr.mxu0 0.0
        %1884 = vmatpush1.xpose.msra.mxu0 0.0
        %1885 = vmatprep.subr.mxu0 0.0
        %1886 = vmatpush1.xpose.msra.mxu0 0.0
        %1887 = vmatprep.subr.mxu0 0.0
        %1888 = vmatpush1.xpose.msra.mxu0 0.0
        %1889 = vmatprep.subr.mxu0 0.0
        %1890 = vmatpush1.xpose.msra.mxu0 0.0
        %1891 = vmatprep.subr.mxu0 0.0
        %1892 = vmatpush1.xpose.msra.mxu0 0.0
        %1893 = vmatprep.subr.mxu0 0.0
        %1894 = vmatpush1.xpose.msra.mxu0 0.0
        %1895 = vmatprep.subr.mxu0 0.0
        %1896 = vmatpush1.xpose.msra.mxu0 0.0
        %1897 = vmatprep.subr.mxu0 0.0
        %1898 = vmatpush1.xpose.msra.mxu0 0.0
        %1899 = vmatprep.subr.mxu0 0.0
        %1900 = vmatpush1.xpose.msra.mxu0 0.0
        %1901 = vmatprep.subr.mxu0 0.0
        %1902 = vmatpush1.xpose.msra.mxu0 0.0
        %1903 = vmatprep.subr.mxu0 0.0
        %1904 = vmatpush1.xpose.msra.mxu0 0.0
        %1905 = vmatprep.subr.mxu0 0.0
        %1906 = vmatpush1.xpose.msra.mxu0 0.0
        %1907 = vmatprep.subr.mxu0 0.0
        %1908 = vmatpush1.xpose.msra.mxu0 0.0
        %1909 = vmatprep.subr.mxu0 0.0
        %1910 = vmatpush1.xpose.msra.mxu0 0.0
        %1911 = vmatprep.subr.mxu0 0.0
        %1912 = vmatpush1.xpose.msra.mxu0 0.0
        %1913 = vmatprep.subr.mxu0 0.0
        %1914 = vmatpush1.xpose.msra.mxu0 0.0
        %1915 = vmatprep.subr.mxu0 0.0
        %1916 = vmatpush1.xpose.msra.mxu0 0.0
        %1917 = vmatprep.subr.mxu0 0.0
        %1918 = vmatpush1.xpose.msra.mxu0 0.0
        %1919 = vmatprep.subr.mxu0 0.0
        %1920 = vmatpush1.xpose.msra.mxu0 0.0
        %1921 = vmatprep.subr.mxu0 0.0
        %1922 = vmatpush1.xpose.msra.mxu0 0.0
        %1923 = vmatprep.subr.mxu0 0.0
        %1924 = vmatpush1.xpose.msra.mxu0 0.0
        %1925 = vmatprep.subr.mxu0 0.0
        %1926 = vmatpush1.xpose.msra.mxu0 0.0
        %1927 = vmatprep.subr.mxu0 0.0
        %1928 = vmatpush1.xpose.msra.mxu0 0.0
        %1929 = vmatprep.subr.mxu0 0.0
        %1930 = vmatpush1.xpose.msra.mxu0 0.0
        %1931 = vmatprep.mubr.f32.mxu0 0.0
        %1932 = vmatmul.mubr.f32.gmra.mrb[0].mxu0 %v1835
        %v1933 = vpop.f32.mrb[0].mxu0
        %v1934 = vadd.f32 %v1795, %v1933
        %v1935 = vpop.f32.mrb[0].mxu0
        %1936 = vmatprep.mubr.f32.mxu0 0.0
        %1937 = vmatmul.mubr.f32.gmra.mrb[0].mxu0 %v1837
        %v1938 = vpop.f32.mrb[0].mxu0
        %v1939 = vadd.f32 %v1796, %v1938
        %v1940 = vpop.f32.mrb[0].mxu0
        %1941 = vmatprep.mubr.f32.mxu0 0.0
        %1942 = vmatmul.mubr.f32.gmra.mrb[0].mxu0 %v1839
        %v1943 = vpop.f32.mrb[0].mxu0
        %v1944 = vadd.f32 %v1797, %v1943
        %v1945 = vpop.f32.mrb[0].mxu0
        %1946 = vmatprep.mubr.f32.mxu0 0.0
        %1947 = vmatmul.mubr.f32.gmra.mrb[0].mxu0 %v1841
        %v1948 = vpop.f32.mrb[0].mxu0
        %v1949 = vadd.f32 %v1798, %v1948
        %v1950 = vpop.f32.mrb[0].mxu0
        %1951 = vmatprep.mubr.f32.mxu0 0.0
        %1952 = vmatmul.mubr.f32.gmra.mrb[0].mxu0 %v1843
        %v1953 = vpop.f32.mrb[0].mxu0
        %v1954 = vadd.f32 %v1799, %v1953
        %v1955 = vpop.f32.mrb[0].mxu0
        %1956 = vmatprep.mubr.f32.mxu0 0.0
        %1957 = vmatmul.mubr.f32.gmra.mrb[0].mxu0 %v1845
        %v1958 = vpop.f32.mrb[0].mxu0
        %v1959 = vadd.f32 %v1800, %v1958
        %v1960 = vpop.f32.mrb[0].mxu0
        %1961 = vmatprep.mubr.f32.mxu0 0.0
        %1962 = vmatmul.mubr.f32.gmra.mrb[0].mxu0 %v1847
        %v1963 = vpop.f32.mrb[0].mxu0
        %v1964 = vadd.f32 %v1801, %v1963
        %v1965 = vpop.f32.mrb[0].mxu0
        %1966 = vmatprep.mubr.f32.mxu0 0.0
        %1967 = vmatmul.mubr.f32.gmra.mrb[0].mxu0 %v1849
        %v1968 = vpop.f32.mrb[0].mxu0
        %v1969 = vadd.f32 %v1802, %v1968
        %v1970 = vpop.f32.mrb[0].mxu0
        %1971 = vdwg.mxu0
        %v1972 = vsel %vm690, %v1934, -inf
        %1973 = vmax.xlane.f32.xlu0 %v1972
        %v1974 = vpop.xlane.xlu0 %1973
        %v1975 = vsel %vm690, %v1939, -inf
        %1976 = vmax.xlane.f32.xlu0 %v1975
        %v1977 = vpop.xlane.xlu0 %1976
        %v1978 = vsel %vm690, %v1944, -inf
        %1979 = vmax.xlane.f32.xlu0 %v1978
        %v1980 = vpop.xlane.xlu0 %1979
        %v1981 = vsel %vm690, %v1949, -inf
        %1982 = vmax.xlane.f32.xlu0 %v1981
        %v1983 = vpop.xlane.xlu0 %1982
        %v1984 = vsel %vm690, %v1954, -inf
        %1985 = vmax.xlane.f32.xlu0 %v1984
        %v1986 = vpop.xlane.xlu0 %1985
        %v1987 = vsel %vm690, %v1959, -inf
        %1988 = vmax.xlane.f32.xlu0 %v1987
        %v1989 = vpop.xlane.xlu0 %1988
        %v1990 = vsel %vm690, %v1964, -inf
        %1991 = vmax.xlane.f32.xlu0 %v1990
        %v1992 = vpop.xlane.xlu0 %1991
        %v1993 = vsel %vm690, %v1969, -inf
        %1994 = vmax.xlane.f32.xlu0 %v1993
        %v1995 = vpop.xlane.xlu0 %1994
        %v1996 = vsub.f32 %v1934, %v1974
        %v1997 = vsub.f32 %v1939, %v1977
        %v1998 = vsub.f32 %v1944, %v1980
        %v1999 = vsub.f32 %v1949, %v1983
        %v2000 = vsub.f32 %v1954, %v1986
        %v2001 = vsub.f32 %v1959, %v1989
        %v2002 = vsub.f32 %v1964, %v1992
        %v2003 = vsub.f32 %v1969, %v1995
        %v2004 = vmul.f32 %v1996, 1.442695
        %v2005 = vpow.pop %v2004
        %v2006 = vmul.f32 %v1997, 1.442695
        %v2007 = vpow.pop %v2006
        %v2008 = vmul.f32 %v1998, 1.442695
        %v2009 = vpow.pop %v2008
        %v2010 = vmul.f32 %v1999, 1.442695
        %v2011 = vpow.pop %v2010
        %v2012 = vmul.f32 %v2000, 1.442695
        %v2013 = vpow.pop %v2012
        %v2014 = vmul.f32 %v2001, 1.442695
        %v2015 = vpow.pop %v2014
        %v2016 = vmul.f32 %v2002, 1.442695
        %v2017 = vpow.pop %v2016
        %v2018 = vmul.f32 %v2003, 1.442695
        %v2019 = vpow.pop %v2018
        %v2020 = vsel %vm690, %v2005, 0.0
        %2021 = vadd.xlane.f32.xlu0 %v2020
        %v2022 = vpop.xlane.xlu0 %2021
        %v2023 = vsel %vm690, %v2007, 0.0
        %2024 = vadd.xlane.f32.xlu0 %v2023
        %v2025 = vpop.xlane.xlu0 %2024
        %v2026 = vsel %vm690, %v2009, 0.0
        %2027 = vadd.xlane.f32.xlu0 %v2026
        %v2028 = vpop.xlane.xlu0 %2027
        %v2029 = vsel %vm690, %v2011, 0.0
        %2030 = vadd.xlane.f32.xlu0 %v2029
        %v2031 = vpop.xlane.xlu0 %2030
        %v2032 = vsel %vm690, %v2013, 0.0
        %2033 = vadd.xlane.f32.xlu0 %v2032
        %v2034 = vpop.xlane.xlu0 %2033
        %v2035 = vsel %vm690, %v2015, 0.0
        %2036 = vadd.xlane.f32.xlu0 %v2035
        %v2037 = vpop.xlane.xlu0 %2036
        %v2038 = vsel %vm690, %v2017, 0.0
        %2039 = vadd.xlane.f32.xlu0 %v2038
        %v2040 = vpop.xlane.xlu0 %2039
        %v2041 = vsel %vm690, %v2019, 0.0
        %2042 = vadd.xlane.f32.xlu0 %v2041
        %v2043 = vpop.xlane.xlu0 %2042
        %v2044 = vrcp.pop %v2022
        %v2045 = vrcp.pop %v2025
        %v2046 = vrcp.pop %v2028
        %v2047 = vrcp.pop %v2031
        %v2048 = vrcp.pop %v2034
        %v2049 = vrcp.pop %v2037
        %v2050 = vrcp.pop %v2040
        %v2051 = vrcp.pop %v2043
        %v2052 = vmul.f32 %v2005, %v2044
        %v2053 = vmul.f32 %v2007, %v2045
        %v2054 = vmul.f32 %v2009, %v2046
        %v2055 = vmul.f32 %v2011, %v2047
        %v2056 = vmul.f32 %v2013, %v2048
        %v2057 = vmul.f32 %v2015, %v2049
        %v2058 = vmul.f32 %v2017, %v2050
        %v2059 = vmul.f32 %v2019, %v2051
        %2060 = vrot.lane.b32.xlu0 %v488, 40
        %v2061 = vpop.permute.xlu0 %2060
        %2062 = vrot.lane.b32.xlu0 %v489, 40
        %v2063 = vpop.permute.xlu0 %2062
        %2064 = vrot.lane.b32.xlu0 %v490, 40
        %v2065 = vpop.permute.xlu0 %2064
        %2066 = vrot.lane.b32.xlu0 %v491, 40
        %v2067 = vpop.permute.xlu0 %2066
        %2068 = vrot.lane.b32.xlu0 %v492, 40
        %v2069 = vpop.permute.xlu0 %2068
        %2070 = vrot.lane.b32.xlu0 %v493, 40
        %v2071 = vpop.permute.xlu0 %2070
        %2072 = vrot.lane.b32.xlu0 %v494, 40
        %v2073 = vpop.permute.xlu0 %2072
        %2074 = vrot.lane.b32.xlu0 %v495, 40
        %v2075 = vpop.permute.xlu0 %2074
        %v2085 = vsel %vm690, %v2052, 0
        %v2088 = vsel %vm690, %v2053, 0
        %v2091 = vsel %vm690, %v2054, 0
        %v2094 = vsel %vm690, %v2055, 0
        %v2097 = vsel %vm690, %v2056, 0
        %v2100 = vsel %vm690, %v2057, 0
        %v2103 = vsel %vm690, %v2058, 0
        %v2106 = vsel %vm690, %v2059, 0
        %2108 = vmatprep.subr.mxu0 0.0
        %2109 = vmatpush1.msra.mxu0 %v2061
        %2110 = vmatprep.subr.mxu0 0.0
        %2111 = vmatpush1.msra.mxu0 %v2063
        %2112 = vmatprep.subr.mxu0 0.0
        %2113 = vmatpush1.msra.mxu0 %v2065
        %2114 = vmatprep.subr.mxu0 0.0
        %2115 = vmatpush1.msra.mxu0 %v2067
        %2116 = vmatprep.subr.mxu0 0.0
        %2117 = vmatpush1.msra.mxu0 %v2069
        %2118 = vmatprep.subr.mxu0 0.0
        %2119 = vmatpush1.msra.mxu0 %v2071
        %2120 = vmatprep.subr.mxu0 0.0
        %2121 = vmatpush1.msra.mxu0 %v2073
        %2122 = vmatprep.subr.mxu0 0.0
        %2123 = vmatpush1.msra.mxu0 %v2075
        %2124 = vmatprep.subr.mxu0 0.0
        %2125 = vmatpush1.msra.mxu0 0.0
        %2126 = vmatprep.subr.mxu0 0.0
        %2127 = vmatpush1.msra.mxu0 0.0
        %2128 = vmatprep.subr.mxu0 0.0
        %2129 = vmatpush1.msra.mxu0 0.0
        %2130 = vmatprep.subr.mxu0 0.0
        %2131 = vmatpush1.msra.mxu0 0.0
        %2132 = vmatprep.subr.mxu0 0.0
        %2133 = vmatpush1.msra.mxu0 0.0
        %2134 = vmatprep.subr.mxu0 0.0
        %2135 = vmatpush1.msra.mxu0 0.0
        %2136 = vmatprep.subr.mxu0 0.0
        %2137 = vmatpush1.msra.mxu0 0.0
        %2138 = vmatprep.subr.mxu0 0.0
        %2139 = vmatpush1.msra.mxu0 0.0
        %2140 = vmatprep.subr.mxu0 0.0
        %2141 = vmatpush1.msra.mxu0 0.0
        %2142 = vmatprep.subr.mxu0 0.0
        %2143 = vmatpush1.msra.mxu0 0.0
        %2144 = vmatprep.subr.mxu0 0.0
        %2145 = vmatpush1.msra.mxu0 0.0
        %2146 = vmatprep.subr.mxu0 0.0
        %2147 = vmatpush1.msra.mxu0 0.0
        %2148 = vmatprep.subr.mxu0 0.0
        %2149 = vmatpush1.msra.mxu0 0.0
        %2150 = vmatprep.subr.mxu0 0.0
        %2151 = vmatpush1.msra.mxu0 0.0
        %2152 = vmatprep.subr.mxu0 0.0
        %2153 = vmatpush1.msra.mxu0 0.0
        %2154 = vmatprep.subr.mxu0 0.0
        %2155 = vmatpush1.msra.mxu0 0.0
        %2156 = vmatprep.subr.mxu0 0.0
        %2157 = vmatpush1.msra.mxu0 0.0
        %2158 = vmatprep.subr.mxu0 0.0
        %2159 = vmatpush1.msra.mxu0 0.0
        %2160 = vmatprep.subr.mxu0 0.0
        %2161 = vmatpush1.msra.mxu0 0.0
        %2162 = vmatprep.subr.mxu0 0.0
        %2163 = vmatpush1.msra.mxu0 0.0
        %2164 = vmatprep.subr.mxu0 0.0
        %2165 = vmatpush1.msra.mxu0 0.0
        %2166 = vmatprep.subr.mxu0 0.0
        %2167 = vmatpush1.msra.mxu0 0.0
        %2168 = vmatprep.subr.mxu0 0.0
        %2169 = vmatpush1.msra.mxu0 0.0
        %2170 = vmatprep.subr.mxu0 0.0
        %2171 = vmatpush1.msra.mxu0 0.0
        %2172 = vmatprep.mubr.f32.mxu0 0.0
        %2173 = vmatmul.mubr.f32.gmra.mrb[0].mxu0 %v2085
        %v2174 = vpop.f32.mrb[0].mxu0
        %v2175 = vadd.f32 0.0, %v2174
        %v2176 = vpop.f32.mrb[0].mxu0
        %2177 = vmatprep.mubr.f32.mxu0 0.0
        %2178 = vmatmul.mubr.f32.gmra.mrb[0].mxu0 %v2088
        %v2179 = vpop.f32.mrb[0].mxu0
        %v2180 = vadd.f32 0.0, %v2179
        %v2181 = vpop.f32.mrb[0].mxu0
        %2182 = vmatprep.mubr.f32.mxu0 0.0
        %2183 = vmatmul.mubr.f32.gmra.mrb[0].mxu0 %v2091
        %v2184 = vpop.f32.mrb[0].mxu0
        %v2185 = vadd.f32 0.0, %v2184
        %v2186 = vpop.f32.mrb[0].mxu0
        %2187 = vmatprep.mubr.f32.mxu0 0.0
        %2188 = vmatmul.mubr.f32.gmra.mrb[0].mxu0 %v2094
        %v2189 = vpop.f32.mrb[0].mxu0
        %v2190 = vadd.f32 0.0, %v2189
        %v2191 = vpop.f32.mrb[0].mxu0
        %2192 = vmatprep.mubr.f32.mxu0 0.0
        %2193 = vmatmul.mubr.f32.gmra.mrb[0].mxu0 %v2097
        %v2194 = vpop.f32.mrb[0].mxu0
        %v2195 = vadd.f32 0.0, %v2194
        %v2196 = vpop.f32.mrb[0].mxu0
        %2197 = vmatprep.mubr.f32.mxu0 0.0
        %2198 = vmatmul.mubr.f32.gmra.mrb[0].mxu0 %v2100
        %v2199 = vpop.f32.mrb[0].mxu0
        %v2200 = vadd.f32 0.0, %v2199
        %v2201 = vpop.f32.mrb[0].mxu0
        %2202 = vmatprep.mubr.f32.mxu0 0.0
        %2203 = vmatmul.mubr.f32.gmra.mrb[0].mxu0 %v2103
        %v2204 = vpop.f32.mrb[0].mxu0
        %v2205 = vadd.f32 0.0, %v2204
        %v2206 = vpop.f32.mrb[0].mxu0
        %2207 = vmatprep.mubr.f32.mxu0 0.0
        %2208 = vmatmul.mubr.f32.gmra.mrb[0].mxu0 %v2106
        %v2209 = vpop.f32.mrb[0].mxu0
        %v2210 = vadd.f32 0.0, %v2209
        %v2211 = vpop.f32.mrb[0].mxu0
        %2212 = vdwg.mxu0
        %2221 = vrot.lane.b32.xlu0 %v1321, 8
        %v2222 = vpop.permute.xlu0 %2221
        %2223 = vrot.lane.b32.xlu0 %v1326, 8
        %v2224 = vpop.permute.xlu0 %2223
        %2225 = vrot.lane.b32.xlu0 %v1331, 8
        %v2226 = vpop.permute.xlu0 %2225
        %2227 = vrot.lane.b32.xlu0 %v1336, 8
        %v2228 = vpop.permute.xlu0 %2227
        %2229 = vrot.lane.b32.xlu0 %v1341, 8
        %v2230 = vpop.permute.xlu0 %2229
        %2231 = vrot.lane.b32.xlu0 %v1346, 8
        %v2232 = vpop.permute.xlu0 %2231
        %2233 = vrot.lane.b32.xlu0 %v1351, 8
        %v2234 = vpop.permute.xlu0 %2233
        %2235 = vrot.lane.b32.xlu0 %v1356, 8
        %v2236 = vpop.permute.xlu0 %2235
        %2253 = vrot.lane.b32.xlu0 %v1748, 16
        %v2254 = vpop.permute.xlu0 %2253
        %2255 = vrot.lane.b32.xlu0 %v1753, 16
        %v2256 = vpop.permute.xlu0 %2255
        %2257 = vrot.lane.b32.xlu0 %v1758, 16
        %v2258 = vpop.permute.xlu0 %2257
        %2259 = vrot.lane.b32.xlu0 %v1763, 16
        %v2260 = vpop.permute.xlu0 %2259
        %2261 = vrot.lane.b32.xlu0 %v1768, 16
        %v2262 = vpop.permute.xlu0 %2261
        %2263 = vrot.lane.b32.xlu0 %v1773, 16
        %v2264 = vpop.permute.xlu0 %2263
        %2265 = vrot.lane.b32.xlu0 %v1778, 16
        %v2266 = vpop.permute.xlu0 %2265
        %2267 = vrot.lane.b32.xlu0 %v1783, 16
        %v2268 = vpop.permute.xlu0 %2267
        %2285 = vrot.lane.b32.xlu0 %v2175, 24
        %v2286 = vpop.permute.xlu0 %2285
        %2287 = vrot.lane.b32.xlu0 %v2180, 24
        %v2288 = vpop.permute.xlu0 %2287
        %2289 = vrot.lane.b32.xlu0 %v2185, 24
        %v2290 = vpop.permute.xlu0 %2289
        %2291 = vrot.lane.b32.xlu0 %v2190, 24
        %v2292 = vpop.permute.xlu0 %2291
        %2293 = vrot.lane.b32.xlu0 %v2195, 24
        %v2294 = vpop.permute.xlu0 %2293
        %2295 = vrot.lane.b32.xlu0 %v2200, 24
        %v2296 = vpop.permute.xlu0 %2295
        %2297 = vrot.lane.b32.xlu0 %v2205, 24
        %v2298 = vpop.permute.xlu0 %2297
        %2299 = vrot.lane.b32.xlu0 %v2210, 24
        %v2300 = vpop.permute.xlu0 %2299
        %v2309 = vsel %vm544, %v894, %v2222
        %v2310 = vsel %vm544, %v899, %v2224
        %v2311 = vsel %vm544, %v904, %v2226
        %v2312 = vsel %vm544, %v909, %v2228
        %v2313 = vsel %vm544, %v914, %v2230
        %v2314 = vsel %vm544, %v919, %v2232
        %v2315 = vsel %vm544, %v924, %v2234
        %v2316 = vsel %vm544, %v929, %v2236
        %vm2317 = vcmask 130048
        %v2318 = vsel %vm2317, %v2309, %v2254
        %v2319 = vsel %vm2317, %v2310, %v2256
        %v2320 = vsel %vm2317, %v2311, %v2258
        %v2321 = vsel %vm2317, %v2312, %v2260
        %v2322 = vsel %vm2317, %v2313, %v2262
        %v2323 = vsel %vm2317, %v2314, %v2264
        %v2324 = vsel %vm2317, %v2315, %v2266
        %v2325 = vsel %vm2317, %v2316, %v2268
        %vm2326 = vcmask 195584
        %v2327 = vsel %vm2326, %v2318, %v2286
        %v2328 = vsel %vm2326, %v2319, %v2288
        %v2329 = vsel %vm2326, %v2320, %v2290
        %v2330 = vsel %vm2326, %v2321, %v2292
        %v2331 = vsel %vm2326, %v2322, %v2294
        %v2332 = vsel %vm2326, %v2323, %v2296
        %v2333 = vsel %vm2326, %v2324, %v2298
        %v2334 = vsel %vm2326, %v2325, %v2300
        %2339 = vrot.lane.b32.xlu0 %v212, 32
        %v2340 = vpop.permute.xlu0 %2339
        %2341 = vrot.lane.b32.xlu0 %v213, 32
        %v2342 = vpop.permute.xlu0 %2341
        %2343 = vrot.lane.b32.xlu0 %v214, 32
        %v2344 = vpop.permute.xlu0 %2343
        %2345 = vrot.lane.b32.xlu0 %v215, 32
        %v2346 = vpop.permute.xlu0 %2345
        %2352 = vrot.lane.b32.xlu0 %v487, 32
        %v2353 = vpop.permute.xlu0 %2352
        %v2356 = vsel %vm225, %v2327, 0
        %v2359 = vsel %vm225, %v2328, 0
        %v2362 = vsel %vm225, %v2329, 0
        %v2365 = vsel %vm225, %v2330, 0
        %v2368 = vsel %vm225, %v2331, 0
        %v2371 = vsel %vm225, %v2332, 0
        %v2374 = vsel %vm225, %v2333, 0
        %v2377 = vsel %vm225, %v2334, 0
        %2379 = vmatprep.subr.mxu0 0.0
        %2380 = vmatpush1.msra.mxu0 %v2340
        %2381 = vmatprep.subr.mxu0 0.0
        %2382 = vmatpush1.msra.mxu0 %v2342
        %2383 = vmatprep.subr.mxu0 0.0
        %2384 = vmatpush1.msra.mxu0 %v2344
        %2385 = vmatprep.subr.mxu0 0.0
        %2386 = vmatpush1.msra.mxu0 %v2346
        %2387 = vmatprep.subr.mxu0 0.0
        %2388 = vmatpush1.msra.mxu0 0.0
        %2389 = vmatprep.subr.mxu0 0.0
        %2390 = vmatpush1.msra.mxu0 0.0
        %2391 = vmatprep.subr.mxu0 0.0
        %2392 = vmatpush1.msra.mxu0 0.0
        %2393 = vmatprep.subr.mxu0 0.0
        %2394 = vmatpush1.msra.mxu0 0.0
        %2395 = vmatprep.subr.mxu0 0.0
        %2396 = vmatpush1.msra.mxu0 0.0
        %2397 = vmatprep.subr.mxu0 0.0
        %2398 = vmatpush1.msra.mxu0 0.0
        %2399 = vmatprep.subr.mxu0 0.0
        %2400 = vmatpush1.msra.mxu0 0.0
        %2401 = vmatprep.subr.mxu0 0.0
        %2402 = vmatpush1.msra.mxu0 0.0
        %2403 = vmatprep.subr.mxu0 0.0
        %2404 = vmatpush1.msra.mxu0 0.0
        %2405 = vmatprep.subr.mxu0 0.0
        %2406 = vmatpush1.msra.mxu0 0.0
        %2407 = vmatprep.subr.mxu0 0.0
        %2408 = vmatpush1.msra.mxu0 0.0
        %2409 = vmatprep.subr.mxu0 0.0
        %2410 = vmatpush1.msra.mxu0 0.0
        %2411 = vmatprep.subr.mxu0 0.0
        %2412 = vmatpush1.msra.mxu0 0.0
        %2413 = vmatprep.subr.mxu0 0.0
        %2414 = vmatpush1.msra.mxu0 0.0
        %2415 = vmatprep.subr.mxu0 0.0
        %2416 = vmatpush1.msra.mxu0 0.0
        %2417 = vmatprep.subr.mxu0 0.0
        %2418 = vmatpush1.msra.mxu0 0.0
        %2419 = vmatprep.subr.mxu0 0.0
        %2420 = vmatpush1.msra.mxu0 0.0
        %2421 = vmatprep.subr.mxu0 0.0
        %2422 = vmatpush1.msra.mxu0 0.0
        %2423 = vmatprep.subr.mxu0 0.0
        %2424 = vmatpush1.msra.mxu0 0.0
        %2425 = vmatprep.subr.mxu0 0.0
        %2426 = vmatpush1.msra.mxu0 0.0
        %2427 = vmatprep.subr.mxu0 0.0
        %2428 = vmatpush1.msra.mxu0 0.0
        %2429 = vmatprep.subr.mxu0 0.0
        %2430 = vmatpush1.msra.mxu0 0.0
        %2431 = vmatprep.subr.mxu0 0.0
        %2432 = vmatpush1.msra.mxu0 0.0
        %2433 = vmatprep.subr.mxu0 0.0
        %2434 = vmatpush1.msra.mxu0 0.0
        %2435 = vmatprep.subr.mxu0 0.0
        %2436 = vmatpush1.msra.mxu0 0.0
        %2437 = vmatprep.subr.mxu0 0.0
        %2438 = vmatpush1.msra.mxu0 0.0
        %2439 = vmatprep.subr.mxu0 0.0
        %2440 = vmatpush1.msra.mxu0 0.0
        %2441 = vmatprep.subr.mxu0 0.0
        %2442 = vmatpush1.msra.mxu0 0.0
        %2443 = vmatprep.mubr.f32.mxu0 0.0
        %2444 = vmatmul.mubr.f32.gmra.mrb[0].mxu0 %v2356
        %v2445 = vpop.f32.mrb[0].mxu0
        %v2446 = vadd.f32 %v2353, %v2445
        %v2447 = vpop.f32.mrb[0].mxu0
        %2448 = vmatprep.mubr.f32.mxu0 0.0
        %2449 = vmatmul.mubr.f32.gmra.mrb[0].mxu0 %v2359
        %v2450 = vpop.f32.mrb[0].mxu0
        %v2451 = vadd.f32 %v2353, %v2450
        %v2452 = vpop.f32.mrb[0].mxu0
        %2453 = vmatprep.mubr.f32.mxu0 0.0
        %2454 = vmatmul.mubr.f32.gmra.mrb[0].mxu0 %v2362
        %v2455 = vpop.f32.mrb[0].mxu0
        %v2456 = vadd.f32 %v2353, %v2455
        %v2457 = vpop.f32.mrb[0].mxu0
        %2458 = vmatprep.mubr.f32.mxu0 0.0
        %2459 = vmatmul.mubr.f32.gmra.mrb[0].mxu0 %v2365
        %v2460 = vpop.f32.mrb[0].mxu0
        %v2461 = vadd.f32 %v2353, %v2460
        %v2462 = vpop.f32.mrb[0].mxu0
        %2463 = vmatprep.mubr.f32.mxu0 0.0
        %2464 = vmatmul.mubr.f32.gmra.mrb[0].mxu0 %v2368
        %v2465 = vpop.f32.mrb[0].mxu0
        %v2466 = vadd.f32 %v2353, %v2465
        %v2467 = vpop.f32.mrb[0].mxu0
        %2468 = vmatprep.mubr.f32.mxu0 0.0
        %2469 = vmatmul.mubr.f32.gmra.mrb[0].mxu0 %v2371
        %v2470 = vpop.f32.mrb[0].mxu0
        %v2471 = vadd.f32 %v2353, %v2470
        %v2472 = vpop.f32.mrb[0].mxu0
        %2473 = vmatprep.mubr.f32.mxu0 0.0
        %2474 = vmatmul.mubr.f32.gmra.mrb[0].mxu0 %v2374
        %v2475 = vpop.f32.mrb[0].mxu0
        %v2476 = vadd.f32 %v2353, %v2475
        %v2477 = vpop.f32.mrb[0].mxu0
        %2478 = vmatprep.mubr.f32.mxu0 0.0
        %2479 = vmatmul.mubr.f32.gmra.mrb[0].mxu0 %v2377
        %v2480 = vpop.f32.mrb[0].mxu0
        %v2481 = vadd.f32 %v2353, %v2480
        %v2482 = vpop.f32.mrb[0].mxu0
        %2483 = vdwg.mxu0
        %v2484 = vadd.f32 %v204, %v2446
        %v2485 = vadd.f32 %v205, %v2451
        %v2486 = vadd.f32 %v206, %v2456
        %v2487 = vadd.f32 %v207, %v2461
        %v2488 = vadd.f32 %v208, %v2466
        %v2489 = vadd.f32 %v209, %v2471
        %v2490 = vadd.f32 %v210, %v2476
        %v2491 = vadd.f32 %v211, %v2481
        %v2492 = vsel %vm225, %v2484, 0.0
        %2493 = vadd.xlane.f32.xlu0 %v2492
        %v2494 = vpop.xlane.xlu0 %2493
        %v2495 = vsel %vm225, %v2485, 0.0
        %2496 = vadd.xlane.f32.xlu0 %v2495
        %v2497 = vpop.xlane.xlu0 %2496
        %v2498 = vsel %vm225, %v2486, 0.0
        %2499 = vadd.xlane.f32.xlu0 %v2498
        %v2500 = vpop.xlane.xlu0 %2499
        %v2501 = vsel %vm225, %v2487, 0.0
        %2502 = vadd.xlane.f32.xlu0 %v2501
        %v2503 = vpop.xlane.xlu0 %2502
        %v2504 = vsel %vm225, %v2488, 0.0
        %2505 = vadd.xlane.f32.xlu0 %v2504
        %v2506 = vpop.xlane.xlu0 %2505
        %v2507 = vsel %vm225, %v2489, 0.0
        %2508 = vadd.xlane.f32.xlu0 %v2507
        %v2509 = vpop.xlane.xlu0 %2508
        %v2510 = vsel %vm225, %v2490, 0.0
        %2511 = vadd.xlane.f32.xlu0 %v2510
        %v2512 = vpop.xlane.xlu0 %2511
        %v2513 = vsel %vm225, %v2491, 0.0
        %2514 = vadd.xlane.f32.xlu0 %v2513
        %v2515 = vpop.xlane.xlu0 %2514
        %v2516 = vmul.f32 %v2494, %v250
        %v2517 = vmul.f32 %v2497, %v250
        %v2518 = vmul.f32 %v2500, %v250
        %v2519 = vmul.f32 %v2503, %v250
        %v2520 = vmul.f32 %v2506, %v250
        %v2521 = vmul.f32 %v2509, %v250
        %v2522 = vmul.f32 %v2512, %v250
        %v2523 = vmul.f32 %v2515, %v250
        %v2524 = vsub.f32 %v2484, %v2516
        %v2525 = vsub.f32 %v2485, %v2517
        %v2526 = vsub.f32 %v2486, %v2518
        %v2527 = vsub.f32 %v2487, %v2519
        %v2528 = vsub.f32 %v2488, %v2520
        %v2529 = vsub.f32 %v2489, %v2521
        %v2530 = vsub.f32 %v2490, %v2522
        %v2531 = vsub.f32 %v2491, %v2523
        %v2532 = vmul.f32 %v2524, %v2524
        %v2533 = vmul.f32 %v2525, %v2525
        %v2534 = vmul.f32 %v2526, %v2526
        %v2535 = vmul.f32 %v2527, %v2527
        %v2536 = vmul.f32 %v2528, %v2528
        %v2537 = vmul.f32 %v2529, %v2529
        %v2538 = vmul.f32 %v2530, %v2530
        %v2539 = vmul.f32 %v2531, %v2531
        %v2540 = vsel %vm225, %v2532, 0.0
        %2541 = vadd.xlane.f32.xlu0 %v2540
        %v2542 = vpop.xlane.xlu0 %2541
        %v2543 = vsel %vm225, %v2533, 0.0
        %2544 = vadd.xlane.f32.xlu0 %v2543
        %v2545 = vpop.xlane.xlu0 %2544
        %v2546 = vsel %vm225, %v2534, 0.0
        %2547 = vadd.xlane.f32.xlu0 %v2546
        %v2548 = vpop.xlane.xlu0 %2547
        %v2549 = vsel %vm225, %v2535, 0.0
        %2550 = vadd.xlane.f32.xlu0 %v2549
        %v2551 = vpop.xlane.xlu0 %2550
        %v2552 = vsel %vm225, %v2536, 0.0
        %2553 = vadd.xlane.f32.xlu0 %v2552
        %v2554 = vpop.xlane.xlu0 %2553
        %v2555 = vsel %vm225, %v2537, 0.0
        %2556 = vadd.xlane.f32.xlu0 %v2555
        %v2557 = vpop.xlane.xlu0 %2556
        %v2558 = vsel %vm225, %v2538, 0.0
        %2559 = vadd.xlane.f32.xlu0 %v2558
        %v2560 = vpop.xlane.xlu0 %2559
        %v2561 = vsel %vm225, %v2539, 0.0
        %2562 = vadd.xlane.f32.xlu0 %v2561
        %v2563 = vpop.xlane.xlu0 %2562
        %v2564 = vmul.f32 %v2542, %v250
        %v2565 = vmul.f32 %v2545, %v250
        %v2566 = vmul.f32 %v2548, %v250
        %v2567 = vmul.f32 %v2551, %v250
        %v2568 = vmul.f32 %v2554, %v250
        %v2569 = vmul.f32 %v2557, %v250
        %v2570 = vmul.f32 %v2560, %v250
        %v2571 = vmul.f32 %v2563, %v250
        %v2572 = vadd.f32 %v2564, 1e-05
        %v2573 = vadd.f32 %v2565, 1e-05
        %v2574 = vadd.f32 %v2566, 1e-05
        %v2575 = vadd.f32 %v2567, 1e-05
        %v2576 = vadd.f32 %v2568, 1e-05
        %v2577 = vadd.f32 %v2569, 1e-05
        %v2578 = vadd.f32 %v2570, 1e-05
        %v2579 = vadd.f32 %v2571, 1e-05
        %v2580 = vrsqrt.pop %v2572
        %v2581 = vrsqrt.pop %v2573
        %v2582 = vrsqrt.pop %v2574
        %v2583 = vrsqrt.pop %v2575
        %v2584 = vrsqrt.pop %v2576
        %v2585 = vrsqrt.pop %v2577
        %v2586 = vrsqrt.pop %v2578
        %v2587 = vrsqrt.pop %v2579
        %v2588 = vmul.f32 %v2524, %v2580
        %v2589 = vmul.f32 %v2525, %v2581
        %v2590 = vmul.f32 %v2526, %v2582
        %v2591 = vmul.f32 %v2527, %v2583
        %v2592 = vmul.f32 %v2528, %v2584
        %v2593 = vmul.f32 %v2529, %v2585
        %v2594 = vmul.f32 %v2530, %v2586
        %v2595 = vmul.f32 %v2531, %v2587
        %2596 = vrot.lane.b32.xlu0 %v334, 64
        %v2597 = vpop.permute.xlu0 %2596
        %v2599 = vmul.f32 %v2588, %v2597
        %v2600 = vmul.f32 %v2589, %v2597
        %v2601 = vmul.f32 %v2590, %v2597
        %v2602 = vmul.f32 %v2591, %v2597
        %v2603 = vmul.f32 %v2592, %v2597
        %v2604 = vmul.f32 %v2593, %v2597
        %v2605 = vmul.f32 %v2594, %v2597
        %v2606 = vmul.f32 %v2595, %v2597
        %2607 = vrot.lane.b32.xlu0 %v334, 32
        %v2608 = vpop.permute.xlu0 %2607
        %v2610 = vadd.f32 %v2599, %v2608
        %v2611 = vadd.f32 %v2600, %v2608
        %v2612 = vadd.f32 %v2601, %v2608
        %v2613 = vadd.f32 %v2602, %v2608
        %v2614 = vadd.f32 %v2603, %v2608
        %v2615 = vadd.f32 %v2604, %v2608
        %v2616 = vadd.f32 %v2605, %v2608
        %v2617 = vadd.f32 %v2606, %v2608
        %v2618 = vlaneseq
        %v2619 = vshrl.u32 %v2618, 7
        %v2620 = vsub.s32 2, %v2619
        %v2621 = vrot.slane %v224, %v2620
        %v2623 = vsel %vm225, %v2610, 0
        %v2626 = vsel %vm225, %v2611, 0
        %v2629 = vsel %vm225, %v2612, 0
        %v2632 = vsel %vm225, %v2613, 0
        %v2635 = vsel %vm225, %v2614, 0
        %v2638 = vsel %vm225, %v2615, 0
        %v2641 = vsel %vm225, %v2616, 0
        %v2644 = vsel %vm225, %v2617, 0
        %2646 = vmatprep.subr.mxu0 0.0
        %2647 = vmatpush1.msra.mxu0 %v216
        %2648 = vmatprep.subr.mxu0 0.0
        %2649 = vmatpush1.msra.mxu0 %v217
        %2650 = vmatprep.subr.mxu0 0.0
        %2651 = vmatpush1.msra.mxu0 %v218
        %2652 = vmatprep.subr.mxu0 0.0
        %2653 = vmatpush1.msra.mxu0 %v219
        %2654 = vmatprep.subr.mxu0 0.0
        %2655 = vmatpush1.msra.mxu0 0.0
        %2656 = vmatprep.subr.mxu0 0.0
        %2657 = vmatpush1.msra.mxu0 0.0
        %2658 = vmatprep.subr.mxu0 0.0
        %2659 = vmatpush1.msra.mxu0 0.0
        %2660 = vmatprep.subr.mxu0 0.0
        %2661 = vmatpush1.msra.mxu0 0.0
        %2662 = vmatprep.subr.mxu0 0.0
        %2663 = vmatpush1.msra.mxu0 0.0
        %2664 = vmatprep.subr.mxu0 0.0
        %2665 = vmatpush1.msra.mxu0 0.0
        %2666 = vmatprep.subr.mxu0 0.0
        %2667 = vmatpush1.msra.mxu0 0.0
        %2668 = vmatprep.subr.mxu0 0.0
        %2669 = vmatpush1.msra.mxu0 0.0
        %2670 = vmatprep.subr.mxu0 0.0
        %2671 = vmatpush1.msra.mxu0 0.0
        %2672 = vmatprep.subr.mxu0 0.0
        %2673 = vmatpush1.msra.mxu0 0.0
        %2674 = vmatprep.subr.mxu0 0.0
        %2675 = vmatpush1.msra.mxu0 0.0
        %2676 = vmatprep.subr.mxu0 0.0
        %2677 = vmatpush1.msra.mxu0 0.0
        %2678 = vmatprep.subr.mxu0 0.0
        %2679 = vmatpush1.msra.mxu0 0.0
        %2680 = vmatprep.subr.mxu0 0.0
        %2681 = vmatpush1.msra.mxu0 0.0
        %2682 = vmatprep.subr.mxu0 0.0
        %2683 = vmatpush1.msra.mxu0 0.0
        %2684 = vmatprep.subr.mxu0 0.0
        %2685 = vmatpush1.msra.mxu0 0.0
        %2686 = vmatprep.subr.mxu0 0.0
        %2687 = vmatpush1.msra.mxu0 0.0
        %2688 = vmatprep.subr.mxu0 0.0
        %2689 = vmatpush1.msra.mxu0 0.0
        %2690 = vmatprep.subr.mxu0 0.0
        %2691 = vmatpush1.msra.mxu0 0.0
        %2692 = vmatprep.subr.mxu0 0.0
        %2693 = vmatpush1.msra.mxu0 0.0
        %2694 = vmatprep.subr.mxu0 0.0
        %2695 = vmatpush1.msra.mxu0 0.0
        %2696 = vmatprep.subr.mxu0 0.0
        %2697 = vmatpush1.msra.mxu0 0.0
        %2698 = vmatprep.subr.mxu0 0.0
        %2699 = vmatpush1.msra.mxu0 0.0
        %2700 = vmatprep.subr.mxu0 0.0
        %2701 = vmatpush1.msra.mxu0 0.0
        %2702 = vmatprep.subr.mxu0 0.0
        %2703 = vmatpush1.msra.mxu0 0.0
        %2704 = vmatprep.subr.mxu0 0.0
        %2705 = vmatpush1.msra.mxu0 0.0
        %2706 = vmatprep.subr.mxu0 0.0
        %2707 = vmatpush1.msra.mxu0 0.0
        %2708 = vmatprep.subr.mxu0 0.0
        %2709 = vmatpush1.msra.mxu0 0.0
        %2710 = vmatprep.mubr.f32.mxu0 0.0
        %2711 = vmatmul.mubr.f32.gmra.mrb[0].mxu0 %v2623
        %v2712 = vpop.f32.mrb[0].mxu0
        %v2713 = vadd.f32 %v2621, %v2712
        %v2714 = vpop.f32.mrb[0].mxu0
        %2715 = vmatprep.mubr.f32.mxu0 0.0
        %2716 = vmatmul.mubr.f32.gmra.mrb[0].mxu0 %v2626
        %v2717 = vpop.f32.mrb[0].mxu0
        %v2718 = vadd.f32 %v2621, %v2717
        %v2719 = vpop.f32.mrb[0].mxu0
        %2720 = vmatprep.mubr.f32.mxu0 0.0
        %2721 = vmatmul.mubr.f32.gmra.mrb[0].mxu0 %v2629
        %v2722 = vpop.f32.mrb[0].mxu0
        %v2723 = vadd.f32 %v2621, %v2722
        %v2724 = vpop.f32.mrb[0].mxu0
        %2725 = vmatprep.mubr.f32.mxu0 0.0
        %2726 = vmatmul.mubr.f32.gmra.mrb[0].mxu0 %v2632
        %v2727 = vpop.f32.mrb[0].mxu0
        %v2728 = vadd.f32 %v2621, %v2727
        %v2729 = vpop.f32.mrb[0].mxu0
        %2730 = vmatprep.mubr.f32.mxu0 0.0
        %2731 = vmatmul.mubr.f32.gmra.mrb[0].mxu0 %v2635
        %v2732 = vpop.f32.mrb[0].mxu0
        %v2733 = vadd.f32 %v2621, %v2732
        %v2734 = vpop.f32.mrb[0].mxu0
        %2735 = vmatprep.mubr.f32.mxu0 0.0
        %2736 = vmatmul.mubr.f32.gmra.mrb[0].mxu0 %v2638
        %v2737 = vpop.f32.mrb[0].mxu0
        %v2738 = vadd.f32 %v2621, %v2737
        %v2739 = vpop.f32.mrb[0].mxu0
        %2740 = vmatprep.mubr.f32.mxu0 0.0
        %2741 = vmatmul.mubr.f32.gmra.mrb[0].mxu0 %v2641
        %v2742 = vpop.f32.mrb[0].mxu0
        %v2743 = vadd.f32 %v2621, %v2742
        %v2744 = vpop.f32.mrb[0].mxu0
        %2745 = vmatprep.mubr.f32.mxu0 0.0
        %2746 = vmatmul.mubr.f32.gmra.mrb[0].mxu0 %v2644
        %v2747 = vpop.f32.mrb[0].mxu0
        %v2748 = vadd.f32 %v2621, %v2747
        %v2749 = vpop.f32.mrb[0].mxu0
        %2750 = vdwg.mxu0
        %v2751 = vmul.f32 %v2713, 0.5
        %v2752 = vmul.f32 %v2718, 0.5
        %v2753 = vmul.f32 %v2723, 0.5
        %v2754 = vmul.f32 %v2728, 0.5
        %v2755 = vmul.f32 %v2733, 0.5
        %v2756 = vmul.f32 %v2738, 0.5
        %v2757 = vmul.f32 %v2743, 0.5
        %v2758 = vmul.f32 %v2748, 0.5
        %v2759 = vmul.f32 %v2713, 0.70710677
        %v2760 = vmul.f32 %v2718, 0.70710677
        %v2761 = vmul.f32 %v2723, 0.70710677
        %v2762 = vmul.f32 %v2728, 0.70710677
        %v2763 = vmul.f32 %v2733, 0.70710677
        %v2764 = vmul.f32 %v2738, 0.70710677
        %v2765 = vmul.f32 %v2743, 0.70710677
        %v2766 = vmul.f32 %v2748, 0.70710677
        %v2767 = verf.f32.pop %v2759
        %v2768 = verf.f32.pop %v2760
        %v2769 = verf.f32.pop %v2761
        %v2770 = verf.f32.pop %v2762
        %v2771 = verf.f32.pop %v2763
        %v2772 = verf.f32.pop %v2764
        %v2773 = verf.f32.pop %v2765
        %v2774 = verf.f32.pop %v2766
        %v2775 = vadd.f32 %v2767, 1.0
        %v2776 = vadd.f32 %v2768, 1.0
        %v2777 = vadd.f32 %v2769, 1.0
        %v2778 = vadd.f32 %v2770, 1.0
        %v2779 = vadd.f32 %v2771, 1.0
        %v2780 = vadd.f32 %v2772, 1.0
        %v2781 = vadd.f32 %v2773, 1.0
        %v2782 = vadd.f32 %v2774, 1.0
        %v2783 = vmul.f32 %v2751, %v2775
        %v2784 = vmul.f32 %v2752, %v2776
        %v2785 = vmul.f32 %v2753, %v2777
        %v2786 = vmul.f32 %v2754, %v2778
        %v2787 = vmul.f32 %v2755, %v2779
        %v2788 = vmul.f32 %v2756, %v2780
        %v2789 = vmul.f32 %v2757, %v2781
        %v2790 = vmul.f32 %v2758, %v2782
        %v2791 = vlaneseq
        %v2792 = vshrl.u32 %v2791, 7
        %v2793 = vsub.s32 3, %v2792
        %v2794 = vrot.slane %v224, %v2793
        %2795 = vmatprep.subr.mxu0 0.0
        %2796 = vmatpush1.xpose.msra.mxu0 %v220
        %2797 = vmatprep.subr.mxu0 0.0
        %2798 = vmatpush1.xpose.msra.mxu0 %v221
        %2799 = vmatprep.subr.mxu0 0.0
        %2800 = vmatpush1.xpose.msra.mxu0 %v222
        %2801 = vmatprep.subr.mxu0 0.0
        %2802 = vmatpush1.xpose.msra.mxu0 %v223
        %2803 = vmatprep.subr.mxu0 0.0
        %2804 = vmatpush1.xpose.msra.mxu0 0.0
        %2805 = vmatprep.subr.mxu0 0.0
        %2806 = vmatpush1.xpose.msra.mxu0 0.0
        %2807 = vmatprep.subr.mxu0 0.0
        %2808 = vmatpush1.xpose.msra.mxu0 0.0
        %2809 = vmatprep.subr.mxu0 0.0
        %2810 = vmatpush1.xpose.msra.mxu0 0.0
        %2811 = vmatprep.subr.mxu0 0.0
        %2812 = vmatpush1.xpose.msra.mxu0 0.0
        %2813 = vmatprep.subr.mxu0 0.0
        %2814 = vmatpush1.xpose.msra.mxu0 0.0
        %2815 = vmatprep.subr.mxu0 0.0
        %2816 = vmatpush1.xpose.msra.mxu0 0.0
        %2817 = vmatprep.subr.mxu0 0.0
        %2818 = vmatpush1.xpose.msra.mxu0 0.0
        %2819 = vmatprep.subr.mxu0 0.0
        %2820 = vmatpush1.xpose.msra.mxu0 0.0
        %2821 = vmatprep.subr.mxu0 0.0
        %2822 = vmatpush1.xpose.msra.mxu0 0.0
        %2823 = vmatprep.subr.mxu0 0.0
        %2824 = vmatpush1.xpose.msra.mxu0 0.0
        %2825 = vmatprep.subr.mxu0 0.0
        %2826 = vmatpush1.xpose.msra.mxu0 0.0
        %2827 = vmatprep.subr.mxu0 0.0
        %2828 = vmatpush1.xpose.msra.mxu0 0.0
        %2829 = vmatprep.subr.mxu0 0.0
        %2830 = vmatpush1.xpose.msra.mxu0 0.0
        %2831 = vmatprep.subr.mxu0 0.0
        %2832 = vmatpush1.xpose.msra.mxu0 0.0
        %2833 = vmatprep.subr.mxu0 0.0
        %2834 = vmatpush1.xpose.msra.mxu0 0.0
        %2835 = vmatprep.subr.mxu0 0.0
        %2836 = vmatpush1.xpose.msra.mxu0 0.0
        %2837 = vmatprep.subr.mxu0 0.0
        %2838 = vmatpush1.xpose.msra.mxu0 0.0
        %2839 = vmatprep.subr.mxu0 0.0
        %2840 = vmatpush1.xpose.msra.mxu0 0.0
        %2841 = vmatprep.subr.mxu0 0.0
        %2842 = vmatpush1.xpose.msra.mxu0 0.0
        %2843 = vmatprep.subr.mxu0 0.0
        %2844 = vmatpush1.xpose.msra.mxu0 0.0
        %2845 = vmatprep.subr.mxu0 0.0
        %2846 = vmatpush1.xpose.msra.mxu0 0.0
        %2847 = vmatprep.subr.mxu0 0.0
        %2848 = vmatpush1.xpose.msra.mxu0 0.0
        %2849 = vmatprep.subr.mxu0 0.0
        %2850 = vmatpush1.xpose.msra.mxu0 0.0
        %2851 = vmatprep.subr.mxu0 0.0
        %2852 = vmatpush1.xpose.msra.mxu0 0.0
        %2853 = vmatprep.subr.mxu0 0.0
        %2854 = vmatpush1.xpose.msra.mxu0 0.0
        %2855 = vmatprep.subr.mxu0 0.0
        %2856 = vmatpush1.xpose.msra.mxu0 0.0
        %2857 = vmatprep.subr.mxu0 0.0
        %2858 = vmatpush1.xpose.msra.mxu0 0.0
        %2859 = vmatprep.mubr.f32.mxu0 0.0
        %2860 = vmatmul.mubr.f32.gmra.mrb[0].mxu0 %v2783
        %v2861 = vpop.f32.mrb[0].mxu0
        %v2862 = vadd.f32 %v2794, %v2861
        %v2863 = vpop.f32.mrb[0].mxu0
        %2864 = vmatprep.mubr.f32.mxu0 0.0
        %2865 = vmatmul.mubr.f32.gmra.mrb[0].mxu0 %v2784
        %v2866 = vpop.f32.mrb[0].mxu0
        %v2867 = vadd.f32 %v2794, %v2866
        %v2868 = vpop.f32.mrb[0].mxu0
        %2869 = vmatprep.mubr.f32.mxu0 0.0
        %2870 = vmatmul.mubr.f32.gmra.mrb[0].mxu0 %v2785
        %v2871 = vpop.f32.mrb[0].mxu0
        %v2872 = vadd.f32 %v2794, %v2871
        %v2873 = vpop.f32.mrb[0].mxu0
        %2874 = vmatprep.mubr.f32.mxu0 0.0
        %2875 = vmatmul.mubr.f32.gmra.mrb[0].mxu0 %v2786
        %v2876 = vpop.f32.mrb[0].mxu0
        %v2877 = vadd.f32 %v2794, %v2876
        %v2878 = vpop.f32.mrb[0].mxu0
        %2879 = vmatprep.mubr.f32.mxu0 0.0
        %2880 = vmatmul.mubr.f32.gmra.mrb[0].mxu0 %v2787
        %v2881 = vpop.f32.mrb[0].mxu0
        %v2882 = vadd.f32 %v2794, %v2881
        %v2883 = vpop.f32.mrb[0].mxu0
        %2884 = vmatprep.mubr.f32.mxu0 0.0
        %2885 = vmatmul.mubr.f32.gmra.mrb[0].mxu0 %v2788
        %v2886 = vpop.f32.mrb[0].mxu0
        %v2887 = vadd.f32 %v2794, %v2886
        %v2888 = vpop.f32.mrb[0].mxu0
        %2889 = vmatprep.mubr.f32.mxu0 0.0
        %2890 = vmatmul.mubr.f32.gmra.mrb[0].mxu0 %v2789
        %v2891 = vpop.f32.mrb[0].mxu0
        %v2892 = vadd.f32 %v2794, %v2891
        %v2893 = vpop.f32.mrb[0].mxu0
        %2894 = vmatprep.mubr.f32.mxu0 0.0
        %2895 = vmatmul.mubr.f32.gmra.mrb[0].mxu0 %v2790
        %v2896 = vpop.f32.mrb[0].mxu0
        %v2897 = vadd.f32 %v2794, %v2896
        %v2898 = vpop.f32.mrb[0].mxu0
        %2899 = vdwg.mxu0
        %v2900 = vadd.f32 %v2484, %v2862
        %v2901 = vadd.f32 %v2485, %v2867
        %v2902 = vadd.f32 %v2486, %v2872
        %v2903 = vadd.f32 %v2487, %v2877
        %v2904 = vadd.f32 %v2488, %v2882
        %v2905 = vadd.f32 %v2489, %v2887
        %v2906 = vadd.f32 %v2490, %v2892
        %v2907 = vadd.f32 %v2491, %v2897
        %s2908 = scalar_lea.vmem [#allocation2], 104
        %v2909 = vld [vmem:[%s2908] sm:$0xff]
        %v2910 = vld [vmem:[%s2908 + $0x8] sm:$0xff]
        %v2911 = vld [vmem:[%s2908 + $0x10] sm:$0xff]
        %v2912 = vld [vmem:[%s2908 + $0x18] sm:$0xff]
        %v2913 = vld [vmem:[%s2908 + $0x20] sm:$0xff]
        %v2914 = vld [vmem:[%s2908 + $0x28] sm:$0xff]
        %v2915 = vld [vmem:[%s2908 + $0x30] sm:$0xff]
        %v2916 = vld [vmem:[%s2908 + $0x38] sm:$0xff]
        %v2917 = vld [vmem:[%s2908 + $0x40] sm:$0xff]
        %v2918 = vld [vmem:[%s2908 + $0x48] sm:$0xff]
        %v2919 = vld [vmem:[%s2908 + $0x50] sm:$0xff]
        %v2920 = vld [vmem:[%s2908 + $0x58] sm:$0xff]
        %v2921 = vld [vmem:[%s2908 + $0x60] sm:$0xff]
        %v2922 = vsel %vm225, %v2900, 0.0
        %2923 = vadd.xlane.f32.xlu0 %v2922
        %v2924 = vpop.xlane.xlu0 %2923
        %v2925 = vsel %vm225, %v2901, 0.0
        %2926 = vadd.xlane.f32.xlu0 %v2925
        %v2927 = vpop.xlane.xlu0 %2926
        %v2928 = vsel %vm225, %v2902, 0.0
        %2929 = vadd.xlane.f32.xlu0 %v2928
        %v2930 = vpop.xlane.xlu0 %2929
        %v2931 = vsel %vm225, %v2903, 0.0
        %2932 = vadd.xlane.f32.xlu0 %v2931
        %v2933 = vpop.xlane.xlu0 %2932
        %v2934 = vsel %vm225, %v2904, 0.0
        %2935 = vadd.xlane.f32.xlu0 %v2934
        %v2936 = vpop.xlane.xlu0 %2935
        %v2937 = vsel %vm225, %v2905, 0.0
        %2938 = vadd.xlane.f32.xlu0 %v2937
        %v2939 = vpop.xlane.xlu0 %2938
        %v2940 = vsel %vm225, %v2906, 0.0
        %2941 = vadd.xlane.f32.xlu0 %v2940
        %v2942 = vpop.xlane.xlu0 %2941
        %v2943 = vsel %vm225, %v2907, 0.0
        %2944 = vadd.xlane.f32.xlu0 %v2943
        %v2945 = vpop.xlane.xlu0 %2944
        %v2946 = vmul.f32 %v2924, %v250
        %v2947 = vmul.f32 %v2927, %v250
        %v2948 = vmul.f32 %v2930, %v250
        %v2949 = vmul.f32 %v2933, %v250
        %v2950 = vmul.f32 %v2936, %v250
        %v2951 = vmul.f32 %v2939, %v250
        %v2952 = vmul.f32 %v2942, %v250
        %v2953 = vmul.f32 %v2945, %v250
        %v2954 = vsub.f32 %v2900, %v2946
        %v2955 = vsub.f32 %v2901, %v2947
        %v2956 = vsub.f32 %v2902, %v2948
        %v2957 = vsub.f32 %v2903, %v2949
        %v2958 = vsub.f32 %v2904, %v2950
        %v2959 = vsub.f32 %v2905, %v2951
        %v2960 = vsub.f32 %v2906, %v2952
        %v2961 = vsub.f32 %v2907, %v2953
        %v2962 = vmul.f32 %v2954, %v2954
        %v2963 = vmul.f32 %v2955, %v2955
        %v2964 = vmul.f32 %v2956, %v2956
        %v2965 = vmul.f32 %v2957, %v2957
        %v2966 = vmul.f32 %v2958, %v2958
        %v2967 = vmul.f32 %v2959, %v2959
        %v2968 = vmul.f32 %v2960, %v2960
        %v2969 = vmul.f32 %v2961, %v2961
        %v2970 = vsel %vm225, %v2962, 0.0
        %2971 = vadd.xlane.f32.xlu0 %v2970
        %v2972 = vpop.xlane.xlu0 %2971
        %v2973 = vsel %vm225, %v2963, 0.0
        %2974 = vadd.xlane.f32.xlu0 %v2973
        %v2975 = vpop.xlane.xlu0 %2974
        %v2976 = vsel %vm225, %v2964, 0.0
        %2977 = vadd.xlane.f32.xlu0 %v2976
        %v2978 = vpop.xlane.xlu0 %2977
        %v2979 = vsel %vm225, %v2965, 0.0
        %2980 = vadd.xlane.f32.xlu0 %v2979
        %v2981 = vpop.xlane.xlu0 %2980
        %v2982 = vsel %vm225, %v2966, 0.0
        %2983 = vadd.xlane.f32.xlu0 %v2982
        %v2984 = vpop.xlane.xlu0 %2983
        %v2985 = vsel %vm225, %v2967, 0.0
        %2986 = vadd.xlane.f32.xlu0 %v2985
        %v2987 = vpop.xlane.xlu0 %2986
        %v2988 = vsel %vm225, %v2968, 0.0
        %2989 = vadd.xlane.f32.xlu0 %v2988
        %v2990 = vpop.xlane.xlu0 %2989
        %v2991 = vsel %vm225, %v2969, 0.0
        %2992 = vadd.xlane.f32.xlu0 %v2991
        %v2993 = vpop.xlane.xlu0 %2992
        %v2994 = vmul.f32 %v2972, %v250
        %v2995 = vmul.f32 %v2975, %v250
        %v2996 = vmul.f32 %v2978, %v250
        %v2997 = vmul.f32 %v2981, %v250
        %v2998 = vmul.f32 %v2984, %v250
        %v2999 = vmul.f32 %v2987, %v250
        %v3000 = vmul.f32 %v2990, %v250
        %v3001 = vmul.f32 %v2993, %v250
        %v3002 = vadd.f32 %v2994, 1e-05
        %v3003 = vadd.f32 %v2995, 1e-05
        %v3004 = vadd.f32 %v2996, 1e-05
        %v3005 = vadd.f32 %v2997, 1e-05
        %v3006 = vadd.f32 %v2998, 1e-05
        %v3007 = vadd.f32 %v2999, 1e-05
        %v3008 = vadd.f32 %v3000, 1e-05
        %v3009 = vadd.f32 %v3001, 1e-05
        %v3010 = vrsqrt.pop %v3002
        %v3011 = vrsqrt.pop %v3003
        %v3012 = vrsqrt.pop %v3004
        %v3013 = vrsqrt.pop %v3005
        %v3014 = vrsqrt.pop %v3006
        %v3015 = vrsqrt.pop %v3007
        %v3016 = vrsqrt.pop %v3008
        %v3017 = vrsqrt.pop %v3009
        %v3018 = vmul.f32 %v2954, %v3010
        %v3019 = vmul.f32 %v2955, %v3011
        %v3020 = vmul.f32 %v2956, %v3012
        %v3021 = vmul.f32 %v2957, %v3013
        %v3022 = vmul.f32 %v2958, %v3014
        %v3023 = vmul.f32 %v2959, %v3015
        %v3024 = vmul.f32 %v2960, %v3016
        %v3025 = vmul.f32 %v2961, %v3017
        %v3026 = vlaneseq
        %v3027 = vshrl.u32 %v3026, 7
        %v3028 = vsub.s32 0, %v3027
        %v3029 = vrot.slane %v2921, %v3028
        %v3030 = vmul.f32 %v3018, %v3029
        %v3031 = vmul.f32 %v3019, %v3029
        %v3032 = vmul.f32 %v3020, %v3029
        %v3033 = vmul.f32 %v3021, %v3029
        %v3034 = vmul.f32 %v3022, %v3029
        %v3035 = vmul.f32 %v3023, %v3029
        %v3036 = vmul.f32 %v3024, %v3029
        %v3037 = vmul.f32 %v3025, %v3029
        %3039 = vrot.lane.b32.xlu0 %v3029, 96
        %v3040 = vpop.permute.xlu0 %3039
        %v3042 = vadd.f32 %v3030, %v3040
        %v3043 = vadd.f32 %v3031, %v3040
        %v3044 = vadd.f32 %v3032, %v3040
        %v3045 = vadd.f32 %v3033, %v3040
        %v3046 = vadd.f32 %v3034, %v3040
        %v3047 = vadd.f32 %v3035, %v3040
        %v3048 = vadd.f32 %v3036, %v3040
        %v3049 = vadd.f32 %v3037, %v3040
        %v3051 = vsel %vm225, %v3042, 0
        %v3054 = vsel %vm225, %v3043, 0
        %v3057 = vsel %vm225, %v3044, 0
        %v3060 = vsel %vm225, %v3045, 0
        %v3063 = vsel %vm225, %v3046, 0
        %v3066 = vsel %vm225, %v3047, 0
        %v3069 = vsel %vm225, %v3048, 0
        %v3072 = vsel %vm225, %v3049, 0
        %3074 = vmatprep.subr.mxu0 0.0
        %3075 = vmatpush1.msra.mxu0 %v2909
        %3076 = vmatprep.subr.mxu0 0.0
        %3077 = vmatpush1.msra.mxu0 %v2910
        %3078 = vmatprep.subr.mxu0 0.0
        %3079 = vmatpush1.msra.mxu0 %v2911
        %3080 = vmatprep.subr.mxu0 0.0
        %3081 = vmatpush1.msra.mxu0 %v2912
        %3082 = vmatprep.subr.mxu0 0.0
        %3083 = vmatpush1.msra.mxu0 0.0
        %3084 = vmatprep.subr.mxu0 0.0
        %3085 = vmatpush1.msra.mxu0 0.0
        %3086 = vmatprep.subr.mxu0 0.0
        %3087 = vmatpush1.msra.mxu0 0.0
        %3088 = vmatprep.subr.mxu0 0.0
        %3089 = vmatpush1.msra.mxu0 0.0
        %3090 = vmatprep.subr.mxu0 0.0
        %3091 = vmatpush1.msra.mxu0 0.0
        %3092 = vmatprep.subr.mxu0 0.0
        %3093 = vmatpush1.msra.mxu0 0.0
        %3094 = vmatprep.subr.mxu0 0.0
        %3095 = vmatpush1.msra.mxu0 0.0
        %3096 = vmatprep.subr.mxu0 0.0
        %3097 = vmatpush1.msra.mxu0 0.0
        %3098 = vmatprep.subr.mxu0 0.0
        %3099 = vmatpush1.msra.mxu0 0.0
        %3100 = vmatprep.subr.mxu0 0.0
        %3101 = vmatpush1.msra.mxu0 0.0
        %3102 = vmatprep.subr.mxu0 0.0
        %3103 = vmatpush1.msra.mxu0 0.0
        %3104 = vmatprep.subr.mxu0 0.0
        %3105 = vmatpush1.msra.mxu0 0.0
        %3106 = vmatprep.subr.mxu0 0.0
        %3107 = vmatpush1.msra.mxu0 0.0
        %3108 = vmatprep.subr.mxu0 0.0
        %3109 = vmatpush1.msra.mxu0 0.0
        %3110 = vmatprep.subr.mxu0 0.0
        %3111 = vmatpush1.msra.mxu0 0.0
        %3112 = vmatprep.subr.mxu0 0.0
        %3113 = vmatpush1.msra.mxu0 0.0
        %3114 = vmatprep.subr.mxu0 0.0
        %3115 = vmatpush1.msra.mxu0 0.0
        %3116 = vmatprep.subr.mxu0 0.0
        %3117 = vmatpush1.msra.mxu0 0.0
        %3118 = vmatprep.subr.mxu0 0.0
        %3119 = vmatpush1.msra.mxu0 0.0
        %3120 = vmatprep.subr.mxu0 0.0
        %3121 = vmatpush1.msra.mxu0 0.0
        %3122 = vmatprep.subr.mxu0 0.0
        %3123 = vmatpush1.msra.mxu0 0.0
        %3124 = vmatprep.subr.mxu0 0.0
        %3125 = vmatpush1.msra.mxu0 0.0
        %3126 = vmatprep.subr.mxu0 0.0
        %3127 = vmatpush1.msra.mxu0 0.0
        %3128 = vmatprep.subr.mxu0 0.0
        %3129 = vmatpush1.msra.mxu0 0.0
        %3130 = vmatprep.subr.mxu0 0.0
        %3131 = vmatpush1.msra.mxu0 0.0
        %3132 = vmatprep.subr.mxu0 0.0
        %3133 = vmatpush1.msra.mxu0 0.0
        %3134 = vmatprep.subr.mxu0 0.0
        %3135 = vmatpush1.msra.mxu0 0.0
        %3136 = vmatprep.subr.mxu0 0.0
        %3137 = vmatpush1.msra.mxu0 0.0
        %3138 = vmatprep.mubr.f32.mxu0 0.0
        %3139 = vmatmul.mubr.f32.gmra.mrb[0].mxu0 %v3051
        %v3140 = vpop.f32.mrb[0].mxu0
        %v3141 = vadd.f32 0.0, %v3140
        %v3142 = vpop.f32.mrb[0].mxu0
        %3143 = vmatprep.mubr.f32.mxu0 0.0
        %3144 = vmatmul.mubr.f32.gmra.mrb[0].mxu0 %v3054
        %v3145 = vpop.f32.mrb[0].mxu0
        %v3146 = vadd.f32 0.0, %v3145
        %v3147 = vpop.f32.mrb[0].mxu0
        %3148 = vmatprep.mubr.f32.mxu0 0.0
        %3149 = vmatmul.mubr.f32.gmra.mrb[0].mxu0 %v3057
        %v3150 = vpop.f32.mrb[0].mxu0
        %v3151 = vadd.f32 0.0, %v3150
        %v3152 = vpop.f32.mrb[0].mxu0
        %3153 = vmatprep.mubr.f32.mxu0 0.0
        %3154 = vmatmul.mubr.f32.gmra.mrb[0].mxu0 %v3060
        %v3155 = vpop.f32.mrb[0].mxu0
        %v3156 = vadd.f32 0.0, %v3155
        %v3157 = vpop.f32.mrb[0].mxu0
        %3158 = vmatprep.mubr.f32.mxu0 0.0
        %3159 = vmatmul.mubr.f32.gmra.mrb[0].mxu0 %v3063
        %v3160 = vpop.f32.mrb[0].mxu0
        %v3161 = vadd.f32 0.0, %v3160
        %v3162 = vpop.f32.mrb[0].mxu0
        %3163 = vmatprep.mubr.f32.mxu0 0.0
        %3164 = vmatmul.mubr.f32.gmra.mrb[0].mxu0 %v3066
        %v3165 = vpop.f32.mrb[0].mxu0
        %v3166 = vadd.f32 0.0, %v3165
        %v3167 = vpop.f32.mrb[0].mxu0
        %3168 = vmatprep.mubr.f32.mxu0 0.0
        %3169 = vmatmul.mubr.f32.gmra.mrb[0].mxu0 %v3069
        %v3170 = vpop.f32.mrb[0].mxu0
        %v3171 = vadd.f32 0.0, %v3170
        %v3172 = vpop.f32.mrb[0].mxu0
        %3173 = vmatprep.mubr.f32.mxu0 0.0
        %3174 = vmatmul.mubr.f32.gmra.mrb[0].mxu0 %v3072
        %v3175 = vpop.f32.mrb[0].mxu0
        %v3176 = vadd.f32 0.0, %v3175
        %v3177 = vpop.f32.mrb[0].mxu0
        %3178 = vdwg.mxu0
        %v3179 = vlaneseq
        %v3180 = vshrl.u32 %v3179, 7
        %v3181 = vsub.s32 1, %v3180
        %v3182 = vrot.slane %v2921, %v3181
        %v3183 = vadd.f32 %v3141, %v3182
        %v3184 = vadd.f32 %v3146, %v3182
        %v3185 = vadd.f32 %v3151, %v3182
        %v3186 = vadd.f32 %v3156, %v3182
        %v3187 = vadd.f32 %v3161, %v3182
        %v3188 = vadd.f32 %v3166, %v3182
        %v3189 = vadd.f32 %v3171, %v3182
        %v3190 = vadd.f32 %v3176, %v3182
        %v3191 = vmul.f32 %v3183, 0.35355338
        %v3192 = vmul.f32 %v3184, 0.35355338
        %v3193 = vmul.f32 %v3185, 0.35355338
        %v3194 = vmul.f32 %v3186, 0.35355338
        %v3195 = vmul.f32 %v3187, 0.35355338
        %v3196 = vmul.f32 %v3188, 0.35355338
        %v3197 = vmul.f32 %v3189, 0.35355338
        %v3198 = vmul.f32 %v3190, 0.35355338
        %s3199 = scalar_lea.vmem [#allocation4], 128
        %v3200 = vld [vmem:[%s3199] sm:$0xf]
        %v3201 = vld [vmem:[%s3199 + $0x4] sm:$0xf]
        %v3202 = vld [vmem:[%s3199 + $0x8] sm:$0xf]
        %v3203 = vld [vmem:[%s3199 + $0xc] sm:$0xf]
        %v3204 = vld [vmem:[%s3199 + $0x10] sm:$0xf]
        %v3205 = vld [vmem:[%s3199 + $0x14] sm:$0xf]
        %v3206 = vld [vmem:[%s3199 + $0x18] sm:$0xf]
        %v3207 = vld [vmem:[%s3199 + $0x1c] sm:$0xf]
        %v3208 = vunpack.c.l.bf16 %v3200
        %v3209 = vunpack.c.l.bf16 %v3201
        %v3210 = vunpack.c.l.bf16 %v3202
        %v3211 = vunpack.c.l.bf16 %v3203
        %v3212 = vunpack.c.l.bf16 %v3204
        %v3213 = vunpack.c.l.bf16 %v3205
        %v3214 = vunpack.c.l.bf16 %v3206
        %v3215 = vunpack.c.l.bf16 %v3207
        %3224 = vrot.lane.b32.xlu0 %v3183, 96
        %v3225 = vpop.permute.xlu0 %3224
        %3226 = vrot.lane.b32.xlu0 %v3184, 96
        %v3227 = vpop.permute.xlu0 %3226
        %3228 = vrot.lane.b32.xlu0 %v3185, 96
        %v3229 = vpop.permute.xlu0 %3228
        %3230 = vrot.lane.b32.xlu0 %v3186, 96
        %v3231 = vpop.permute.xlu0 %3230
        %3232 = vrot.lane.b32.xlu0 %v3187, 96
        %v3233 = vpop.permute.xlu0 %3232
        %3234 = vrot.lane.b32.xlu0 %v3188, 96
        %v3235 = vpop.permute.xlu0 %3234
        %3236 = vrot.lane.b32.xlu0 %v3189, 96
        %v3237 = vpop.permute.xlu0 %3236
        %3238 = vrot.lane.b32.xlu0 %v3190, 96
        %v3239 = vpop.permute.xlu0 %3238
        %v3241 = vsel %vm544, %v3191, 0
        %v3244 = vsel %vm544, %v3192, 0
        %v3247 = vsel %vm544, %v3193, 0
        %v3250 = vsel %vm544, %v3194, 0
        %v3253 = vsel %vm544, %v3195, 0
        %v3256 = vsel %vm544, %v3196, 0
        %v3259 = vsel %vm544, %v3197, 0
        %v3262 = vsel %vm544, %v3198, 0
        %v3264 = vsel %vm544, %v3225, 0
        %v3266 = vsel %vm544, %v3227, 0
        %v3268 = vsel %vm544, %v3229, 0
        %v3270 = vsel %vm544, %v3231, 0
        %v3272 = vsel %vm544, %v3233, 0
        %v3274 = vsel %vm544, %v3235, 0
        %v3276 = vsel %vm544, %v3237, 0
        %v3278 = vsel %vm544, %v3239, 0
        %3280 = vmatprep.subr.mxu0 0.0
        %3281 = vmatpush1.xpose.msra.mxu0 %v3264
        %3282 = vmatprep.subr.mxu0 0.0
        %3283 = vmatpush1.xpose.msra.mxu0 %v3266
        %3284 = vmatprep.subr.mxu0 0.0
        %3285 = vmatpush1.xpose.msra.mxu0 %v3268
        %3286 = vmatprep.subr.mxu0 0.0
        %3287 = vmatpush1.xpose.msra.mxu0 %v3270
        %3288 = vmatprep.subr.mxu0 0.0
        %3289 = vmatpush1.xpose.msra.mxu0 %v3272
        %3290 = vmatprep.subr.mxu0 0.0
        %3291 = vmatpush1.xpose.msra.mxu0 %v3274
        %3292 = vmatprep.subr.mxu0 0.0
        %3293 = vmatpush1.xpose.msra.mxu0 %v3276
        %3294 = vmatprep.subr.mxu0 0.0
        %3295 = vmatpush1.xpose.msra.mxu0 %v3278
        %3296 = vmatprep.subr.mxu0 0.0
        %3297 = vmatpush1.xpose.msra.mxu0 0.0
        %3298 = vmatprep.subr.mxu0 0.0
        %3299 = vmatpush1.xpose.msra.mxu0 0.0
        %3300 = vmatprep.subr.mxu0 0.0
        %3301 = vmatpush1.xpose.msra.mxu0 0.0
        %3302 = vmatprep.subr.mxu0 0.0
        %3303 = vmatpush1.xpose.msra.mxu0 0.0
        %3304 = vmatprep.subr.mxu0 0.0
        %3305 = vmatpush1.xpose.msra.mxu0 0.0
        %3306 = vmatprep.subr.mxu0 0.0
        %3307 = vmatpush1.xpose.msra.mxu0 0.0
        %3308 = vmatprep.subr.mxu0 0.0
        %3309 = vmatpush1.xpose.msra.mxu0 0.0
        %3310 = vmatprep.subr.mxu0 0.0
        %3311 = vmatpush1.xpose.msra.mxu0 0.0
        %3312 = vmatprep.subr.mxu0 0.0
        %3313 = vmatpush1.xpose.msra.mxu0 0.0
        %3314 = vmatprep.subr.mxu0 0.0
        %3315 = vmatpush1.xpose.msra.mxu0 0.0
        %3316 = vmatprep.subr.mxu0 0.0
        %3317 = vmatpush1.xpose.msra.mxu0 0.0
        %3318 = vmatprep.subr.mxu0 0.0
        %3319 = vmatpush1.xpose.msra.mxu0 0.0
        %3320 = vmatprep.subr.mxu0 0.0
        %3321 = vmatpush1.xpose.msra.mxu0 0.0
        %3322 = vmatprep.subr.mxu0 0.0
        %3323 = vmatpush1.xpose.msra.mxu0 0.0
        %3324 = vmatprep.subr.mxu0 0.0
        %3325 = vmatpush1.xpose.msra.mxu0 0.0
        %3326 = vmatprep.subr.mxu0 0.0
        %3327 = vmatpush1.xpose.msra.mxu0 0.0
        %3328 = vmatprep.subr.mxu0 0.0
        %3329 = vmatpush1.xpose.msra.mxu0 0.0
        %3330 = vmatprep.subr.mxu0 0.0
        %3331 = vmatpush1.xpose.msra.mxu0 0.0
        %3332 = vmatprep.subr.mxu0 0.0
        %3333 = vmatpush1.xpose.msra.mxu0 0.0
        %3334 = vmatprep.subr.mxu0 0.0
        %3335 = vmatpush1.xpose.msra.mxu0 0.0
        %3336 = vmatprep.subr.mxu0 0.0
        %3337 = vmatpush1.xpose.msra.mxu0 0.0
        %3338 = vmatprep.subr.mxu0 0.0
        %3339 = vmatpush1.xpose.msra.mxu0 0.0
        %3340 = vmatprep.subr.mxu0 0.0
        %3341 = vmatpush1.xpose.msra.mxu0 0.0
        %3342 = vmatprep.subr.mxu0 0.0
        %3343 = vmatpush1.xpose.msra.mxu0 0.0
        %3344 = vmatprep.mubr.f32.mxu0 0.0
        %3345 = vmatmul.mubr.f32.gmra.mrb[0].mxu0 %v3241
        %v3346 = vpop.f32.mrb[0].mxu0
        %v3347 = vadd.f32 %v3208, %v3346
        %v3348 = vpop.f32.mrb[0].mxu0
        %3349 = vmatprep.mubr.f32.mxu0 0.0
        %3350 = vmatmul.mubr.f32.gmra.mrb[0].mxu0 %v3244
        %v3351 = vpop.f32.mrb[0].mxu0
        %v3352 = vadd.f32 %v3209, %v3351
        %v3353 = vpop.f32.mrb[0].mxu0
        %3354 = vmatprep.mubr.f32.mxu0 0.0
        %3355 = vmatmul.mubr.f32.gmra.mrb[0].mxu0 %v3247
        %v3356 = vpop.f32.mrb[0].mxu0
        %v3357 = vadd.f32 %v3210, %v3356
        %v3358 = vpop.f32.mrb[0].mxu0
        %3359 = vmatprep.mubr.f32.mxu0 0.0
        %3360 = vmatmul.mubr.f32.gmra.mrb[0].mxu0 %v3250
        %v3361 = vpop.f32.mrb[0].mxu0
        %v3362 = vadd.f32 %v3211, %v3361
        %v3363 = vpop.f32.mrb[0].mxu0
        %3364 = vmatprep.mubr.f32.mxu0 0.0
        %3365 = vmatmul.mubr.f32.gmra.mrb[0].mxu0 %v3253
        %v3366 = vpop.f32.mrb[0].mxu0
        %v3367 = vadd.f32 %v3212, %v3366
        %v3368 = vpop.f32.mrb[0].mxu0
        %3369 = vmatprep.mubr.f32.mxu0 0.0
        %3370 = vmatmul.mubr.f32.gmra.mrb[0].mxu0 %v3256
        %v3371 = vpop.f32.mrb[0].mxu0
        %v3372 = vadd.f32 %v3213, %v3371
        %v3373 = vpop.f32.mrb[0].mxu0
        %3374 = vmatprep.mubr.f32.mxu0 0.0
        %3375 = vmatmul.mubr.f32.gmra.mrb[0].mxu0 %v3259
        %v3376 = vpop.f32.mrb[0].mxu0
        %v3377 = vadd.f32 %v3214, %v3376
        %v3378 = vpop.f32.mrb[0].mxu0
        %3379 = vmatprep.mubr.f32.mxu0 0.0
        %3380 = vmatmul.mubr.f32.gmra.mrb[0].mxu0 %v3262
        %v3381 = vpop.f32.mrb[0].mxu0
        %v3382 = vadd.f32 %v3215, %v3381
        %v3383 = vpop.f32.mrb[0].mxu0
        %3384 = vdwg.mxu0
        %v3385 = vsel %vm690, %v3347, -inf
        %3386 = vmax.xlane.f32.xlu0 %v3385
        %v3387 = vpop.xlane.xlu0 %3386
        %v3388 = vsel %vm690, %v3352, -inf
        %3389 = vmax.xlane.f32.xlu0 %v3388
        %v3390 = vpop.xlane.xlu0 %3389
        %v3391 = vsel %vm690, %v3357, -inf
        %3392 = vmax.xlane.f32.xlu0 %v3391
        %v3393 = vpop.xlane.xlu0 %3392
        %v3394 = vsel %vm690, %v3362, -inf
        %3395 = vmax.xlane.f32.xlu0 %v3394
        %v3396 = vpop.xlane.xlu0 %3395
        %v3397 = vsel %vm690, %v3367, -inf
        %3398 = vmax.xlane.f32.xlu0 %v3397
        %v3399 = vpop.xlane.xlu0 %3398
        %v3400 = vsel %vm690, %v3372, -inf
        %3401 = vmax.xlane.f32.xlu0 %v3400
        %v3402 = vpop.xlane.xlu0 %3401
        %v3403 = vsel %vm690, %v3377, -inf
        %3404 = vmax.xlane.f32.xlu0 %v3403
        %v3405 = vpop.xlane.xlu0 %3404
        %v3406 = vsel %vm690, %v3382, -inf
        %3407 = vmax.xlane.f32.xlu0 %v3406
        %v3408 = vpop.xlane.xlu0 %3407
        %v3409 = vsub.f32 %v3347, %v3387
        %v3410 = vsub.f32 %v3352, %v3390
        %v3411 = vsub.f32 %v3357, %v3393
        %v3412 = vsub.f32 %v3362, %v3396
        %v3413 = vsub.f32 %v3367, %v3399
        %v3414 = vsub.f32 %v3372, %v3402
        %v3415 = vsub.f32 %v3377, %v3405
        %v3416 = vsub.f32 %v3382, %v3408
        %v3417 = vmul.f32 %v3409, 1.442695
        %v3418 = vpow.pop %v3417
        %v3419 = vmul.f32 %v3410, 1.442695
        %v3420 = vpow.pop %v3419
        %v3421 = vmul.f32 %v3411, 1.442695
        %v3422 = vpow.pop %v3421
        %v3423 = vmul.f32 %v3412, 1.442695
        %v3424 = vpow.pop %v3423
        %v3425 = vmul.f32 %v3413, 1.442695
        %v3426 = vpow.pop %v3425
        %v3427 = vmul.f32 %v3414, 1.442695
        %v3428 = vpow.pop %v3427
        %v3429 = vmul.f32 %v3415, 1.442695
        %v3430 = vpow.pop %v3429
        %v3431 = vmul.f32 %v3416, 1.442695
        %v3432 = vpow.pop %v3431
        %v3433 = vsel %vm690, %v3418, 0.0
        %3434 = vadd.xlane.f32.xlu0 %v3433
        %v3435 = vpop.xlane.xlu0 %3434
        %v3436 = vsel %vm690, %v3420, 0.0
        %3437 = vadd.xlane.f32.xlu0 %v3436
        %v3438 = vpop.xlane.xlu0 %3437
        %v3439 = vsel %vm690, %v3422, 0.0
        %3440 = vadd.xlane.f32.xlu0 %v3439
        %v3441 = vpop.xlane.xlu0 %3440
        %v3442 = vsel %vm690, %v3424, 0.0
        %3443 = vadd.xlane.f32.xlu0 %v3442
        %v3444 = vpop.xlane.xlu0 %3443
        %v3445 = vsel %vm690, %v3426, 0.0
        %3446 = vadd.xlane.f32.xlu0 %v3445
        %v3447 = vpop.xlane.xlu0 %3446
        %v3448 = vsel %vm690, %v3428, 0.0
        %3449 = vadd.xlane.f32.xlu0 %v3448
        %v3450 = vpop.xlane.xlu0 %3449
        %v3451 = vsel %vm690, %v3430, 0.0
        %3452 = vadd.xlane.f32.xlu0 %v3451
        %v3453 = vpop.xlane.xlu0 %3452
        %v3454 = vsel %vm690, %v3432, 0.0
        %3455 = vadd.xlane.f32.xlu0 %v3454
        %v3456 = vpop.xlane.xlu0 %3455
        %v3457 = vrcp.pop %v3435
        %v3458 = vrcp.pop %v3438
        %v3459 = vrcp.pop %v3441
        %v3460 = vrcp.pop %v3444
        %v3461 = vrcp.pop %v3447
        %v3462 = vrcp.pop %v3450
        %v3463 = vrcp.pop %v3453
        %v3464 = vrcp.pop %v3456
        %v3465 = vmul.f32 %v3418, %v3457
        %v3466 = vmul.f32 %v3420, %v3458
        %v3467 = vmul.f32 %v3422, %v3459
        %v3468 = vmul.f32 %v3424, %v3460
        %v3469 = vmul.f32 %v3426, %v3461
        %v3470 = vmul.f32 %v3428, %v3462
        %v3471 = vmul.f32 %v3430, %v3463
        %v3472 = vmul.f32 %v3432, %v3464
        %3473 = vrot.lane.b32.xlu0 %v3183, 64
        %v3474 = vpop.permute.xlu0 %3473
        %3475 = vrot.lane.b32.xlu0 %v3184, 64
        %v3476 = vpop.permute.xlu0 %3475
        %3477 = vrot.lane.b32.xlu0 %v3185, 64
        %v3478 = vpop.permute.xlu0 %3477
        %3479 = vrot.lane.b32.xlu0 %v3186, 64
        %v3480 = vpop.permute.xlu0 %3479
        %3481 = vrot.lane.b32.xlu0 %v3187, 64
        %v3482 = vpop.permute.xlu0 %3481
        %3483 = vrot.lane.b32.xlu0 %v3188, 64
        %v3484 = vpop.permute.xlu0 %3483
        %3485 = vrot.lane.b32.xlu0 %v3189, 64
        %v3486 = vpop.permute.xlu0 %3485
        %3487 = vrot.lane.b32.xlu0 %v3190, 64
        %v3488 = vpop.permute.xlu0 %3487
        %v3498 = vsel %vm690, %v3465, 0
        %v3501 = vsel %vm690, %v3466, 0
        %v3504 = vsel %vm690, %v3467, 0
        %v3507 = vsel %vm690, %v3468, 0
        %v3510 = vsel %vm690, %v3469, 0
        %v3513 = vsel %vm690, %v3470, 0
        %v3516 = vsel %vm690, %v3471, 0
        %v3519 = vsel %vm690, %v3472, 0
        %3521 = vmatprep.subr.mxu0 0.0
        %3522 = vmatpush1.msra.mxu0 %v3474
        %3523 = vmatprep.subr.mxu0 0.0
        %3524 = vmatpush1.msra.mxu0 %v3476
        %3525 = vmatprep.subr.mxu0 0.0
        %3526 = vmatpush1.msra.mxu0 %v3478
        %3527 = vmatprep.subr.mxu0 0.0
        %3528 = vmatpush1.msra.mxu0 %v3480
        %3529 = vmatprep.subr.mxu0 0.0
        %3530 = vmatpush1.msra.mxu0 %v3482
        %3531 = vmatprep.subr.mxu0 0.0
        %3532 = vmatpush1.msra.mxu0 %v3484
        %3533 = vmatprep.subr.mxu0 0.0
        %3534 = vmatpush1.msra.mxu0 %v3486
        %3535 = vmatprep.subr.mxu0 0.0
        %3536 = vmatpush1.msra.mxu0 %v3488
        %3537 = vmatprep.subr.mxu0 0.0
        %3538 = vmatpush1.msra.mxu0 0.0
        %3539 = vmatprep.subr.mxu0 0.0
        %3540 = vmatpush1.msra.mxu0 0.0
        %3541 = vmatprep.subr.mxu0 0.0
        %3542 = vmatpush1.msra.mxu0 0.0
        %3543 = vmatprep.subr.mxu0 0.0
        %3544 = vmatpush1.msra.mxu0 0.0
        %3545 = vmatprep.subr.mxu0 0.0
        %3546 = vmatpush1.msra.mxu0 0.0
        %3547 = vmatprep.subr.mxu0 0.0
        %3548 = vmatpush1.msra.mxu0 0.0
        %3549 = vmatprep.subr.mxu0 0.0
        %3550 = vmatpush1.msra.mxu0 0.0
        %3551 = vmatprep.subr.mxu0 0.0
        %3552 = vmatpush1.msra.mxu0 0.0
        %3553 = vmatprep.subr.mxu0 0.0
        %3554 = vmatpush1.msra.mxu0 0.0
        %3555 = vmatprep.subr.mxu0 0.0
        %3556 = vmatpush1.msra.mxu0 0.0
        %3557 = vmatprep.subr.mxu0 0.0
        %3558 = vmatpush1.msra.mxu0 0.0
        %3559 = vmatprep.subr.mxu0 0.0
        %3560 = vmatpush1.msra.mxu0 0.0
        %3561 = vmatprep.subr.mxu0 0.0
        %3562 = vmatpush1.msra.mxu0 0.0
        %3563 = vmatprep.subr.mxu0 0.0
        %3564 = vmatpush1.msra.mxu0 0.0
        %3565 = vmatprep.subr.mxu0 0.0
        %3566 = vmatpush1.msra.mxu0 0.0
        %3567 = vmatprep.subr.mxu0 0.0
        %3568 = vmatpush1.msra.mxu0 0.0
        %3569 = vmatprep.subr.mxu0 0.0
        %3570 = vmatpush1.msra.mxu0 0.0
        %3571 = vmatprep.subr.mxu0 0.0
        %3572 = vmatpush1.msra.mxu0 0.0
        %3573 = vmatprep.subr.mxu0 0.0
        %3574 = vmatpush1.msra.mxu0 0.0
        %3575 = vmatprep.subr.mxu0 0.0
        %3576 = vmatpush1.msra.mxu0 0.0
        %3577 = vmatprep.subr.mxu0 0.0
        %3578 = vmatpush1.msra.mxu0 0.0
        %3579 = vmatprep.subr.mxu0 0.0
        %3580 = vmatpush1.msra.mxu0 0.0
        %3581 = vmatprep.subr.mxu0 0.0
        %3582 = vmatpush1.msra.mxu0 0.0
        %3583 = vmatprep.subr.mxu0 0.0
        %3584 = vmatpush1.msra.mxu0 0.0
        %3585 = vmatprep.mubr.f32.mxu0 0.0
        %3586 = vmatmul.mubr.f32.gmra.mrb[0].mxu0 %v3498
        %v3587 = vpop.f32.mrb[0].mxu0
        %v3588 = vadd.f32 0.0, %v3587
        %v3589 = vpop.f32.mrb[0].mxu0
        %3590 = vmatprep.mubr.f32.mxu0 0.0
        %3591 = vmatmul.mubr.f32.gmra.mrb[0].mxu0 %v3501
        %v3592 = vpop.f32.mrb[0].mxu0
        %v3593 = vadd.f32 0.0, %v3592
        %v3594 = vpop.f32.mrb[0].mxu0
        %3595 = vmatprep.mubr.f32.mxu0 0.0
        %3596 = vmatmul.mubr.f32.gmra.mrb[0].mxu0 %v3504
        %v3597 = vpop.f32.mrb[0].mxu0
        %v3598 = vadd.f32 0.0, %v3597
        %v3599 = vpop.f32.mrb[0].mxu0
        %3600 = vmatprep.mubr.f32.mxu0 0.0
        %3601 = vmatmul.mubr.f32.gmra.mrb[0].mxu0 %v3507
        %v3602 = vpop.f32.mrb[0].mxu0
        %v3603 = vadd.f32 0.0, %v3602
        %v3604 = vpop.f32.mrb[0].mxu0
        %3605 = vmatprep.mubr.f32.mxu0 0.0
        %3606 = vmatmul.mubr.f32.gmra.mrb[0].mxu0 %v3510
        %v3607 = vpop.f32.mrb[0].mxu0
        %v3608 = vadd.f32 0.0, %v3607
        %v3609 = vpop.f32.mrb[0].mxu0
        %3610 = vmatprep.mubr.f32.mxu0 0.0
        %3611 = vmatmul.mubr.f32.gmra.mrb[0].mxu0 %v3513
        %v3612 = vpop.f32.mrb[0].mxu0
        %v3613 = vadd.f32 0.0, %v3612
        %v3614 = vpop.f32.mrb[0].mxu0
        %3615 = vmatprep.mubr.f32.mxu0 0.0
        %3616 = vmatmul.mubr.f32.gmra.mrb[0].mxu0 %v3516
        %v3617 = vpop.f32.mrb[0].mxu0
        %v3618 = vadd.f32 0.0, %v3617
        %v3619 = vpop.f32.mrb[0].mxu0
        %3620 = vmatprep.mubr.f32.mxu0 0.0
        %3621 = vmatmul.mubr.f32.gmra.mrb[0].mxu0 %v3519
        %v3622 = vpop.f32.mrb[0].mxu0
        %v3623 = vadd.f32 0.0, %v3622
        %v3624 = vpop.f32.mrb[0].mxu0
        %3625 = vdwg.mxu0
        %s3626 = scalar_lea.vmem [#allocation4], 160
        %v3627 = vld [vmem:[%s3626] sm:$0xf]
        %v3628 = vld [vmem:[%s3626 + $0x4] sm:$0xf]
        %v3629 = vld [vmem:[%s3626 + $0x8] sm:$0xf]
        %v3630 = vld [vmem:[%s3626 + $0xc] sm:$0xf]
        %v3631 = vld [vmem:[%s3626 + $0x10] sm:$0xf]
        %v3632 = vld [vmem:[%s3626 + $0x14] sm:$0xf]
        %v3633 = vld [vmem:[%s3626 + $0x18] sm:$0xf]
        %v3634 = vld [vmem:[%s3626 + $0x1c] sm:$0xf]
        %v3635 = vunpack.c.l.bf16 %v3627
        %v3636 = vunpack.c.l.bf16 %v3628
        %v3637 = vunpack.c.l.bf16 %v3629
        %v3638 = vunpack.c.l.bf16 %v3630
        %v3639 = vunpack.c.l.bf16 %v3631
        %v3640 = vunpack.c.l.bf16 %v3632
        %v3641 = vunpack.c.l.bf16 %v3633
        %v3642 = vunpack.c.l.bf16 %v3634
        %3643 = vrot.lane.b32.xlu0 %v3191, 120
        %v3644 = vpop.permute.xlu0 %3643
        %3645 = vrot.lane.b32.xlu0 %v3192, 120
        %v3646 = vpop.permute.xlu0 %3645
        %3647 = vrot.lane.b32.xlu0 %v3193, 120
        %v3648 = vpop.permute.xlu0 %3647
        %3649 = vrot.lane.b32.xlu0 %v3194, 120
        %v3650 = vpop.permute.xlu0 %3649
        %3651 = vrot.lane.b32.xlu0 %v3195, 120
        %v3652 = vpop.permute.xlu0 %3651
        %3653 = vrot.lane.b32.xlu0 %v3196, 120
        %v3654 = vpop.permute.xlu0 %3653
        %3655 = vrot.lane.b32.xlu0 %v3197, 120
        %v3656 = vpop.permute.xlu0 %3655
        %3657 = vrot.lane.b32.xlu0 %v3198, 120
        %v3658 = vpop.permute.xlu0 %3657
        %3659 = vrot.lane.b32.xlu0 %v3183, 88
        %v3660 = vpop.permute.xlu0 %3659
        %3661 = vrot.lane.b32.xlu0 %v3184, 88
        %v3662 = vpop.permute.xlu0 %3661
        %3663 = vrot.lane.b32.xlu0 %v3185, 88
        %v3664 = vpop.permute.xlu0 %3663
        %3665 = vrot.lane.b32.xlu0 %v3186, 88
        %v3666 = vpop.permute.xlu0 %3665
        %3667 = vrot.lane.b32.xlu0 %v3187, 88
        %v3668 = vpop.permute.xlu0 %3667
        %3669 = vrot.lane.b32.xlu0 %v3188, 88
        %v3670 = vpop.permute.xlu0 %3669
        %3671 = vrot.lane.b32.xlu0 %v3189, 88
        %v3672 = vpop.permute.xlu0 %3671
        %3673 = vrot.lane.b32.xlu0 %v3190, 88
        %v3674 = vpop.permute.xlu0 %3673
        %v3675 = vsel %vm544, %v3644, 0
        %v3677 = vsel %vm544, %v3646, 0
        %v3679 = vsel %vm544, %v3648, 0
        %v3681 = vsel %vm544, %v3650, 0
        %v3683 = vsel %vm544, %v3652, 0
        %v3685 = vsel %vm544, %v3654, 0
        %v3687 = vsel %vm544, %v3656, 0
        %v3689 = vsel %vm544, %v3658, 0
        %v3691 = vsel %vm544, %v3660, 0
        %v3693 = vsel %vm544, %v3662, 0
        %v3695 = vsel %vm544, %v3664, 0
        %v3697 = vsel %vm544, %v3666, 0
        %v3699 = vsel %vm544, %v3668, 0
        %v3701 = vsel %vm544, %v3670, 0
        %v3703 = vsel %vm544, %v3672, 0
        %v3705 = vsel %vm544, %v3674, 0
        %3707 = vmatprep.subr.mxu0 0.0
        %3708 = vmatpush1.xpose.msra.mxu0 %v3691
        %3709 = vmatprep.subr.mxu0 0.0
        %3710 = vmatpush1.xpose.msra.mxu0 %v3693
        %3711 = vmatprep.subr.mxu0 0.0
        %3712 = vmatpush1.xpose.msra.mxu0 %v3695
        %3713 = vmatprep.subr.mxu0 0.0
        %3714 = vmatpush1.xpose.msra.mxu0 %v3697
        %3715 = vmatprep.subr.mxu0 0.0
        %3716 = vmatpush1.xpose.msra.mxu0 %v3699
        %3717 = vmatprep.subr.mxu0 0.0
        %3718 = vmatpush1.xpose.msra.mxu0 %v3701
        %3719 = vmatprep.subr.mxu0 0.0
        %3720 = vmatpush1.xpose.msra.mxu0 %v3703
        %3721 = vmatprep.subr.mxu0 0.0
        %3722 = vmatpush1.xpose.msra.mxu0 %v3705
        %3723 = vmatprep.subr.mxu0 0.0
        %3724 = vmatpush1.xpose.msra.mxu0 0.0
        %3725 = vmatprep.subr.mxu0 0.0
        %3726 = vmatpush1.xpose.msra.mxu0 0.0
        %3727 = vmatprep.subr.mxu0 0.0
        %3728 = vmatpush1.xpose.msra.mxu0 0.0
        %3729 = vmatprep.subr.mxu0 0.0
        %3730 = vmatpush1.xpose.msra.mxu0 0.0
        %3731 = vmatprep.subr.mxu0 0.0
        %3732 = vmatpush1.xpose.msra.mxu0 0.0
        %3733 = vmatprep.subr.mxu0 0.0
        %3734 = vmatpush1.xpose.msra.mxu0 0.0
        %3735 = vmatprep.subr.mxu0 0.0
        %3736 = vmatpush1.xpose.msra.mxu0 0.0
        %3737 = vmatprep.subr.mxu0 0.0
        %3738 = vmatpush1.xpose.msra.mxu0 0.0
        %3739 = vmatprep.subr.mxu0 0.0
        %3740 = vmatpush1.xpose.msra.mxu0 0.0
        %3741 = vmatprep.subr.mxu0 0.0
        %3742 = vmatpush1.xpose.msra.mxu0 0.0
        %3743 = vmatprep.subr.mxu0 0.0
        %3744 = vmatpush1.xpose.msra.mxu0 0.0
        %3745 = vmatprep.subr.mxu0 0.0
        %3746 = vmatpush1.xpose.msra.mxu0 0.0
        %3747 = vmatprep.subr.mxu0 0.0
        %3748 = vmatpush1.xpose.msra.mxu0 0.0
        %3749 = vmatprep.subr.mxu0 0.0
        %3750 = vmatpush1.xpose.msra.mxu0 0.0
        %3751 = vmatprep.subr.mxu0 0.0
        %3752 = vmatpush1.xpose.msra.mxu0 0.0
        %3753 = vmatprep.subr.mxu0 0.0
        %3754 = vmatpush1.xpose.msra.mxu0 0.0
        %3755 = vmatprep.subr.mxu0 0.0
        %3756 = vmatpush1.xpose.msra.mxu0 0.0
        %3757 = vmatprep.subr.mxu0 0.0
        %3758 = vmatpush1.xpose.msra.mxu0 0.0
        %3759 = vmatprep.subr.mxu0 0.0
        %3760 = vmatpush1.xpose.msra.mxu0 0.0
        %3761 = vmatprep.subr.mxu0 0.0
        %3762 = vmatpush1.xpose.msra.mxu0 0.0
        %3763 = vmatprep.subr.mxu0 0.0
        %3764 = vmatpush1.xpose.msra.mxu0 0.0
        %3765 = vmatprep.subr.mxu0 0.0
        %3766 = vmatpush1.xpose.msra.mxu0 0.0
        %3767 = vmatprep.subr.mxu0 0.0
        %3768 = vmatpush1.xpose.msra.mxu0 0.0
        %3769 = vmatprep.subr.mxu0 0.0
        %3770 = vmatpush1.xpose.msra.mxu0 0.0
        %3771 = vmatprep.mubr.f32.mxu0 0.0
        %3772 = vmatmul.mubr.f32.gmra.mrb[0].mxu0 %v3675
        %v3773 = vpop.f32.mrb[0].mxu0
        %v3774 = vadd.f32 %v3635, %v3773
        %v3775 = vpop.f32.mrb[0].mxu0
        %3776 = vmatprep.mubr.f32.mxu0 0.0
        %3777 = vmatmul.mubr.f32.gmra.mrb[0].mxu0 %v3677
        %v3778 = vpop.f32.mrb[0].mxu0
        %v3779 = vadd.f32 %v3636, %v3778
        %v3780 = vpop.f32.mrb[0].mxu0
        %3781 = vmatprep.mubr.f32.mxu0 0.0
        %3782 = vmatmul.mubr.f32.gmra.mrb[0].mxu0 %v3679
        %v3783 = vpop.f32.mrb[0].mxu0
        %v3784 = vadd.f32 %v3637, %v3783
        %v3785 = vpop.f32.mrb[0].mxu0
        %3786 = vmatprep.mubr.f32.mxu0 0.0
        %3787 = vmatmul.mubr.f32.gmra.mrb[0].mxu0 %v3681
        %v3788 = vpop.f32.mrb[0].mxu0
        %v3789 = vadd.f32 %v3638, %v3788
        %v3790 = vpop.f32.mrb[0].mxu0
        %3791 = vmatprep.mubr.f32.mxu0 0.0
        %3792 = vmatmul.mubr.f32.gmra.mrb[0].mxu0 %v3683
        %v3793 = vpop.f32.mrb[0].mxu0
        %v3794 = vadd.f32 %v3639, %v3793
        %v3795 = vpop.f32.mrb[0].mxu0
        %3796 = vmatprep.mubr.f32.mxu0 0.0
        %3797 = vmatmul.mubr.f32.gmra.mrb[0].mxu0 %v3685
        %v3798 = vpop.f32.mrb[0].mxu0
        %v3799 = vadd.f32 %v3640, %v3798
        %v3800 = vpop.f32.mrb[0].mxu0
        %3801 = vmatprep.mubr.f32.mxu0 0.0
        %3802 = vmatmul.mubr.f32.gmra.mrb[0].mxu0 %v3687
        %v3803 = vpop.f32.mrb[0].mxu0
        %v3804 = vadd.f32 %v3641, %v3803
        %v3805 = vpop.f32.mrb[0].mxu0
        %3806 = vmatprep.mubr.f32.mxu0 0.0
        %3807 = vmatmul.mubr.f32.gmra.mrb[0].mxu0 %v3689
        %v3808 = vpop.f32.mrb[0].mxu0
        %v3809 = vadd.f32 %v3642, %v3808
        %v3810 = vpop.f32.mrb[0].mxu0
        %3811 = vdwg.mxu0
        %v3812 = vsel %vm690, %v3774, -inf
        %3813 = vmax.xlane.f32.xlu0 %v3812
        %v3814 = vpop.xlane.xlu0 %3813
        %v3815 = vsel %vm690, %v3779, -inf
        %3816 = vmax.xlane.f32.xlu0 %v3815
        %v3817 = vpop.xlane.xlu0 %3816
        %v3818 = vsel %vm690, %v3784, -inf
        %3819 = vmax.xlane.f32.xlu0 %v3818
        %v3820 = vpop.xlane.xlu0 %3819
        %v3821 = vsel %vm690, %v3789, -inf
        %3822 = vmax.xlane.f32.xlu0 %v3821
        %v3823 = vpop.xlane.xlu0 %3822
        %v3824 = vsel %vm690, %v3794, -inf
        %3825 = vmax.xlane.f32.xlu0 %v3824
        %v3826 = vpop.xlane.xlu0 %3825
        %v3827 = vsel %vm690, %v3799, -inf
        %3828 = vmax.xlane.f32.xlu0 %v3827
        %v3829 = vpop.xlane.xlu0 %3828
        %v3830 = vsel %vm690, %v3804, -inf
        %3831 = vmax.xlane.f32.xlu0 %v3830
        %v3832 = vpop.xlane.xlu0 %3831
        %v3833 = vsel %vm690, %v3809, -inf
        %3834 = vmax.xlane.f32.xlu0 %v3833
        %v3835 = vpop.xlane.xlu0 %3834
        %v3836 = vsub.f32 %v3774, %v3814
        %v3837 = vsub.f32 %v3779, %v3817
        %v3838 = vsub.f32 %v3784, %v3820
        %v3839 = vsub.f32 %v3789, %v3823
        %v3840 = vsub.f32 %v3794, %v3826
        %v3841 = vsub.f32 %v3799, %v3829
        %v3842 = vsub.f32 %v3804, %v3832
        %v3843 = vsub.f32 %v3809, %v3835
        %v3844 = vmul.f32 %v3836, 1.442695
        %v3845 = vpow.pop %v3844
        %v3846 = vmul.f32 %v3837, 1.442695
        %v3847 = vpow.pop %v3846
        %v3848 = vmul.f32 %v3838, 1.442695
        %v3849 = vpow.pop %v3848
        %v3850 = vmul.f32 %v3839, 1.442695
        %v3851 = vpow.pop %v3850
        %v3852 = vmul.f32 %v3840, 1.442695
        %v3853 = vpow.pop %v3852
        %v3854 = vmul.f32 %v3841, 1.442695
        %v3855 = vpow.pop %v3854
        %v3856 = vmul.f32 %v3842, 1.442695
        %v3857 = vpow.pop %v3856
        %v3858 = vmul.f32 %v3843, 1.442695
        %v3859 = vpow.pop %v3858
        %v3860 = vsel %vm690, %v3845, 0.0
        %3861 = vadd.xlane.f32.xlu0 %v3860
        %v3862 = vpop.xlane.xlu0 %3861
        %v3863 = vsel %vm690, %v3847, 0.0
        %3864 = vadd.xlane.f32.xlu0 %v3863
        %v3865 = vpop.xlane.xlu0 %3864
        %v3866 = vsel %vm690, %v3849, 0.0
        %3867 = vadd.xlane.f32.xlu0 %v3866
        %v3868 = vpop.xlane.xlu0 %3867
        %v3869 = vsel %vm690, %v3851, 0.0
        %3870 = vadd.xlane.f32.xlu0 %v3869
        %v3871 = vpop.xlane.xlu0 %3870
        %v3872 = vsel %vm690, %v3853, 0.0
        %3873 = vadd.xlane.f32.xlu0 %v3872
        %v3874 = vpop.xlane.xlu0 %3873
        %v3875 = vsel %vm690, %v3855, 0.0
        %3876 = vadd.xlane.f32.xlu0 %v3875
        %v3877 = vpop.xlane.xlu0 %3876
        %v3878 = vsel %vm690, %v3857, 0.0
        %3879 = vadd.xlane.f32.xlu0 %v3878
        %v3880 = vpop.xlane.xlu0 %3879
        %v3881 = vsel %vm690, %v3859, 0.0
        %3882 = vadd.xlane.f32.xlu0 %v3881
        %v3883 = vpop.xlane.xlu0 %3882
        %v3884 = vrcp.pop %v3862
        %v3885 = vrcp.pop %v3865
        %v3886 = vrcp.pop %v3868
        %v3887 = vrcp.pop %v3871
        %v3888 = vrcp.pop %v3874
        %v3889 = vrcp.pop %v3877
        %v3890 = vrcp.pop %v3880
        %v3891 = vrcp.pop %v3883
        %v3892 = vmul.f32 %v3845, %v3884
        %v3893 = vmul.f32 %v3847, %v3885
        %v3894 = vmul.f32 %v3849, %v3886
        %v3895 = vmul.f32 %v3851, %v3887
        %v3896 = vmul.f32 %v3853, %v3888
        %v3897 = vmul.f32 %v3855, %v3889
        %v3898 = vmul.f32 %v3857, %v3890
        %v3899 = vmul.f32 %v3859, %v3891
        %3900 = vrot.lane.b32.xlu0 %v3183, 56
        %v3901 = vpop.permute.xlu0 %3900
        %3902 = vrot.lane.b32.xlu0 %v3184, 56
        %v3903 = vpop.permute.xlu0 %3902
        %3904 = vrot.lane.b32.xlu0 %v3185, 56
        %v3905 = vpop.permute.xlu0 %3904
        %3906 = vrot.lane.b32.xlu0 %v3186, 56
        %v3907 = vpop.permute.xlu0 %3906
        %3908 = vrot.lane.b32.xlu0 %v3187, 56
        %v3909 = vpop.permute.xlu0 %3908
        %3910 = vrot.lane.b32.xlu0 %v3188, 56
        %v3911 = vpop.permute.xlu0 %3910
        %3912 = vrot.lane.b32.xlu0 %v3189, 56
        %v3913 = vpop.permute.xlu0 %3912
        %3914 = vrot.lane.b32.xlu0 %v3190, 56
        %v3915 = vpop.permute.xlu0 %3914
        %v3925 = vsel %vm690, %v3892, 0
        %v3928 = vsel %vm690, %v3893, 0
        %v3931 = vsel %vm690, %v3894, 0
        %v3934 = vsel %vm690, %v3895, 0
        %v3937 = vsel %vm690, %v3896, 0
        %v3940 = vsel %vm690, %v3897, 0
        %v3943 = vsel %vm690, %v3898, 0
        %v3946 = vsel %vm690, %v3899, 0
        %3948 = vmatprep.subr.mxu0 0.0
        %3949 = vmatpush1.msra.mxu0 %v3901
        %3950 = vmatprep.subr.mxu0 0.0
        %3951 = vmatpush1.msra.mxu0 %v3903
        %3952 = vmatprep.subr.mxu0 0.0
        %3953 = vmatpush1.msra.mxu0 %v3905
        %3954 = vmatprep.subr.mxu0 0.0
        %3955 = vmatpush1.msra.mxu0 %v3907
        %3956 = vmatprep.subr.mxu0 0.0
        %3957 = vmatpush1.msra.mxu0 %v3909
        %3958 = vmatprep.subr.mxu0 0.0
        %3959 = vmatpush1.msra.mxu0 %v3911
        %3960 = vmatprep.subr.mxu0 0.0
        %3961 = vmatpush1.msra.mxu0 %v3913
        %3962 = vmatprep.subr.mxu0 0.0
        %3963 = vmatpush1.msra.mxu0 %v3915
        %3964 = vmatprep.subr.mxu0 0.0
        %3965 = vmatpush1.msra.mxu0 0.0
        %3966 = vmatprep.subr.mxu0 0.0
        %3967 = vmatpush1.msra.mxu0 0.0
        %3968 = vmatprep.subr.mxu0 0.0
        %3969 = vmatpush1.msra.mxu0 0.0
        %3970 = vmatprep.subr.mxu0 0.0
        %3971 = vmatpush1.msra.mxu0 0.0
        %3972 = vmatprep.subr.mxu0 0.0
        %3973 = vmatpush1.msra.mxu0 0.0
        %3974 = vmatprep.subr.mxu0 0.0
        %3975 = vmatpush1.msra.mxu0 0.0
        %3976 = vmatprep.subr.mxu0 0.0
        %3977 = vmatpush1.msra.mxu0 0.0
        %3978 = vmatprep.subr.mxu0 0.0
        %3979 = vmatpush1.msra.mxu0 0.0
        %3980 = vmatprep.subr.mxu0 0.0
        %3981 = vmatpush1.msra.mxu0 0.0
        %3982 = vmatprep.subr.mxu0 0.0
        %3983 = vmatpush1.msra.mxu0 0.0
        %3984 = vmatprep.subr.mxu0 0.0
        %3985 = vmatpush1.msra.mxu0 0.0
        %3986 = vmatprep.subr.mxu0 0.0
        %3987 = vmatpush1.msra.mxu0 0.0
        %3988 = vmatprep.subr.mxu0 0.0
        %3989 = vmatpush1.msra.mxu0 0.0
        %3990 = vmatprep.subr.mxu0 0.0
        %3991 = vmatpush1.msra.mxu0 0.0
        %3992 = vmatprep.subr.mxu0 0.0
        %3993 = vmatpush1.msra.mxu0 0.0
        %3994 = vmatprep.subr.mxu0 0.0
        %3995 = vmatpush1.msra.mxu0 0.0
        %3996 = vmatprep.subr.mxu0 0.0
        %3997 = vmatpush1.msra.mxu0 0.0
        %3998 = vmatprep.subr.mxu0 0.0
        %3999 = vmatpush1.msra.mxu0 0.0
        %4000 = vmatprep.subr.mxu0 0.0
        %4001 = vmatpush1.msra.mxu0 0.0
        %4002 = vmatprep.subr.mxu0 0.0
        %4003 = vmatpush1.msra.mxu0 0.0
        %4004 = vmatprep.subr.mxu0 0.0
        %4005 = vmatpush1.msra.mxu0 0.0
        %4006 = vmatprep.subr.mxu0 0.0
        %4007 = vmatpush1.msra.mxu0 0.0
        %4008 = vmatprep.subr.mxu0 0.0
        %4009 = vmatpush1.msra.mxu0 0.0
        %4010 = vmatprep.subr.mxu0 0.0
        %4011 = vmatpush1.msra.mxu0 0.0
        %4012 = vmatprep.mubr.f32.mxu0 0.0
        %4013 = vmatmul.mubr.f32.gmra.mrb[0].mxu0 %v3925
        %v4014 = vpop.f32.mrb[0].mxu0
        %v4015 = vadd.f32 0.0, %v4014
        %v4016 = vpop.f32.mrb[0].mxu0
        %4017 = vmatprep.mubr.f32.mxu0 0.0
        %4018 = vmatmul.mubr.f32.gmra.mrb[0].mxu0 %v3928
        %v4019 = vpop.f32.mrb[0].mxu0
        %v4020 = vadd.f32 0.0, %v4019
        %v4021 = vpop.f32.mrb[0].mxu0
        %4022 = vmatprep.mubr.f32.mxu0 0.0
        %4023 = vmatmul.mubr.f32.gmra.mrb[0].mxu0 %v3931
        %v4024 = vpop.f32.mrb[0].mxu0
        %v4025 = vadd.f32 0.0, %v4024
        %v4026 = vpop.f32.mrb[0].mxu0
        %4027 = vmatprep.mubr.f32.mxu0 0.0
        %4028 = vmatmul.mubr.f32.gmra.mrb[0].mxu0 %v3934
        %v4029 = vpop.f32.mrb[0].mxu0
        %v4030 = vadd.f32 0.0, %v4029
        %v4031 = vpop.f32.mrb[0].mxu0
        %4032 = vmatprep.mubr.f32.mxu0 0.0
        %4033 = vmatmul.mubr.f32.gmra.mrb[0].mxu0 %v3937
        %v4034 = vpop.f32.mrb[0].mxu0
        %v4035 = vadd.f32 0.0, %v4034
        %v4036 = vpop.f32.mrb[0].mxu0
        %4037 = vmatprep.mubr.f32.mxu0 0.0
        %4038 = vmatmul.mubr.f32.gmra.mrb[0].mxu0 %v3940
        %v4039 = vpop.f32.mrb[0].mxu0
        %v4040 = vadd.f32 0.0, %v4039
        %v4041 = vpop.f32.mrb[0].mxu0
        %4042 = vmatprep.mubr.f32.mxu0 0.0
        %4043 = vmatmul.mubr.f32.gmra.mrb[0].mxu0 %v3943
        %v4044 = vpop.f32.mrb[0].mxu0
        %v4045 = vadd.f32 0.0, %v4044
        %v4046 = vpop.f32.mrb[0].mxu0
        %4047 = vmatprep.mubr.f32.mxu0 0.0
        %4048 = vmatmul.mubr.f32.gmra.mrb[0].mxu0 %v3946
        %v4049 = vpop.f32.mrb[0].mxu0
        %v4050 = vadd.f32 0.0, %v4049
        %v4051 = vpop.f32.mrb[0].mxu0
        %4052 = vdwg.mxu0
        %s4053 = scalar_lea.vmem [#allocation4], 192
        %v4054 = vld [vmem:[%s4053] sm:$0xf]
        %v4055 = vld [vmem:[%s4053 + $0x4] sm:$0xf]
        %v4056 = vld [vmem:[%s4053 + $0x8] sm:$0xf]
        %v4057 = vld [vmem:[%s4053 + $0xc] sm:$0xf]
        %v4058 = vld [vmem:[%s4053 + $0x10] sm:$0xf]
        %v4059 = vld [vmem:[%s4053 + $0x14] sm:$0xf]
        %v4060 = vld [vmem:[%s4053 + $0x18] sm:$0xf]
        %v4061 = vld [vmem:[%s4053 + $0x1c] sm:$0xf]
        %v4062 = vunpack.c.l.bf16 %v4054
        %v4063 = vunpack.c.l.bf16 %v4055
        %v4064 = vunpack.c.l.bf16 %v4056
        %v4065 = vunpack.c.l.bf16 %v4057
        %v4066 = vunpack.c.l.bf16 %v4058
        %v4067 = vunpack.c.l.bf16 %v4059
        %v4068 = vunpack.c.l.bf16 %v4060
        %v4069 = vunpack.c.l.bf16 %v4061
        %4070 = vrot.lane.b32.xlu0 %v3191, 112
        %v4071 = vpop.permute.xlu0 %4070
        %4072 = vrot.lane.b32.xlu0 %v3192, 112
        %v4073 = vpop.permute.xlu0 %4072
        %4074 = vrot.lane.b32.xlu0 %v3193, 112
        %v4075 = vpop.permute.xlu0 %4074
        %4076 = vrot.lane.b32.xlu0 %v3194, 112
        %v4077 = vpop.permute.xlu0 %4076
        %4078 = vrot.lane.b32.xlu0 %v3195, 112
        %v4079 = vpop.permute.xlu0 %4078
        %4080 = vrot.lane.b32.xlu0 %v3196, 112
        %v4081 = vpop.permute.xlu0 %4080
        %4082 = vrot.lane.b32.xlu0 %v3197, 112
        %v4083 = vpop.permute.xlu0 %4082
        %4084 = vrot.lane.b32.xlu0 %v3198, 112
        %v4085 = vpop.permute.xlu0 %4084
        %4086 = vrot.lane.b32.xlu0 %v3183, 80
        %v4087 = vpop.permute.xlu0 %4086
        %4088 = vrot.lane.b32.xlu0 %v3184, 80
        %v4089 = vpop.permute.xlu0 %4088
        %4090 = vrot.lane.b32.xlu0 %v3185, 80
        %v4091 = vpop.permute.xlu0 %4090
        %4092 = vrot.lane.b32.xlu0 %v3186, 80
        %v4093 = vpop.permute.xlu0 %4092
        %4094 = vrot.lane.b32.xlu0 %v3187, 80
        %v4095 = vpop.permute.xlu0 %4094
        %4096 = vrot.lane.b32.xlu0 %v3188, 80
        %v4097 = vpop.permute.xlu0 %4096
        %4098 = vrot.lane.b32.xlu0 %v3189, 80
        %v4099 = vpop.permute.xlu0 %4098
        %4100 = vrot.lane.b32.xlu0 %v3190, 80
        %v4101 = vpop.permute.xlu0 %4100
        %v4102 = vsel %vm544, %v4071, 0
        %v4104 = vsel %vm544, %v4073, 0
        %v4106 = vsel %vm544, %v4075, 0
        %v4108 = vsel %vm544, %v4077, 0
        %v4110 = vsel %vm544, %v4079, 0
        %v4112 = vsel %vm544, %v4081, 0
        %v4114 = vsel %vm544, %v4083, 0
        %v4116 = vsel %vm544, %v4085, 0
        %v4118 = vsel %vm544, %v4087, 0
        %v4120 = vsel %vm544, %v4089, 0
        %v4122 = vsel %vm544, %v4091, 0
        %v4124 = vsel %vm544, %v4093, 0
        %v4126 = vsel %vm544, %v4095, 0
        %v4128 = vsel %vm544, %v4097, 0
        %v4130 = vsel %vm544, %v4099, 0
        %v4132 = vsel %vm544, %v4101, 0
        %4134 = vmatprep.subr.mxu0 0.0
        %4135 = vmatpush1.xpose.msra.mxu0 %v4118
        %4136 = vmatprep.subr.mxu0 0.0
        %4137 = vmatpush1.xpose.msra.mxu0 %v4120
        %4138 = vmatprep.subr.mxu0 0.0
        %4139 = vmatpush1.xpose.msra.mxu0 %v4122
        %4140 = vmatprep.subr.mxu0 0.0
        %4141 = vmatpush1.xpose.msra.mxu0 %v4124
        %4142 = vmatprep.subr.mxu0 0.0
        %4143 = vmatpush1.xpose.msra.mxu0 %v4126
        %4144 = vmatprep.subr.mxu0 0.0
        %4145 = vmatpush1.xpose.msra.mxu0 %v4128
        %4146 = vmatprep.subr.mxu0 0.0
        %4147 = vmatpush1.xpose.msra.mxu0 %v4130
        %4148 = vmatprep.subr.mxu0 0.0
        %4149 = vmatpush1.xpose.msra.mxu0 %v4132
        %4150 = vmatprep.subr.mxu0 0.0
        %4151 = vmatpush1.xpose.msra.mxu0 0.0
        %4152 = vmatprep.subr.mxu0 0.0
        %4153 = vmatpush1.xpose.msra.mxu0 0.0
        %4154 = vmatprep.subr.mxu0 0.0
        %4155 = vmatpush1.xpose.msra.mxu0 0.0
        %4156 = vmatprep.subr.mxu0 0.0
        %4157 = vmatpush1.xpose.msra.mxu0 0.0
        %4158 = vmatprep.subr.mxu0 0.0
        %4159 = vmatpush1.xpose.msra.mxu0 0.0
        %4160 = vmatprep.subr.mxu0 0.0
        %4161 = vmatpush1.xpose.msra.mxu0 0.0
        %4162 = vmatprep.subr.mxu0 0.0
        %4163 = vmatpush1.xpose.msra.mxu0 0.0
        %4164 = vmatprep.subr.mxu0 0.0
        %4165 = vmatpush1.xpose.msra.mxu0 0.0
        %4166 = vmatprep.subr.mxu0 0.0
        %4167 = vmatpush1.xpose.msra.mxu0 0.0
        %4168 = vmatprep.subr.mxu0 0.0
        %4169 = vmatpush1.xpose.msra.mxu0 0.0
        %4170 = vmatprep.subr.mxu0 0.0
        %4171 = vmatpush1.xpose.msra.mxu0 0.0
        %4172 = vmatprep.subr.mxu0 0.0
        %4173 = vmatpush1.xpose.msra.mxu0 0.0
        %4174 = vmatprep.subr.mxu0 0.0
        %4175 = vmatpush1.xpose.msra.mxu0 0.0
        %4176 = vmatprep.subr.mxu0 0.0
        %4177 = vmatpush1.xpose.msra.mxu0 0.0
        %4178 = vmatprep.subr.mxu0 0.0
        %4179 = vmatpush1.xpose.msra.mxu0 0.0
        %4180 = vmatprep.subr.mxu0 0.0
        %4181 = vmatpush1.xpose.msra.mxu0 0.0
        %4182 = vmatprep.subr.mxu0 0.0
        %4183 = vmatpush1.xpose.msra.mxu0 0.0
        %4184 = vmatprep.subr.mxu0 0.0
        %4185 = vmatpush1.xpose.msra.mxu0 0.0
        %4186 = vmatprep.subr.mxu0 0.0
        %4187 = vmatpush1.xpose.msra.mxu0 0.0
        %4188 = vmatprep.subr.mxu0 0.0
        %4189 = vmatpush1.xpose.msra.mxu0 0.0
        %4190 = vmatprep.subr.mxu0 0.0
        %4191 = vmatpush1.xpose.msra.mxu0 0.0
        %4192 = vmatprep.subr.mxu0 0.0
        %4193 = vmatpush1.xpose.msra.mxu0 0.0
        %4194 = vmatprep.subr.mxu0 0.0
        %4195 = vmatpush1.xpose.msra.mxu0 0.0
        %4196 = vmatprep.subr.mxu0 0.0
        %4197 = vmatpush1.xpose.msra.mxu0 0.0
        %4198 = vmatprep.mubr.f32.mxu0 0.0
        %4199 = vmatmul.mubr.f32.gmra.mrb[0].mxu0 %v4102
        %v4200 = vpop.f32.mrb[0].mxu0
        %v4201 = vadd.f32 %v4062, %v4200
        %v4202 = vpop.f32.mrb[0].mxu0
        %4203 = vmatprep.mubr.f32.mxu0 0.0
        %4204 = vmatmul.mubr.f32.gmra.mrb[0].mxu0 %v4104
        %v4205 = vpop.f32.mrb[0].mxu0
        %v4206 = vadd.f32 %v4063, %v4205
        %v4207 = vpop.f32.mrb[0].mxu0
        %4208 = vmatprep.mubr.f32.mxu0 0.0
        %4209 = vmatmul.mubr.f32.gmra.mrb[0].mxu0 %v4106
        %v4210 = vpop.f32.mrb[0].mxu0
        %v4211 = vadd.f32 %v4064, %v4210
        %v4212 = vpop.f32.mrb[0].mxu0
        %4213 = vmatprep.mubr.f32.mxu0 0.0
        %4214 = vmatmul.mubr.f32.gmra.mrb[0].mxu0 %v4108
        %v4215 = vpop.f32.mrb[0].mxu0
        %v4216 = vadd.f32 %v4065, %v4215
        %v4217 = vpop.f32.mrb[0].mxu0
        %4218 = vmatprep.mubr.f32.mxu0 0.0
        %4219 = vmatmul.mubr.f32.gmra.mrb[0].mxu0 %v4110
        %v4220 = vpop.f32.mrb[0].mxu0
        %v4221 = vadd.f32 %v4066, %v4220
        %v4222 = vpop.f32.mrb[0].mxu0
        %4223 = vmatprep.mubr.f32.mxu0 0.0
        %4224 = vmatmul.mubr.f32.gmra.mrb[0].mxu0 %v4112
        %v4225 = vpop.f32.mrb[0].mxu0
        %v4226 = vadd.f32 %v4067, %v4225
        %v4227 = vpop.f32.mrb[0].mxu0
        %4228 = vmatprep.mubr.f32.mxu0 0.0
        %4229 = vmatmul.mubr.f32.gmra.mrb[0].mxu0 %v4114
        %v4230 = vpop.f32.mrb[0].mxu0
        %v4231 = vadd.f32 %v4068, %v4230
        %v4232 = vpop.f32.mrb[0].mxu0
        %4233 = vmatprep.mubr.f32.mxu0 0.0
        %4234 = vmatmul.mubr.f32.gmra.mrb[0].mxu0 %v4116
        %v4235 = vpop.f32.mrb[0].mxu0
        %v4236 = vadd.f32 %v4069, %v4235
        %v4237 = vpop.f32.mrb[0].mxu0
        %4238 = vdwg.mxu0
        %v4239 = vsel %vm690, %v4201, -inf
        %4240 = vmax.xlane.f32.xlu0 %v4239
        %v4241 = vpop.xlane.xlu0 %4240
        %v4242 = vsel %vm690, %v4206, -inf
        %4243 = vmax.xlane.f32.xlu0 %v4242
        %v4244 = vpop.xlane.xlu0 %4243
        %v4245 = vsel %vm690, %v4211, -inf
        %4246 = vmax.xlane.f32.xlu0 %v4245
        %v4247 = vpop.xlane.xlu0 %4246
        %v4248 = vsel %vm690, %v4216, -inf
        %4249 = vmax.xlane.f32.xlu0 %v4248
        %v4250 = vpop.xlane.xlu0 %4249
        %v4251 = vsel %vm690, %v4221, -inf
        %4252 = vmax.xlane.f32.xlu0 %v4251
        %v4253 = vpop.xlane.xlu0 %4252
        %v4254 = vsel %vm690, %v4226, -inf
        %4255 = vmax.xlane.f32.xlu0 %v4254
        %v4256 = vpop.xlane.xlu0 %4255
        %v4257 = vsel %vm690, %v4231, -inf
        %4258 = vmax.xlane.f32.xlu0 %v4257
        %v4259 = vpop.xlane.xlu0 %4258
        %v4260 = vsel %vm690, %v4236, -inf
        %4261 = vmax.xlane.f32.xlu0 %v4260
        %v4262 = vpop.xlane.xlu0 %4261
        %v4263 = vsub.f32 %v4201, %v4241
        %v4264 = vsub.f32 %v4206, %v4244
        %v4265 = vsub.f32 %v4211, %v4247
        %v4266 = vsub.f32 %v4216, %v4250
        %v4267 = vsub.f32 %v4221, %v4253
        %v4268 = vsub.f32 %v4226, %v4256
        %v4269 = vsub.f32 %v4231, %v4259
        %v4270 = vsub.f32 %v4236, %v4262
        %v4271 = vmul.f32 %v4263, 1.442695
        %v4272 = vpow.pop %v4271
        %v4273 = vmul.f32 %v4264, 1.442695
        %v4274 = vpow.pop %v4273
        %v4275 = vmul.f32 %v4265, 1.442695
        %v4276 = vpow.pop %v4275
        %v4277 = vmul.f32 %v4266, 1.442695
        %v4278 = vpow.pop %v4277
        %v4279 = vmul.f32 %v4267, 1.442695
        %v4280 = vpow.pop %v4279
        %v4281 = vmul.f32 %v4268, 1.442695
        %v4282 = vpow.pop %v4281
        %v4283 = vmul.f32 %v4269, 1.442695
        %v4284 = vpow.pop %v4283
        %v4285 = vmul.f32 %v4270, 1.442695
        %v4286 = vpow.pop %v4285
        %v4287 = vsel %vm690, %v4272, 0.0
        %4288 = vadd.xlane.f32.xlu0 %v4287
        %v4289 = vpop.xlane.xlu0 %4288
        %v4290 = vsel %vm690, %v4274, 0.0
        %4291 = vadd.xlane.f32.xlu0 %v4290
        %v4292 = vpop.xlane.xlu0 %4291
        %v4293 = vsel %vm690, %v4276, 0.0
        %4294 = vadd.xlane.f32.xlu0 %v4293
        %v4295 = vpop.xlane.xlu0 %4294
        %v4296 = vsel %vm690, %v4278, 0.0
        %4297 = vadd.xlane.f32.xlu0 %v4296
        %v4298 = vpop.xlane.xlu0 %4297
        %v4299 = vsel %vm690, %v4280, 0.0
        %4300 = vadd.xlane.f32.xlu0 %v4299
        %v4301 = vpop.xlane.xlu0 %4300
        %v4302 = vsel %vm690, %v4282, 0.0
        %4303 = vadd.xlane.f32.xlu0 %v4302
        %v4304 = vpop.xlane.xlu0 %4303
        %v4305 = vsel %vm690, %v4284, 0.0
        %4306 = vadd.xlane.f32.xlu0 %v4305
        %v4307 = vpop.xlane.xlu0 %4306
        %v4308 = vsel %vm690, %v4286, 0.0
        %4309 = vadd.xlane.f32.xlu0 %v4308
        %v4310 = vpop.xlane.xlu0 %4309
        %v4311 = vrcp.pop %v4289
        %v4312 = vrcp.pop %v4292
        %v4313 = vrcp.pop %v4295
        %v4314 = vrcp.pop %v4298
        %v4315 = vrcp.pop %v4301
        %v4316 = vrcp.pop %v4304
        %v4317 = vrcp.pop %v4307
        %v4318 = vrcp.pop %v4310
        %v4319 = vmul.f32 %v4272, %v4311
        %v4320 = vmul.f32 %v4274, %v4312
        %v4321 = vmul.f32 %v4276, %v4313
        %v4322 = vmul.f32 %v4278, %v4314
        %v4323 = vmul.f32 %v4280, %v4315
        %v4324 = vmul.f32 %v4282, %v4316
        %v4325 = vmul.f32 %v4284, %v4317
        %v4326 = vmul.f32 %v4286, %v4318
        %4327 = vrot.lane.b32.xlu0 %v3183, 48
        %v4328 = vpop.permute.xlu0 %4327
        %4329 = vrot.lane.b32.xlu0 %v3184, 48
        %v4330 = vpop.permute.xlu0 %4329
        %4331 = vrot.lane.b32.xlu0 %v3185, 48
        %v4332 = vpop.permute.xlu0 %4331
        %4333 = vrot.lane.b32.xlu0 %v3186, 48
        %v4334 = vpop.permute.xlu0 %4333
        %4335 = vrot.lane.b32.xlu0 %v3187, 48
        %v4336 = vpop.permute.xlu0 %4335
        %4337 = vrot.lane.b32.xlu0 %v3188, 48
        %v4338 = vpop.permute.xlu0 %4337
        %4339 = vrot.lane.b32.xlu0 %v3189, 48
        %v4340 = vpop.permute.xlu0 %4339
        %4341 = vrot.lane.b32.xlu0 %v3190, 48
        %v4342 = vpop.permute.xlu0 %4341
        %v4352 = vsel %vm690, %v4319, 0
        %v4355 = vsel %vm690, %v4320, 0
        %v4358 = vsel %vm690, %v4321, 0
        %v4361 = vsel %vm690, %v4322, 0
        %v4364 = vsel %vm690, %v4323, 0
        %v4367 = vsel %vm690, %v4324, 0
        %v4370 = vsel %vm690, %v4325, 0
        %v4373 = vsel %vm690, %v4326, 0
        %4375 = vmatprep.subr.mxu0 0.0
        %4376 = vmatpush1.msra.mxu0 %v4328
        %4377 = vmatprep.subr.mxu0 0.0
        %4378 = vmatpush1.msra.mxu0 %v4330
        %4379 = vmatprep.subr.mxu0 0.0
        %4380 = vmatpush1.msra.mxu0 %v4332
        %4381 = vmatprep.subr.mxu0 0.0
        %4382 = vmatpush1.msra.mxu0 %v4334
        %4383 = vmatprep.subr.mxu0 0.0
        %4384 = vmatpush1.msra.mxu0 %v4336
        %4385 = vmatprep.subr.mxu0 0.0
        %4386 = vmatpush1.msra.mxu0 %v4338
        %4387 = vmatprep.subr.mxu0 0.0
        %4388 = vmatpush1.msra.mxu0 %v4340
        %4389 = vmatprep.subr.mxu0 0.0
        %4390 = vmatpush1.msra.mxu0 %v4342
        %4391 = vmatprep.subr.mxu0 0.0
        %4392 = vmatpush1.msra.mxu0 0.0
        %4393 = vmatprep.subr.mxu0 0.0
        %4394 = vmatpush1.msra.mxu0 0.0
        %4395 = vmatprep.subr.mxu0 0.0
        %4396 = vmatpush1.msra.mxu0 0.0
        %4397 = vmatprep.subr.mxu0 0.0
        %4398 = vmatpush1.msra.mxu0 0.0
        %4399 = vmatprep.subr.mxu0 0.0
        %4400 = vmatpush1.msra.mxu0 0.0
        %4401 = vmatprep.subr.mxu0 0.0
        %4402 = vmatpush1.msra.mxu0 0.0
        %4403 = vmatprep.subr.mxu0 0.0
        %4404 = vmatpush1.msra.mxu0 0.0
        %4405 = vmatprep.subr.mxu0 0.0
        %4406 = vmatpush1.msra.mxu0 0.0
        %4407 = vmatprep.subr.mxu0 0.0
        %4408 = vmatpush1.msra.mxu0 0.0
        %4409 = vmatprep.subr.mxu0 0.0
        %4410 = vmatpush1.msra.mxu0 0.0
        %4411 = vmatprep.subr.mxu0 0.0
        %4412 = vmatpush1.msra.mxu0 0.0
        %4413 = vmatprep.subr.mxu0 0.0
        %4414 = vmatpush1.msra.mxu0 0.0
        %4415 = vmatprep.subr.mxu0 0.0
        %4416 = vmatpush1.msra.mxu0 0.0
        %4417 = vmatprep.subr.mxu0 0.0
        %4418 = vmatpush1.msra.mxu0 0.0
        %4419 = vmatprep.subr.mxu0 0.0
        %4420 = vmatpush1.msra.mxu0 0.0
        %4421 = vmatprep.subr.mxu0 0.0
        %4422 = vmatpush1.msra.mxu0 0.0
        %4423 = vmatprep.subr.mxu0 0.0
        %4424 = vmatpush1.msra.mxu0 0.0
        %4425 = vmatprep.subr.mxu0 0.0
        %4426 = vmatpush1.msra.mxu0 0.0
        %4427 = vmatprep.subr.mxu0 0.0
        %4428 = vmatpush1.msra.mxu0 0.0
        %4429 = vmatprep.subr.mxu0 0.0
        %4430 = vmatpush1.msra.mxu0 0.0
        %4431 = vmatprep.subr.mxu0 0.0
        %4432 = vmatpush1.msra.mxu0 0.0
        %4433 = vmatprep.subr.mxu0 0.0
        %4434 = vmatpush1.msra.mxu0 0.0
        %4435 = vmatprep.subr.mxu0 0.0
        %4436 = vmatpush1.msra.mxu0 0.0
        %4437 = vmatprep.subr.mxu0 0.0
        %4438 = vmatpush1.msra.mxu0 0.0
        %4439 = vmatprep.mubr.f32.mxu0 0.0
        %4440 = vmatmul.mubr.f32.gmra.mrb[0].mxu0 %v4352
        %v4441 = vpop.f32.mrb[0].mxu0
        %v4442 = vadd.f32 0.0, %v4441
        %v4443 = vpop.f32.mrb[0].mxu0
        %4444 = vmatprep.mubr.f32.mxu0 0.0
        %4445 = vmatmul.mubr.f32.gmra.mrb[0].mxu0 %v4355
        %v4446 = vpop.f32.mrb[0].mxu0
        %v4447 = vadd.f32 0.0, %v4446
        %v4448 = vpop.f32.mrb[0].mxu0
        %4449 = vmatprep.mubr.f32.mxu0 0.0
        %4450 = vmatmul.mubr.f32.gmra.mrb[0].mxu0 %v4358
        %v4451 = vpop.f32.mrb[0].mxu0
        %v4452 = vadd.f32 0.0, %v4451
        %v4453 = vpop.f32.mrb[0].mxu0
        %4454 = vmatprep.mubr.f32.mxu0 0.0
        %4455 = vmatmul.mubr.f32.gmra.mrb[0].mxu0 %v4361
        %v4456 = vpop.f32.mrb[0].mxu0
        %v4457 = vadd.f32 0.0, %v4456
        %v4458 = vpop.f32.mrb[0].mxu0
        %4459 = vmatprep.mubr.f32.mxu0 0.0
        %4460 = vmatmul.mubr.f32.gmra.mrb[0].mxu0 %v4364
        %v4461 = vpop.f32.mrb[0].mxu0
        %v4462 = vadd.f32 0.0, %v4461
        %v4463 = vpop.f32.mrb[0].mxu0
        %4464 = vmatprep.mubr.f32.mxu0 0.0
        %4465 = vmatmul.mubr.f32.gmra.mrb[0].mxu0 %v4367
        %v4466 = vpop.f32.mrb[0].mxu0
        %v4467 = vadd.f32 0.0, %v4466
        %v4468 = vpop.f32.mrb[0].mxu0
        %4469 = vmatprep.mubr.f32.mxu0 0.0
        %4470 = vmatmul.mubr.f32.gmra.mrb[0].mxu0 %v4370
        %v4471 = vpop.f32.mrb[0].mxu0
        %v4472 = vadd.f32 0.0, %v4471
        %v4473 = vpop.f32.mrb[0].mxu0
        %4474 = vmatprep.mubr.f32.mxu0 0.0
        %4475 = vmatmul.mubr.f32.gmra.mrb[0].mxu0 %v4373
        %v4476 = vpop.f32.mrb[0].mxu0
        %v4477 = vadd.f32 0.0, %v4476
        %v4478 = vpop.f32.mrb[0].mxu0
        %4479 = vdwg.mxu0
        %s4480 = scalar_lea.vmem [#allocation4], 224
        %v4481 = vld [vmem:[%s4480] sm:$0xf]
        %v4482 = vld [vmem:[%s4480 + $0x4] sm:$0xf]
        %v4483 = vld [vmem:[%s4480 + $0x8] sm:$0xf]
        %v4484 = vld [vmem:[%s4480 + $0xc] sm:$0xf]
        %v4485 = vld [vmem:[%s4480 + $0x10] sm:$0xf]
        %v4486 = vld [vmem:[%s4480 + $0x14] sm:$0xf]
        %v4487 = vld [vmem:[%s4480 + $0x18] sm:$0xf]
        %v4488 = vld [vmem:[%s4480 + $0x1c] sm:$0xf]
        %v4489 = vunpack.c.l.bf16 %v4481
        %v4490 = vunpack.c.l.bf16 %v4482
        %v4491 = vunpack.c.l.bf16 %v4483
        %v4492 = vunpack.c.l.bf16 %v4484
        %v4493 = vunpack.c.l.bf16 %v4485
        %v4494 = vunpack.c.l.bf16 %v4486
        %v4495 = vunpack.c.l.bf16 %v4487
        %v4496 = vunpack.c.l.bf16 %v4488
        %4497 = vrot.lane.b32.xlu0 %v3191, 104
        %v4498 = vpop.permute.xlu0 %4497
        %4499 = vrot.lane.b32.xlu0 %v3192, 104
        %v4500 = vpop.permute.xlu0 %4499
        %4501 = vrot.lane.b32.xlu0 %v3193, 104
        %v4502 = vpop.permute.xlu0 %4501
        %4503 = vrot.lane.b32.xlu0 %v3194, 104
        %v4504 = vpop.permute.xlu0 %4503
        %4505 = vrot.lane.b32.xlu0 %v3195, 104
        %v4506 = vpop.permute.xlu0 %4505
        %4507 = vrot.lane.b32.xlu0 %v3196, 104
        %v4508 = vpop.permute.xlu0 %4507
        %4509 = vrot.lane.b32.xlu0 %v3197, 104
        %v4510 = vpop.permute.xlu0 %4509
        %4511 = vrot.lane.b32.xlu0 %v3198, 104
        %v4512 = vpop.permute.xlu0 %4511
        %4513 = vrot.lane.b32.xlu0 %v3183, 72
        %v4514 = vpop.permute.xlu0 %4513
        %4515 = vrot.lane.b32.xlu0 %v3184, 72
        %v4516 = vpop.permute.xlu0 %4515
        %4517 = vrot.lane.b32.xlu0 %v3185, 72
        %v4518 = vpop.permute.xlu0 %4517
        %4519 = vrot.lane.b32.xlu0 %v3186, 72
        %v4520 = vpop.permute.xlu0 %4519
        %4521 = vrot.lane.b32.xlu0 %v3187, 72
        %v4522 = vpop.permute.xlu0 %4521
        %4523 = vrot.lane.b32.xlu0 %v3188, 72
        %v4524 = vpop.permute.xlu0 %4523
        %4525 = vrot.lane.b32.xlu0 %v3189, 72
        %v4526 = vpop.permute.xlu0 %4525
        %4527 = vrot.lane.b32.xlu0 %v3190, 72
        %v4528 = vpop.permute.xlu0 %4527
        %v4529 = vsel %vm544, %v4498, 0
        %v4531 = vsel %vm544, %v4500, 0
        %v4533 = vsel %vm544, %v4502, 0
        %v4535 = vsel %vm544, %v4504, 0
        %v4537 = vsel %vm544, %v4506, 0
        %v4539 = vsel %vm544, %v4508, 0
        %v4541 = vsel %vm544, %v4510, 0
        %v4543 = vsel %vm544, %v4512, 0
        %v4545 = vsel %vm544, %v4514, 0
        %v4547 = vsel %vm544, %v4516, 0
        %v4549 = vsel %vm544, %v4518, 0
        %v4551 = vsel %vm544, %v4520, 0
        %v4553 = vsel %vm544, %v4522, 0
        %v4555 = vsel %vm544, %v4524, 0
        %v4557 = vsel %vm544, %v4526, 0
        %v4559 = vsel %vm544, %v4528, 0
        %4561 = vmatprep.subr.mxu0 0.0
        %4562 = vmatpush1.xpose.msra.mxu0 %v4545
        %4563 = vmatprep.subr.mxu0 0.0
        %4564 = vmatpush1.xpose.msra.mxu0 %v4547
        %4565 = vmatprep.subr.mxu0 0.0
        %4566 = vmatpush1.xpose.msra.mxu0 %v4549
        %4567 = vmatprep.subr.mxu0 0.0
        %4568 = vmatpush1.xpose.msra.mxu0 %v4551
        %4569 = vmatprep.subr.mxu0 0.0
        %4570 = vmatpush1.xpose.msra.mxu0 %v4553
        %4571 = vmatprep.subr.mxu0 0.0
        %4572 = vmatpush1.xpose.msra.mxu0 %v4555
        %4573 = vmatprep.subr.mxu0 0.0
        %4574 = vmatpush1.xpose.msra.mxu0 %v4557
        %4575 = vmatprep.subr.mxu0 0.0
        %4576 = vmatpush1.xpose.msra.mxu0 %v4559
        %4577 = vmatprep.subr.mxu0 0.0
        %4578 = vmatpush1.xpose.msra.mxu0 0.0
        %4579 = vmatprep.subr.mxu0 0.0
        %4580 = vmatpush1.xpose.msra.mxu0 0.0
        %4581 = vmatprep.subr.mxu0 0.0
        %4582 = vmatpush1.xpose.msra.mxu0 0.0
        %4583 = vmatprep.subr.mxu0 0.0
        %4584 = vmatpush1.xpose.msra.mxu0 0.0
        %4585 = vmatprep.subr.mxu0 0.0
        %4586 = vmatpush1.xpose.msra.mxu0 0.0
        %4587 = vmatprep.subr.mxu0 0.0
        %4588 = vmatpush1.xpose.msra.mxu0 0.0
        %4589 = vmatprep.subr.mxu0 0.0
        %4590 = vmatpush1.xpose.msra.mxu0 0.0
        %4591 = vmatprep.subr.mxu0 0.0
        %4592 = vmatpush1.xpose.msra.mxu0 0.0
        %4593 = vmatprep.subr.mxu0 0.0
        %4594 = vmatpush1.xpose.msra.mxu0 0.0
        %4595 = vmatprep.subr.mxu0 0.0
        %4596 = vmatpush1.xpose.msra.mxu0 0.0
        %4597 = vmatprep.subr.mxu0 0.0
        %4598 = vmatpush1.xpose.msra.mxu0 0.0
        %4599 = vmatprep.subr.mxu0 0.0
        %4600 = vmatpush1.xpose.msra.mxu0 0.0
        %4601 = vmatprep.subr.mxu0 0.0
        %4602 = vmatpush1.xpose.msra.mxu0 0.0
        %4603 = vmatprep.subr.mxu0 0.0
        %4604 = vmatpush1.xpose.msra.mxu0 0.0
        %4605 = vmatprep.subr.mxu0 0.0
        %4606 = vmatpush1.xpose.msra.mxu0 0.0
        %4607 = vmatprep.subr.mxu0 0.0
        %4608 = vmatpush1.xpose.msra.mxu0 0.0
        %4609 = vmatprep.subr.mxu0 0.0
        %4610 = vmatpush1.xpose.msra.mxu0 0.0
        %4611 = vmatprep.subr.mxu0 0.0
        %4612 = vmatpush1.xpose.msra.mxu0 0.0
        %4613 = vmatprep.subr.mxu0 0.0
        %4614 = vmatpush1.xpose.msra.mxu0 0.0
        %4615 = vmatprep.subr.mxu0 0.0
        %4616 = vmatpush1.xpose.msra.mxu0 0.0
        %4617 = vmatprep.subr.mxu0 0.0
        %4618 = vmatpush1.xpose.msra.mxu0 0.0
        %4619 = vmatprep.subr.mxu0 0.0
        %4620 = vmatpush1.xpose.msra.mxu0 0.0
        %4621 = vmatprep.subr.mxu0 0.0
        %4622 = vmatpush1.xpose.msra.mxu0 0.0
        %4623 = vmatprep.subr.mxu0 0.0
        %4624 = vmatpush1.xpose.msra.mxu0 0.0
        %4625 = vmatprep.mubr.f32.mxu0 0.0
        %4626 = vmatmul.mubr.f32.gmra.mrb[0].mxu0 %v4529
        %v4627 = vpop.f32.mrb[0].mxu0
        %v4628 = vadd.f32 %v4489, %v4627
        %v4629 = vpop.f32.mrb[0].mxu0
        %4630 = vmatprep.mubr.f32.mxu0 0.0
        %4631 = vmatmul.mubr.f32.gmra.mrb[0].mxu0 %v4531
        %v4632 = vpop.f32.mrb[0].mxu0
        %v4633 = vadd.f32 %v4490, %v4632
        %v4634 = vpop.f32.mrb[0].mxu0
        %4635 = vmatprep.mubr.f32.mxu0 0.0
        %4636 = vmatmul.mubr.f32.gmra.mrb[0].mxu0 %v4533
        %v4637 = vpop.f32.mrb[0].mxu0
        %v4638 = vadd.f32 %v4491, %v4637
        %v4639 = vpop.f32.mrb[0].mxu0
        %4640 = vmatprep.mubr.f32.mxu0 0.0
        %4641 = vmatmul.mubr.f32.gmra.mrb[0].mxu0 %v4535
        %v4642 = vpop.f32.mrb[0].mxu0
        %v4643 = vadd.f32 %v4492, %v4642
        %v4644 = vpop.f32.mrb[0].mxu0
        %4645 = vmatprep.mubr.f32.mxu0 0.0
        %4646 = vmatmul.mubr.f32.gmra.mrb[0].mxu0 %v4537
        %v4647 = vpop.f32.mrb[0].mxu0
        %v4648 = vadd.f32 %v4493, %v4647
        %v4649 = vpop.f32.mrb[0].mxu0
        %4650 = vmatprep.mubr.f32.mxu0 0.0
        %4651 = vmatmul.mubr.f32.gmra.mrb[0].mxu0 %v4539
        %v4652 = vpop.f32.mrb[0].mxu0
        %v4653 = vadd.f32 %v4494, %v4652
        %v4654 = vpop.f32.mrb[0].mxu0
        %4655 = vmatprep.mubr.f32.mxu0 0.0
        %4656 = vmatmul.mubr.f32.gmra.mrb[0].mxu0 %v4541
        %v4657 = vpop.f32.mrb[0].mxu0
        %v4658 = vadd.f32 %v4495, %v4657
        %v4659 = vpop.f32.mrb[0].mxu0
        %4660 = vmatprep.mubr.f32.mxu0 0.0
        %4661 = vmatmul.mubr.f32.gmra.mrb[0].mxu0 %v4543
        %v4662 = vpop.f32.mrb[0].mxu0
        %v4663 = vadd.f32 %v4496, %v4662
        %v4664 = vpop.f32.mrb[0].mxu0
        %4665 = vdwg.mxu0
        %v4666 = vsel %vm690, %v4628, -inf
        %4667 = vmax.xlane.f32.xlu0 %v4666
        %v4668 = vpop.xlane.xlu0 %4667
        %v4669 = vsel %vm690, %v4633, -inf
        %4670 = vmax.xlane.f32.xlu0 %v4669
        %v4671 = vpop.xlane.xlu0 %4670
        %v4672 = vsel %vm690, %v4638, -inf
        %4673 = vmax.xlane.f32.xlu0 %v4672
        %v4674 = vpop.xlane.xlu0 %4673
        %v4675 = vsel %vm690, %v4643, -inf
        %4676 = vmax.xlane.f32.xlu0 %v4675
        %v4677 = vpop.xlane.xlu0 %4676
        %v4678 = vsel %vm690, %v4648, -inf
        %4679 = vmax.xlane.f32.xlu0 %v4678
        %v4680 = vpop.xlane.xlu0 %4679
        %v4681 = vsel %vm690, %v4653, -inf
        %4682 = vmax.xlane.f32.xlu0 %v4681
        %v4683 = vpop.xlane.xlu0 %4682
        %v4684 = vsel %vm690, %v4658, -inf
        %4685 = vmax.xlane.f32.xlu0 %v4684
        %v4686 = vpop.xlane.xlu0 %4685
        %v4687 = vsel %vm690, %v4663, -inf
        %4688 = vmax.xlane.f32.xlu0 %v4687
        %v4689 = vpop.xlane.xlu0 %4688
        %v4690 = vsub.f32 %v4628, %v4668
        %v4691 = vsub.f32 %v4633, %v4671
        %v4692 = vsub.f32 %v4638, %v4674
        %v4693 = vsub.f32 %v4643, %v4677
        %v4694 = vsub.f32 %v4648, %v4680
        %v4695 = vsub.f32 %v4653, %v4683
        %v4696 = vsub.f32 %v4658, %v4686
        %v4697 = vsub.f32 %v4663, %v4689
        %v4698 = vmul.f32 %v4690, 1.442695
        %v4699 = vpow.pop %v4698
        %v4700 = vmul.f32 %v4691, 1.442695
        %v4701 = vpow.pop %v4700
        %v4702 = vmul.f32 %v4692, 1.442695
        %v4703 = vpow.pop %v4702
        %v4704 = vmul.f32 %v4693, 1.442695
        %v4705 = vpow.pop %v4704
        %v4706 = vmul.f32 %v4694, 1.442695
        %v4707 = vpow.pop %v4706
        %v4708 = vmul.f32 %v4695, 1.442695
        %v4709 = vpow.pop %v4708
        %v4710 = vmul.f32 %v4696, 1.442695
        %v4711 = vpow.pop %v4710
        %v4712 = vmul.f32 %v4697, 1.442695
        %v4713 = vpow.pop %v4712
        %v4714 = vsel %vm690, %v4699, 0.0
        %4715 = vadd.xlane.f32.xlu0 %v4714
        %v4716 = vpop.xlane.xlu0 %4715
        %v4717 = vsel %vm690, %v4701, 0.0
        %4718 = vadd.xlane.f32.xlu0 %v4717
        %v4719 = vpop.xlane.xlu0 %4718
        %v4720 = vsel %vm690, %v4703, 0.0
        %4721 = vadd.xlane.f32.xlu0 %v4720
        %v4722 = vpop.xlane.xlu0 %4721
        %v4723 = vsel %vm690, %v4705, 0.0
        %4724 = vadd.xlane.f32.xlu0 %v4723
        %v4725 = vpop.xlane.xlu0 %4724
        %v4726 = vsel %vm690, %v4707, 0.0
        %4727 = vadd.xlane.f32.xlu0 %v4726
        %v4728 = vpop.xlane.xlu0 %4727
        %v4729 = vsel %vm690, %v4709, 0.0
        %4730 = vadd.xlane.f32.xlu0 %v4729
        %v4731 = vpop.xlane.xlu0 %4730
        %v4732 = vsel %vm690, %v4711, 0.0
        %4733 = vadd.xlane.f32.xlu0 %v4732
        %v4734 = vpop.xlane.xlu0 %4733
        %v4735 = vsel %vm690, %v4713, 0.0
        %4736 = vadd.xlane.f32.xlu0 %v4735
        %v4737 = vpop.xlane.xlu0 %4736
        %v4738 = vrcp.pop %v4716
        %v4739 = vrcp.pop %v4719
        %v4740 = vrcp.pop %v4722
        %v4741 = vrcp.pop %v4725
        %v4742 = vrcp.pop %v4728
        %v4743 = vrcp.pop %v4731
        %v4744 = vrcp.pop %v4734
        %v4745 = vrcp.pop %v4737
        %v4746 = vmul.f32 %v4699, %v4738
        %v4747 = vmul.f32 %v4701, %v4739
        %v4748 = vmul.f32 %v4703, %v4740
        %v4749 = vmul.f32 %v4705, %v4741
        %v4750 = vmul.f32 %v4707, %v4742
        %v4751 = vmul.f32 %v4709, %v4743
        %v4752 = vmul.f32 %v4711, %v4744
        %v4753 = vmul.f32 %v4713, %v4745
        %4754 = vrot.lane.b32.xlu0 %v3183, 40
        %v4755 = vpop.permute.xlu0 %4754
        %4756 = vrot.lane.b32.xlu0 %v3184, 40
        %v4757 = vpop.permute.xlu0 %4756
        %4758 = vrot.lane.b32.xlu0 %v3185, 40
        %v4759 = vpop.permute.xlu0 %4758
        %4760 = vrot.lane.b32.xlu0 %v3186, 40
        %v4761 = vpop.permute.xlu0 %4760
        %4762 = vrot.lane.b32.xlu0 %v3187, 40
        %v4763 = vpop.permute.xlu0 %4762
        %4764 = vrot.lane.b32.xlu0 %v3188, 40
        %v4765 = vpop.permute.xlu0 %4764
        %4766 = vrot.lane.b32.xlu0 %v3189, 40
        %v4767 = vpop.permute.xlu0 %4766
        %4768 = vrot.lane.b32.xlu0 %v3190, 40
        %v4769 = vpop.permute.xlu0 %4768
        %v4779 = vsel %vm690, %v4746, 0
        %v4782 = vsel %vm690, %v4747, 0
        %v4785 = vsel %vm690, %v4748, 0
        %v4788 = vsel %vm690, %v4749, 0
        %v4791 = vsel %vm690, %v4750, 0
        %v4794 = vsel %vm690, %v4751, 0
        %v4797 = vsel %vm690, %v4752, 0
        %v4800 = vsel %vm690, %v4753, 0
        %4802 = vmatprep.subr.mxu0 0.0
        %4803 = vmatpush1.msra.mxu0 %v4755
        %4804 = vmatprep.subr.mxu0 0.0
        %4805 = vmatpush1.msra.mxu0 %v4757
        %4806 = vmatprep.subr.mxu0 0.0
        %4807 = vmatpush1.msra.mxu0 %v4759
        %4808 = vmatprep.subr.mxu0 0.0
        %4809 = vmatpush1.msra.mxu0 %v4761
        %4810 = vmatprep.subr.mxu0 0.0
        %4811 = vmatpush1.msra.mxu0 %v4763
        %4812 = vmatprep.subr.mxu0 0.0
        %4813 = vmatpush1.msra.mxu0 %v4765
        %4814 = vmatprep.subr.mxu0 0.0
        %4815 = vmatpush1.msra.mxu0 %v4767
        %4816 = vmatprep.subr.mxu0 0.0
        %4817 = vmatpush1.msra.mxu0 %v4769
        %4818 = vmatprep.subr.mxu0 0.0
        %4819 = vmatpush1.msra.mxu0 0.0
        %4820 = vmatprep.subr.mxu0 0.0
        %4821 = vmatpush1.msra.mxu0 0.0
        %4822 = vmatprep.subr.mxu0 0.0
        %4823 = vmatpush1.msra.mxu0 0.0
        %4824 = vmatprep.subr.mxu0 0.0
        %4825 = vmatpush1.msra.mxu0 0.0
        %4826 = vmatprep.subr.mxu0 0.0
        %4827 = vmatpush1.msra.mxu0 0.0
        %4828 = vmatprep.subr.mxu0 0.0
        %4829 = vmatpush1.msra.mxu0 0.0
        %4830 = vmatprep.subr.mxu0 0.0
        %4831 = vmatpush1.msra.mxu0 0.0
        %4832 = vmatprep.subr.mxu0 0.0
        %4833 = vmatpush1.msra.mxu0 0.0
        %4834 = vmatprep.subr.mxu0 0.0
        %4835 = vmatpush1.msra.mxu0 0.0
        %4836 = vmatprep.subr.mxu0 0.0
        %4837 = vmatpush1.msra.mxu0 0.0
        %4838 = vmatprep.subr.mxu0 0.0
        %4839 = vmatpush1.msra.mxu0 0.0
        %4840 = vmatprep.subr.mxu0 0.0
        %4841 = vmatpush1.msra.mxu0 0.0
        %4842 = vmatprep.subr.mxu0 0.0
        %4843 = vmatpush1.msra.mxu0 0.0
        %4844 = vmatprep.subr.mxu0 0.0
        %4845 = vmatpush1.msra.mxu0 0.0
        %4846 = vmatprep.subr.mxu0 0.0
        %4847 = vmatpush1.msra.mxu0 0.0
        %4848 = vmatprep.subr.mxu0 0.0
        %4849 = vmatpush1.msra.mxu0 0.0
        %4850 = vmatprep.subr.mxu0 0.0
        %4851 = vmatpush1.msra.mxu0 0.0
        %4852 = vmatprep.subr.mxu0 0.0
        %4853 = vmatpush1.msra.mxu0 0.0
        %4854 = vmatprep.subr.mxu0 0.0
        %4855 = vmatpush1.msra.mxu0 0.0
        %4856 = vmatprep.subr.mxu0 0.0
        %4857 = vmatpush1.msra.mxu0 0.0
        %4858 = vmatprep.subr.mxu0 0.0
        %4859 = vmatpush1.msra.mxu0 0.0
        %4860 = vmatprep.subr.mxu0 0.0
        %4861 = vmatpush1.msra.mxu0 0.0
        %4862 = vmatprep.subr.mxu0 0.0
        %4863 = vmatpush1.msra.mxu0 0.0
        %4864 = vmatprep.subr.mxu0 0.0
        %4865 = vmatpush1.msra.mxu0 0.0
        %4866 = vmatprep.mubr.f32.mxu0 0.0
        %4867 = vmatmul.mubr.f32.gmra.mrb[0].mxu0 %v4779
        %v4868 = vpop.f32.mrb[0].mxu0
        %v4869 = vadd.f32 0.0, %v4868
        %v4870 = vpop.f32.mrb[0].mxu0
        %4871 = vmatprep.mubr.f32.mxu0 0.0
        %4872 = vmatmul.mubr.f32.gmra.mrb[0].mxu0 %v4782
        %v4873 = vpop.f32.mrb[0].mxu0
        %v4874 = vadd.f32 0.0, %v4873
        %v4875 = vpop.f32.mrb[0].mxu0
        %4876 = vmatprep.mubr.f32.mxu0 0.0
        %4877 = vmatmul.mubr.f32.gmra.mrb[0].mxu0 %v4785
        %v4878 = vpop.f32.mrb[0].mxu0
        %v4879 = vadd.f32 0.0, %v4878
        %v4880 = vpop.f32.mrb[0].mxu0
        %4881 = vmatprep.mubr.f32.mxu0 0.0
        %4882 = vmatmul.mubr.f32.gmra.mrb[0].mxu0 %v4788
        %v4883 = vpop.f32.mrb[0].mxu0
        %v4884 = vadd.f32 0.0, %v4883
        %v4885 = vpop.f32.mrb[0].mxu0
        %4886 = vmatprep.mubr.f32.mxu0 0.0
        %4887 = vmatmul.mubr.f32.gmra.mrb[0].mxu0 %v4791
        %v4888 = vpop.f32.mrb[0].mxu0
        %v4889 = vadd.f32 0.0, %v4888
        %v4890 = vpop.f32.mrb[0].mxu0
        %4891 = vmatprep.mubr.f32.mxu0 0.0
        %4892 = vmatmul.mubr.f32.gmra.mrb[0].mxu0 %v4794
        %v4893 = vpop.f32.mrb[0].mxu0
        %v4894 = vadd.f32 0.0, %v4893
        %v4895 = vpop.f32.mrb[0].mxu0
        %4896 = vmatprep.mubr.f32.mxu0 0.0
        %4897 = vmatmul.mubr.f32.gmra.mrb[0].mxu0 %v4797
        %v4898 = vpop.f32.mrb[0].mxu0
        %v4899 = vadd.f32 0.0, %v4898
        %v4900 = vpop.f32.mrb[0].mxu0
        %4901 = vmatprep.mubr.f32.mxu0 0.0
        %4902 = vmatmul.mubr.f32.gmra.mrb[0].mxu0 %v4800
        %v4903 = vpop.f32.mrb[0].mxu0
        %v4904 = vadd.f32 0.0, %v4903
        %v4905 = vpop.f32.mrb[0].mxu0
        %4906 = vdwg.mxu0
        %4915 = vrot.lane.b32.xlu0 %v4015, 8
        %v4916 = vpop.permute.xlu0 %4915
        %4917 = vrot.lane.b32.xlu0 %v4020, 8
        %v4918 = vpop.permute.xlu0 %4917
        %4919 = vrot.lane.b32.xlu0 %v4025, 8
        %v4920 = vpop.permute.xlu0 %4919
        %4921 = vrot.lane.b32.xlu0 %v4030, 8
        %v4922 = vpop.permute.xlu0 %4921
        %4923 = vrot.lane.b32.xlu0 %v4035, 8
        %v4924 = vpop.permute.xlu0 %4923
        %4925 = vrot.lane.b32.xlu0 %v4040, 8
        %v4926 = vpop.permute.xlu0 %4925
        %4927 = vrot.lane.b32.xlu0 %v4045, 8
        %v4928 = vpop.permute.xlu0 %4927
        %4929 = vrot.lane.b32.xlu0 %v4050, 8
        %v4930 = vpop.permute.xlu0 %4929
        %4947 = vrot.lane.b32.xlu0 %v4442, 16
        %v4948 = vpop.permute.xlu0 %4947
        %4949 = vrot.lane.b32.xlu0 %v4447, 16
        %v4950 = vpop.permute.xlu0 %4949
        %4951 = vrot.lane.b32.xlu0 %v4452, 16
        %v4952 = vpop.permute.xlu0 %4951
        %4953 = vrot.lane.b32.xlu0 %v4457, 16
        %v4954 = vpop.permute.xlu0 %4953
        %4955 = vrot.lane.b32.xlu0 %v4462, 16
        %v4956 = vpop.permute.xlu0 %4955
        %4957 = vrot.lane.b32.xlu0 %v4467, 16
        %v4958 = vpop.permute.xlu0 %4957
        %4959 = vrot.lane.b32.xlu0 %v4472, 16
        %v4960 = vpop.permute.xlu0 %4959
        %4961 = vrot.lane.b32.xlu0 %v4477, 16
        %v4962 = vpop.permute.xlu0 %4961
        %4979 = vrot.lane.b32.xlu0 %v4869, 24
        %v4980 = vpop.permute.xlu0 %4979
        %4981 = vrot.lane.b32.xlu0 %v4874, 24
        %v4982 = vpop.permute.xlu0 %4981
        %4983 = vrot.lane.b32.xlu0 %v4879, 24
        %v4984 = vpop.permute.xlu0 %4983
        %4985 = vrot.lane.b32.xlu0 %v4884, 24
        %v4986 = vpop.permute.xlu0 %4985
        %4987 = vrot.lane.b32.xlu0 %v4889, 24
        %v4988 = vpop.permute.xlu0 %4987
        %4989 = vrot.lane.b32.xlu0 %v4894, 24
        %v4990 = vpop.permute.xlu0 %4989
        %4991 = vrot.lane.b32.xlu0 %v4899, 24
        %v4992 = vpop.permute.xlu0 %4991
        %4993 = vrot.lane.b32.xlu0 %v4904, 24
        %v4994 = vpop.permute.xlu0 %4993
        %v5003 = vsel %vm544, %v3588, %v4916
        %v5004 = vsel %vm544, %v3593, %v4918
        %v5005 = vsel %vm544, %v3598, %v4920
        %v5006 = vsel %vm544, %v3603, %v4922
        %v5007 = vsel %vm544, %v3608, %v4924
        %v5008 = vsel %vm544, %v3613, %v4926
        %v5009 = vsel %vm544, %v3618, %v4928
        %v5010 = vsel %vm544, %v3623, %v4930
        %v5011 = vsel %vm2317, %v5003, %v4948
        %v5012 = vsel %vm2317, %v5004, %v4950
        %v5013 = vsel %vm2317, %v5005, %v4952
        %v5014 = vsel %vm2317, %v5006, %v4954
        %v5015 = vsel %vm2317, %v5007, %v4956
        %v5016 = vsel %vm2317, %v5008, %v4958
        %v5017 = vsel %vm2317, %v5009, %v4960
        %v5018 = vsel %vm2317, %v5010, %v4962
        %v5019 = vsel %vm2326, %v5011, %v4980
        %v5020 = vsel %vm2326, %v5012, %v4982
        %v5021 = vsel %vm2326, %v5013, %v4984
        %v5022 = vsel %vm2326, %v5014, %v4986
        %v5023 = vsel %vm2326, %v5015, %v4988
        %v5024 = vsel %vm2326, %v5016, %v4990
        %v5025 = vsel %vm2326, %v5017, %v4992
        %v5026 = vsel %vm2326, %v5018, %v4994
        %5031 = vrot.lane.b32.xlu0 %v2909, 32
        %v5032 = vpop.permute.xlu0 %5031
        %5033 = vrot.lane.b32.xlu0 %v2910, 32
        %v5034 = vpop.permute.xlu0 %5033
        %5035 = vrot.lane.b32.xlu0 %v2911, 32
        %v5036 = vpop.permute.xlu0 %5035
        %5037 = vrot.lane.b32.xlu0 %v2912, 32
        %v5038 = vpop.permute.xlu0 %5037
        %5044 = vrot.lane.b32.xlu0 %v3182, 32
        %v5045 = vpop.permute.xlu0 %5044
        %v5048 = vsel %vm225, %v5019, 0
        %v5051 = vsel %vm225, %v5020, 0
        %v5054 = vsel %vm225, %v5021, 0
        %v5057 = vsel %vm225, %v5022, 0
        %v5060 = vsel %vm225, %v5023, 0
        %v5063 = vsel %vm225, %v5024, 0
        %v5066 = vsel %vm225, %v5025, 0
        %v5069 = vsel %vm225, %v5026, 0
        %5071 = vmatprep.subr.mxu0 0.0
        %5072 = vmatpush1.msra.mxu0 %v5032
        %5073 = vmatprep.subr.mxu0 0.0
        %5074 = vmatpush1.msra.mxu0 %v5034
        %5075 = vmatprep.subr.mxu0 0.0
        %5076 = vmatpush1.msra.mxu0 %v5036
        %5077 = vmatprep.subr.mxu0 0.0
        %5078 = vmatpush1.msra.mxu0 %v5038
        %5079 = vmatprep.subr.mxu0 0.0
        %5080 = vmatpush1.msra.mxu0 0.0
        %5081 = vmatprep.subr.mxu0 0.0
        %5082 = vmatpush1.msra.mxu0 0.0
        %5083 = vmatprep.subr.mxu0 0.0
        %5084 = vmatpush1.msra.mxu0 0.0
        %5085 = vmatprep.subr.mxu0 0.0
        %5086 = vmatpush1.msra.mxu0 0.0
        %5087 = vmatprep.subr.mxu0 0.0
        %5088 = vmatpush1.msra.mxu0 0.0
        %5089 = vmatprep.subr.mxu0 0.0
        %5090 = vmatpush1.msra.mxu0 0.0
        %5091 = vmatprep.subr.mxu0 0.0
        %5092 = vmatpush1.msra.mxu0 0.0
        %5093 = vmatprep.subr.mxu0 0.0
        %5094 = vmatpush1.msra.mxu0 0.0
        %5095 = vmatprep.subr.mxu0 0.0
        %5096 = vmatpush1.msra.mxu0 0.0
        %5097 = vmatprep.subr.mxu0 0.0
        %5098 = vmatpush1.msra.mxu0 0.0
        %5099 = vmatprep.subr.mxu0 0.0
        %5100 = vmatpush1.msra.mxu0 0.0
        %5101 = vmatprep.subr.mxu0 0.0
        %5102 = vmatpush1.msra.mxu0 0.0
        %5103 = vmatprep.subr.mxu0 0.0
        %5104 = vmatpush1.msra.mxu0 0.0
        %5105 = vmatprep.subr.mxu0 0.0
        %5106 = vmatpush1.msra.mxu0 0.0
        %5107 = vmatprep.subr.mxu0 0.0
        %5108 = vmatpush1.msra.mxu0 0.0
        %5109 = vmatprep.subr.mxu0 0.0
        %5110 = vmatpush1.msra.mxu0 0.0
        %5111 = vmatprep.subr.mxu0 0.0
        %5112 = vmatpush1.msra.mxu0 0.0
        %5113 = vmatprep.subr.mxu0 0.0
        %5114 = vmatpush1.msra.mxu0 0.0
        %5115 = vmatprep.subr.mxu0 0.0
        %5116 = vmatpush1.msra.mxu0 0.0
        %5117 = vmatprep.subr.mxu0 0.0
        %5118 = vmatpush1.msra.mxu0 0.0
        %5119 = vmatprep.subr.mxu0 0.0
        %5120 = vmatpush1.msra.mxu0 0.0
        %5121 = vmatprep.subr.mxu0 0.0
        %5122 = vmatpush1.msra.mxu0 0.0
        %5123 = vmatprep.subr.mxu0 0.0
        %5124 = vmatpush1.msra.mxu0 0.0
        %5125 = vmatprep.subr.mxu0 0.0
        %5126 = vmatpush1.msra.mxu0 0.0
        %5127 = vmatprep.subr.mxu0 0.0
        %5128 = vmatpush1.msra.mxu0 0.0
        %5129 = vmatprep.subr.mxu0 0.0
        %5130 = vmatpush1.msra.mxu0 0.0
        %5131 = vmatprep.subr.mxu0 0.0
        %5132 = vmatpush1.msra.mxu0 0.0
        %5133 = vmatprep.subr.mxu0 0.0
        %5134 = vmatpush1.msra.mxu0 0.0
        %5135 = vmatprep.mubr.f32.mxu0 0.0
        %5136 = vmatmul.mubr.f32.gmra.mrb[0].mxu0 %v5048
        %v5137 = vpop.f32.mrb[0].mxu0
        %v5138 = vadd.f32 %v5045, %v5137
        %v5139 = vpop.f32.mrb[0].mxu0
        %5140 = vmatprep.mubr.f32.mxu0 0.0
        %5141 = vmatmul.mubr.f32.gmra.mrb[0].mxu0 %v5051
        %v5142 = vpop.f32.mrb[0].mxu0
        %v5143 = vadd.f32 %v5045, %v5142
        %v5144 = vpop.f32.mrb[0].mxu0
        %5145 = vmatprep.mubr.f32.mxu0 0.0
        %5146 = vmatmul.mubr.f32.gmra.mrb[0].mxu0 %v5054
        %v5147 = vpop.f32.mrb[0].mxu0
        %v5148 = vadd.f32 %v5045, %v5147
        %v5149 = vpop.f32.mrb[0].mxu0
        %5150 = vmatprep.mubr.f32.mxu0 0.0
        %5151 = vmatmul.mubr.f32.gmra.mrb[0].mxu0 %v5057
        %v5152 = vpop.f32.mrb[0].mxu0
        %v5153 = vadd.f32 %v5045, %v5152
        %v5154 = vpop.f32.mrb[0].mxu0
        %5155 = vmatprep.mubr.f32.mxu0 0.0
        %5156 = vmatmul.mubr.f32.gmra.mrb[0].mxu0 %v5060
        %v5157 = vpop.f32.mrb[0].mxu0
        %v5158 = vadd.f32 %v5045, %v5157
        %v5159 = vpop.f32.mrb[0].mxu0
        %5160 = vmatprep.mubr.f32.mxu0 0.0
        %5161 = vmatmul.mubr.f32.gmra.mrb[0].mxu0 %v5063
        %v5162 = vpop.f32.mrb[0].mxu0
        %v5163 = vadd.f32 %v5045, %v5162
        %v5164 = vpop.f32.mrb[0].mxu0
        %5165 = vmatprep.mubr.f32.mxu0 0.0
        %5166 = vmatmul.mubr.f32.gmra.mrb[0].mxu0 %v5066
        %v5167 = vpop.f32.mrb[0].mxu0
        %v5168 = vadd.f32 %v5045, %v5167
        %v5169 = vpop.f32.mrb[0].mxu0
        %5170 = vmatprep.mubr.f32.mxu0 0.0
        %5171 = vmatmul.mubr.f32.gmra.mrb[0].mxu0 %v5069
        %v5172 = vpop.f32.mrb[0].mxu0
        %v5173 = vadd.f32 %v5045, %v5172
        %v5174 = vpop.f32.mrb[0].mxu0
        %5175 = vdwg.mxu0
        %v5176 = vadd.f32 %v2900, %v5138
        %v5177 = vadd.f32 %v2901, %v5143
        %v5178 = vadd.f32 %v2902, %v5148
        %v5179 = vadd.f32 %v2903, %v5153
        %v5180 = vadd.f32 %v2904, %v5158
        %v5181 = vadd.f32 %v2905, %v5163
        %v5182 = vadd.f32 %v2906, %v5168
        %v5183 = vadd.f32 %v2907, %v5173
        %v5184 = vsel %vm225, %v5176, 0.0
        %5185 = vadd.xlane.f32.xlu0 %v5184
        %v5186 = vpop.xlane.xlu0 %5185
        %v5187 = vsel %vm225, %v5177, 0.0
        %5188 = vadd.xlane.f32.xlu0 %v5187
        %v5189 = vpop.xlane.xlu0 %5188
        %v5190 = vsel %vm225, %v5178, 0.0
        %5191 = vadd.xlane.f32.xlu0 %v5190
        %v5192 = vpop.xlane.xlu0 %5191
        %v5193 = vsel %vm225, %v5179, 0.0
        %5194 = vadd.xlane.f32.xlu0 %v5193
        %v5195 = vpop.xlane.xlu0 %5194
        %v5196 = vsel %vm225, %v5180, 0.0
        %5197 = vadd.xlane.f32.xlu0 %v5196
        %v5198 = vpop.xlane.xlu0 %5197
        %v5199 = vsel %vm225, %v5181, 0.0
        %5200 = vadd.xlane.f32.xlu0 %v5199
        %v5201 = vpop.xlane.xlu0 %5200
        %v5202 = vsel %vm225, %v5182, 0.0
        %5203 = vadd.xlane.f32.xlu0 %v5202
        %v5204 = vpop.xlane.xlu0 %5203
        %v5205 = vsel %vm225, %v5183, 0.0
        %5206 = vadd.xlane.f32.xlu0 %v5205
        %v5207 = vpop.xlane.xlu0 %5206
        %v5208 = vmul.f32 %v5186, %v250
        %v5209 = vmul.f32 %v5189, %v250
        %v5210 = vmul.f32 %v5192, %v250
        %v5211 = vmul.f32 %v5195, %v250
        %v5212 = vmul.f32 %v5198, %v250
        %v5213 = vmul.f32 %v5201, %v250
        %v5214 = vmul.f32 %v5204, %v250
        %v5215 = vmul.f32 %v5207, %v250
        %v5216 = vsub.f32 %v5176, %v5208
        %v5217 = vsub.f32 %v5177, %v5209
        %v5218 = vsub.f32 %v5178, %v5210
        %v5219 = vsub.f32 %v5179, %v5211
        %v5220 = vsub.f32 %v5180, %v5212
        %v5221 = vsub.f32 %v5181, %v5213
        %v5222 = vsub.f32 %v5182, %v5214
        %v5223 = vsub.f32 %v5183, %v5215
        %v5224 = vmul.f32 %v5216, %v5216
        %v5225 = vmul.f32 %v5217, %v5217
        %v5226 = vmul.f32 %v5218, %v5218
        %v5227 = vmul.f32 %v5219, %v5219
        %v5228 = vmul.f32 %v5220, %v5220
        %v5229 = vmul.f32 %v5221, %v5221
        %v5230 = vmul.f32 %v5222, %v5222
        %v5231 = vmul.f32 %v5223, %v5223
        %v5232 = vsel %vm225, %v5224, 0.0
        %5233 = vadd.xlane.f32.xlu0 %v5232
        %v5234 = vpop.xlane.xlu0 %5233
        %v5235 = vsel %vm225, %v5225, 0.0
        %5236 = vadd.xlane.f32.xlu0 %v5235
        %v5237 = vpop.xlane.xlu0 %5236
        %v5238 = vsel %vm225, %v5226, 0.0
        %5239 = vadd.xlane.f32.xlu0 %v5238
        %v5240 = vpop.xlane.xlu0 %5239
        %v5241 = vsel %vm225, %v5227, 0.0
        %5242 = vadd.xlane.f32.xlu0 %v5241
        %v5243 = vpop.xlane.xlu0 %5242
        %v5244 = vsel %vm225, %v5228, 0.0
        %5245 = vadd.xlane.f32.xlu0 %v5244
        %v5246 = vpop.xlane.xlu0 %5245
        %v5247 = vsel %vm225, %v5229, 0.0
        %5248 = vadd.xlane.f32.xlu0 %v5247
        %v5249 = vpop.xlane.xlu0 %5248
        %v5250 = vsel %vm225, %v5230, 0.0
        %5251 = vadd.xlane.f32.xlu0 %v5250
        %v5252 = vpop.xlane.xlu0 %5251
        %v5253 = vsel %vm225, %v5231, 0.0
        %5254 = vadd.xlane.f32.xlu0 %v5253
        %v5255 = vpop.xlane.xlu0 %5254
        %v5256 = vmul.f32 %v5234, %v250
        %v5257 = vmul.f32 %v5237, %v250
        %v5258 = vmul.f32 %v5240, %v250
        %v5259 = vmul.f32 %v5243, %v250
        %v5260 = vmul.f32 %v5246, %v250
        %v5261 = vmul.f32 %v5249, %v250
        %v5262 = vmul.f32 %v5252, %v250
        %v5263 = vmul.f32 %v5255, %v250
        %v5264 = vadd.f32 %v5256, 1e-05
        %v5265 = vadd.f32 %v5257, 1e-05
        %v5266 = vadd.f32 %v5258, 1e-05
        %v5267 = vadd.f32 %v5259, 1e-05
        %v5268 = vadd.f32 %v5260, 1e-05
        %v5269 = vadd.f32 %v5261, 1e-05
        %v5270 = vadd.f32 %v5262, 1e-05
        %v5271 = vadd.f32 %v5263, 1e-05
        %v5272 = vrsqrt.pop %v5264
        %v5273 = vrsqrt.pop %v5265
        %v5274 = vrsqrt.pop %v5266
        %v5275 = vrsqrt.pop %v5267
        %v5276 = vrsqrt.pop %v5268
        %v5277 = vrsqrt.pop %v5269
        %v5278 = vrsqrt.pop %v5270
        %v5279 = vrsqrt.pop %v5271
        %v5280 = vmul.f32 %v5216, %v5272
        %v5281 = vmul.f32 %v5217, %v5273
        %v5282 = vmul.f32 %v5218, %v5274
        %v5283 = vmul.f32 %v5219, %v5275
        %v5284 = vmul.f32 %v5220, %v5276
        %v5285 = vmul.f32 %v5221, %v5277
        %v5286 = vmul.f32 %v5222, %v5278
        %v5287 = vmul.f32 %v5223, %v5279
        %5288 = vrot.lane.b32.xlu0 %v3029, 64
        %v5289 = vpop.permute.xlu0 %5288
        %v5291 = vmul.f32 %v5280, %v5289
        %v5292 = vmul.f32 %v5281, %v5289
        %v5293 = vmul.f32 %v5282, %v5289
        %v5294 = vmul.f32 %v5283, %v5289
        %v5295 = vmul.f32 %v5284, %v5289
        %v5296 = vmul.f32 %v5285, %v5289
        %v5297 = vmul.f32 %v5286, %v5289
        %v5298 = vmul.f32 %v5287, %v5289
        %5299 = vrot.lane.b32.xlu0 %v3029, 32
        %v5300 = vpop.permute.xlu0 %5299
        %v5302 = vadd.f32 %v5291, %v5300
        %v5303 = vadd.f32 %v5292, %v5300
        %v5304 = vadd.f32 %v5293, %v5300
        %v5305 = vadd.f32 %v5294, %v5300
        %v5306 = vadd.f32 %v5295, %v5300
        %v5307 = vadd.f32 %v5296, %v5300
        %v5308 = vadd.f32 %v5297, %v5300
        %v5309 = vadd.f32 %v5298, %v5300
        %v5310 = vlaneseq
        %v5311 = vshrl.u32 %v5310, 7
        %v5312 = vsub.s32 2, %v5311
        %v5313 = vrot.slane %v2921, %v5312
        %v5315 = vsel %vm225, %v5302, 0
        %v5318 = vsel %vm225, %v5303, 0
        %v5321 = vsel %vm225, %v5304, 0
        %v5324 = vsel %vm225, %v5305, 0
        %v5327 = vsel %vm225, %v5306, 0
        %v5330 = vsel %vm225, %v5307, 0
        %v5333 = vsel %vm225, %v5308, 0
        %v5336 = vsel %vm225, %v5309, 0
        %5338 = vmatprep.subr.mxu0 0.0
        %5339 = vmatpush1.msra.mxu0 %v2913
        %5340 = vmatprep.subr.mxu0 0.0
        %5341 = vmatpush1.msra.mxu0 %v2914
        %5342 = vmatprep.subr.mxu0 0.0
        %5343 = vmatpush1.msra.mxu0 %v2915
        %5344 = vmatprep.subr.mxu0 0.0
        %5345 = vmatpush1.msra.mxu0 %v2916
        %5346 = vmatprep.subr.mxu0 0.0
        %5347 = vmatpush1.msra.mxu0 0.0
        %5348 = vmatprep.subr.mxu0 0.0
        %5349 = vmatpush1.msra.mxu0 0.0
        %5350 = vmatprep.subr.mxu0 0.0
        %5351 = vmatpush1.msra.mxu0 0.0
        %5352 = vmatprep.subr.mxu0 0.0
        %5353 = vmatpush1.msra.mxu0 0.0
        %5354 = vmatprep.subr.mxu0 0.0
        %5355 = vmatpush1.msra.mxu0 0.0
        %5356 = vmatprep.subr.mxu0 0.0
        %5357 = vmatpush1.msra.mxu0 0.0
        %5358 = vmatprep.subr.mxu0 0.0
        %5359 = vmatpush1.msra.mxu0 0.0
        %5360 = vmatprep.subr.mxu0 0.0
        %5361 = vmatpush1.msra.mxu0 0.0
        %5362 = vmatprep.subr.mxu0 0.0
        %5363 = vmatpush1.msra.mxu0 0.0
        %5364 = vmatprep.subr.mxu0 0.0
        %5365 = vmatpush1.msra.mxu0 0.0
        %5366 = vmatprep.subr.mxu0 0.0
        %5367 = vmatpush1.msra.mxu0 0.0
        %5368 = vmatprep.subr.mxu0 0.0
        %5369 = vmatpush1.msra.mxu0 0.0
        %5370 = vmatprep.subr.mxu0 0.0
        %5371 = vmatpush1.msra.mxu0 0.0
        %5372 = vmatprep.subr.mxu0 0.0
        %5373 = vmatpush1.msra.mxu0 0.0
        %5374 = vmatprep.subr.mxu0 0.0
        %5375 = vmatpush1.msra.mxu0 0.0
        %5376 = vmatprep.subr.mxu0 0.0
        %5377 = vmatpush1.msra.mxu0 0.0
        %5378 = vmatprep.subr.mxu0 0.0
        %5379 = vmatpush1.msra.mxu0 0.0
        %5380 = vmatprep.subr.mxu0 0.0
        %5381 = vmatpush1.msra.mxu0 0.0
        %5382 = vmatprep.subr.mxu0 0.0
        %5383 = vmatpush1.msra.mxu0 0.0
        %5384 = vmatprep.subr.mxu0 0.0
        %5385 = vmatpush1.msra.mxu0 0.0
        %5386 = vmatprep.subr.mxu0 0.0
        %5387 = vmatpush1.msra.mxu0 0.0
        %5388 = vmatprep.subr.mxu0 0.0
        %5389 = vmatpush1.msra.mxu0 0.0
        %5390 = vmatprep.subr.mxu0 0.0
        %5391 = vmatpush1.msra.mxu0 0.0
        %5392 = vmatprep.subr.mxu0 0.0
        %5393 = vmatpush1.msra.mxu0 0.0
        %5394 = vmatprep.subr.mxu0 0.0
        %5395 = vmatpush1.msra.mxu0 0.0
        %5396 = vmatprep.subr.mxu0 0.0
        %5397 = vmatpush1.msra.mxu0 0.0
        %5398 = vmatprep.subr.mxu0 0.0
        %5399 = vmatpush1.msra.mxu0 0.0
        %5400 = vmatprep.subr.mxu0 0.0
        %5401 = vmatpush1.msra.mxu0 0.0
        %5402 = vmatprep.mubr.f32.mxu0 0.0
        %5403 = vmatmul.mubr.f32.gmra.mrb[0].mxu0 %v5315
        %v5404 = vpop.f32.mrb[0].mxu0
        %v5405 = vadd.f32 %v5313, %v5404
        %v5406 = vpop.f32.mrb[0].mxu0
        %5407 = vmatprep.mubr.f32.mxu0 0.0
        %5408 = vmatmul.mubr.f32.gmra.mrb[0].mxu0 %v5318
        %v5409 = vpop.f32.mrb[0].mxu0
        %v5410 = vadd.f32 %v5313, %v5409
        %v5411 = vpop.f32.mrb[0].mxu0
        %5412 = vmatprep.mubr.f32.mxu0 0.0
        %5413 = vmatmul.mubr.f32.gmra.mrb[0].mxu0 %v5321
        %v5414 = vpop.f32.mrb[0].mxu0
        %v5415 = vadd.f32 %v5313, %v5414
        %v5416 = vpop.f32.mrb[0].mxu0
        %5417 = vmatprep.mubr.f32.mxu0 0.0
        %5418 = vmatmul.mubr.f32.gmra.mrb[0].mxu0 %v5324
        %v5419 = vpop.f32.mrb[0].mxu0
        %v5420 = vadd.f32 %v5313, %v5419
        %v5421 = vpop.f32.mrb[0].mxu0
        %5422 = vmatprep.mubr.f32.mxu0 0.0
        %5423 = vmatmul.mubr.f32.gmra.mrb[0].mxu0 %v5327
        %v5424 = vpop.f32.mrb[0].mxu0
        %v5425 = vadd.f32 %v5313, %v5424
        %v5426 = vpop.f32.mrb[0].mxu0
        %5427 = vmatprep.mubr.f32.mxu0 0.0
        %5428 = vmatmul.mubr.f32.gmra.mrb[0].mxu0 %v5330
        %v5429 = vpop.f32.mrb[0].mxu0
        %v5430 = vadd.f32 %v5313, %v5429
        %v5431 = vpop.f32.mrb[0].mxu0
        %5432 = vmatprep.mubr.f32.mxu0 0.0
        %5433 = vmatmul.mubr.f32.gmra.mrb[0].mxu0 %v5333
        %v5434 = vpop.f32.mrb[0].mxu0
        %v5435 = vadd.f32 %v5313, %v5434
        %v5436 = vpop.f32.mrb[0].mxu0
        %5437 = vmatprep.mubr.f32.mxu0 0.0
        %5438 = vmatmul.mubr.f32.gmra.mrb[0].mxu0 %v5336
        %v5439 = vpop.f32.mrb[0].mxu0
        %v5440 = vadd.f32 %v5313, %v5439
        %v5441 = vpop.f32.mrb[0].mxu0
        %5442 = vdwg.mxu0
        %v5443 = vmul.f32 %v5405, 0.5
        %v5444 = vmul.f32 %v5410, 0.5
        %v5445 = vmul.f32 %v5415, 0.5
        %v5446 = vmul.f32 %v5420, 0.5
        %v5447 = vmul.f32 %v5425, 0.5
        %v5448 = vmul.f32 %v5430, 0.5
        %v5449 = vmul.f32 %v5435, 0.5
        %v5450 = vmul.f32 %v5440, 0.5
        %v5451 = vmul.f32 %v5405, 0.70710677
        %v5452 = vmul.f32 %v5410, 0.70710677
        %v5453 = vmul.f32 %v5415, 0.70710677
        %v5454 = vmul.f32 %v5420, 0.70710677
        %v5455 = vmul.f32 %v5425, 0.70710677
        %v5456 = vmul.f32 %v5430, 0.70710677
        %v5457 = vmul.f32 %v5435, 0.70710677
        %v5458 = vmul.f32 %v5440, 0.70710677
        %v5459 = verf.f32.pop %v5451
        %v5460 = verf.f32.pop %v5452
        %v5461 = verf.f32.pop %v5453
        %v5462 = verf.f32.pop %v5454
        %v5463 = verf.f32.pop %v5455
        %v5464 = verf.f32.pop %v5456
        %v5465 = verf.f32.pop %v5457
        %v5466 = verf.f32.pop %v5458
        %v5467 = vadd.f32 %v5459, 1.0
        %v5468 = vadd.f32 %v5460, 1.0
        %v5469 = vadd.f32 %v5461, 1.0
        %v5470 = vadd.f32 %v5462, 1.0
        %v5471 = vadd.f32 %v5463, 1.0
        %v5472 = vadd.f32 %v5464, 1.0
        %v5473 = vadd.f32 %v5465, 1.0
        %v5474 = vadd.f32 %v5466, 1.0
        %v5475 = vmul.f32 %v5443, %v5467
        %v5476 = vmul.f32 %v5444, %v5468
        %v5477 = vmul.f32 %v5445, %v5469
        %v5478 = vmul.f32 %v5446, %v5470
        %v5479 = vmul.f32 %v5447, %v5471
        %v5480 = vmul.f32 %v5448, %v5472
        %v5481 = vmul.f32 %v5449, %v5473
        %v5482 = vmul.f32 %v5450, %v5474
        %v5483 = vlaneseq
        %v5484 = vshrl.u32 %v5483, 7
        %v5485 = vsub.s32 3, %v5484
        %v5486 = vrot.slane %v2921, %v5485
        %5487 = vmatprep.subr.mxu0 0.0
        %5488 = vmatpush1.xpose.msra.mxu0 %v2917
        %5489 = vmatprep.subr.mxu0 0.0
        %5490 = vmatpush1.xpose.msra.mxu0 %v2918
        %5491 = vmatprep.subr.mxu0 0.0
        %5492 = vmatpush1.xpose.msra.mxu0 %v2919
        %5493 = vmatprep.subr.mxu0 0.0
        %5494 = vmatpush1.xpose.msra.mxu0 %v2920
        %5495 = vmatprep.subr.mxu0 0.0
        %5496 = vmatpush1.xpose.msra.mxu0 0.0
        %5497 = vmatprep.subr.mxu0 0.0
        %5498 = vmatpush1.xpose.msra.mxu0 0.0
        %5499 = vmatprep.subr.mxu0 0.0
        %5500 = vmatpush1.xpose.msra.mxu0 0.0
        %5501 = vmatprep.subr.mxu0 0.0
        %5502 = vmatpush1.xpose.msra.mxu0 0.0
        %5503 = vmatprep.subr.mxu0 0.0
        %5504 = vmatpush1.xpose.msra.mxu0 0.0
        %5505 = vmatprep.subr.mxu0 0.0
        %5506 = vmatpush1.xpose.msra.mxu0 0.0
        %5507 = vmatprep.subr.mxu0 0.0
        %5508 = vmatpush1.xpose.msra.mxu0 0.0
        %5509 = vmatprep.subr.mxu0 0.0
        %5510 = vmatpush1.xpose.msra.mxu0 0.0
        %5511 = vmatprep.subr.mxu0 0.0
        %5512 = vmatpush1.xpose.msra.mxu0 0.0
        %5513 = vmatprep.subr.mxu0 0.0
        %5514 = vmatpush1.xpose.msra.mxu0 0.0
        %5515 = vmatprep.subr.mxu0 0.0
        %5516 = vmatpush1.xpose.msra.mxu0 0.0
        %5517 = vmatprep.subr.mxu0 0.0
        %5518 = vmatpush1.xpose.msra.mxu0 0.0
        %5519 = vmatprep.subr.mxu0 0.0
        %5520 = vmatpush1.xpose.msra.mxu0 0.0
        %5521 = vmatprep.subr.mxu0 0.0
        %5522 = vmatpush1.xpose.msra.mxu0 0.0
        %5523 = vmatprep.subr.mxu0 0.0
        %5524 = vmatpush1.xpose.msra.mxu0 0.0
        %5525 = vmatprep.subr.mxu0 0.0
        %5526 = vmatpush1.xpose.msra.mxu0 0.0
        %5527 = vmatprep.subr.mxu0 0.0
        %5528 = vmatpush1.xpose.msra.mxu0 0.0
        %5529 = vmatprep.subr.mxu0 0.0
        %5530 = vmatpush1.xpose.msra.mxu0 0.0
        %5531 = vmatprep.subr.mxu0 0.0
        %5532 = vmatpush1.xpose.msra.mxu0 0.0
        %5533 = vmatprep.subr.mxu0 0.0
        %5534 = vmatpush1.xpose.msra.mxu0 0.0
        %5535 = vmatprep.subr.mxu0 0.0
        %5536 = vmatpush1.xpose.msra.mxu0 0.0
        %5537 = vmatprep.subr.mxu0 0.0
        %5538 = vmatpush1.xpose.msra.mxu0 0.0
        %5539 = vmatprep.subr.mxu0 0.0
        %5540 = vmatpush1.xpose.msra.mxu0 0.0
        %5541 = vmatprep.subr.mxu0 0.0
        %5542 = vmatpush1.xpose.msra.mxu0 0.0
        %5543 = vmatprep.subr.mxu0 0.0
        %5544 = vmatpush1.xpose.msra.mxu0 0.0
        %5545 = vmatprep.subr.mxu0 0.0
        %5546 = vmatpush1.xpose.msra.mxu0 0.0
        %5547 = vmatprep.subr.mxu0 0.0
        %5548 = vmatpush1.xpose.msra.mxu0 0.0
        %5549 = vmatprep.subr.mxu0 0.0
        %5550 = vmatpush1.xpose.msra.mxu0 0.0
        %5551 = vmatprep.mubr.f32.mxu0 0.0
        %5552 = vmatmul.mubr.f32.gmra.mrb[0].mxu0 %v5475
        %v5553 = vpop.f32.mrb[0].mxu0
        %v5554 = vadd.f32 %v5486, %v5553
        %v5555 = vpop.f32.mrb[0].mxu0
        %5556 = vmatprep.mubr.f32.mxu0 0.0
        %5557 = vmatmul.mubr.f32.gmra.mrb[0].mxu0 %v5476
        %v5558 = vpop.f32.mrb[0].mxu0
        %v5559 = vadd.f32 %v5486, %v5558
        %v5560 = vpop.f32.mrb[0].mxu0
        %5561 = vmatprep.mubr.f32.mxu0 0.0
        %5562 = vmatmul.mubr.f32.gmra.mrb[0].mxu0 %v5477
        %v5563 = vpop.f32.mrb[0].mxu0
        %v5564 = vadd.f32 %v5486, %v5563
        %v5565 = vpop.f32.mrb[0].mxu0
        %5566 = vmatprep.mubr.f32.mxu0 0.0
        %5567 = vmatmul.mubr.f32.gmra.mrb[0].mxu0 %v5478
        %v5568 = vpop.f32.mrb[0].mxu0
        %v5569 = vadd.f32 %v5486, %v5568
        %v5570 = vpop.f32.mrb[0].mxu0
        %5571 = vmatprep.mubr.f32.mxu0 0.0
        %5572 = vmatmul.mubr.f32.gmra.mrb[0].mxu0 %v5479
        %v5573 = vpop.f32.mrb[0].mxu0
        %v5574 = vadd.f32 %v5486, %v5573
        %v5575 = vpop.f32.mrb[0].mxu0
        %5576 = vmatprep.mubr.f32.mxu0 0.0
        %5577 = vmatmul.mubr.f32.gmra.mrb[0].mxu0 %v5480
        %v5578 = vpop.f32.mrb[0].mxu0
        %v5579 = vadd.f32 %v5486, %v5578
        %v5580 = vpop.f32.mrb[0].mxu0
        %5581 = vmatprep.mubr.f32.mxu0 0.0
        %5582 = vmatmul.mubr.f32.gmra.mrb[0].mxu0 %v5481
        %v5583 = vpop.f32.mrb[0].mxu0
        %v5584 = vadd.f32 %v5486, %v5583
        %v5585 = vpop.f32.mrb[0].mxu0
        %5586 = vmatprep.mubr.f32.mxu0 0.0
        %5587 = vmatmul.mubr.f32.gmra.mrb[0].mxu0 %v5482
        %v5588 = vpop.f32.mrb[0].mxu0
        %v5589 = vadd.f32 %v5486, %v5588
        %v5590 = vpop.f32.mrb[0].mxu0
        %5591 = vdwg.mxu0
        %v5592 = vadd.f32 %v5176, %v5554
        %v5593 = vadd.f32 %v5177, %v5559
        %v5594 = vadd.f32 %v5178, %v5564
        %v5595 = vadd.f32 %v5179, %v5569
        %v5596 = vadd.f32 %v5180, %v5574
        %v5597 = vadd.f32 %v5181, %v5579
        %v5598 = vadd.f32 %v5182, %v5584
        %v5599 = vadd.f32 %v5183, %v5589
        %5600 = vst.msk [vmem:[%s202] sm:$0xff] %vm225, %v5592
        %5601 = vst.msk [vmem:[%s202 + $0x8] sm:$0xff] %vm225, %v5593
        %5602 = vst.msk [vmem:[%s202 + $0x10] sm:$0xff] %vm225, %v5594
        %5603 = vst.msk [vmem:[%s202 + $0x18] sm:$0xff] %vm225, %v5595
        %5604 = vst.msk [vmem:[%s202 + $0x20] sm:$0xff] %vm225, %v5596
        %5605 = vst.msk [vmem:[%s202 + $0x28] sm:$0xff] %vm225, %v5597
        %5606 = vst.msk [vmem:[%s202 + $0x30] sm:$0xff] %vm225, %v5598
        %5607 = vst.msk [vmem:[%s202 + $0x38] sm:$0xff] %vm225, %v5599
        %s5608 = smul.u32 8, %s16
        %p5609 = scmp.lt.s32.totalorder %s5608, 15
        %s5610 = scalar_select %p5609, %s5608, 15
        %s5611 = smul.addr %s5610, 8
        %s5612 = scalar_lea.vmem %s3, %s5611
        // Predicated region
        $region41: #{basic_layer_forward.1} parent=31 // pred_check
          %p5613 = pneg %p102
        $region42: #{basic_layer_forward.1} parent=31 // pred_check_branch
          %5615 = sbr.rel (%p5613) target = $region44
        $region43: #{basic_layer_forward.1} parent=31 // pred_region
          %s5616 = smul.u32 8, %s16
        $region44: #{basic_layer_forward.1} parent=31 // pred_fallthru
          _
      $region32: #{basic_layer_forward.1} parent=5 // pred_fallthru
        _
      %p5617 = scmp.le.s32.totalorder 2, %s11
      // Predicated region
      $region45: #{basic_layer_forward.1} parent=5 // pred_check
        %p5618 = pneg %p5617
      $region46: #{basic_layer_forward.1} parent=5 // pred_check_branch
        %5620 = sbr.rel (%p5618) target = $region48
      $region47: #{basic_layer_forward.1} parent=5 // pred_region
        %s5621 = ssub.s32 %s11, 2
        // Predicated region
        $region49: #{basic_layer_forward.1} parent=47 // pred_check
          %p5622 = pneg %p108
        $region50: #{basic_layer_forward.1} parent=47 // pred_check_branch
          %5624 = sbr.rel (%p5622) target = $region52
        $region51: #{basic_layer_forward.1} parent=47 // pred_region
          %s5625 = smul.u32 8, %s17
          %p5626 = scmp.lt.s32.totalorder %s5625, 15
          %s5627 = scalar_select %p5626, %s5625, 15
          %s5628 = smul.addr %s5627, 8
          %s5629 = scalar_lea.vmem %s3, %s5628
        $region52: #{basic_layer_forward.1} parent=47 // pred_fallthru
          _
      $region48: #{basic_layer_forward.1} parent=5 // pred_fallthru
        _
    $region6: #{basic_layer_forward.1} parent=1 // loop_footer
      %s15 = sadd.s32 1, %s11
    $region7: #{basic_layer_forward.1} parent=1 // loop_footer_branch
      %10 = sbr.rel target = $region3
    $region8: #{basic_layer_forward.1} parent=1 // loop_exit
      _
    %5630 = vsyncpa [#allocation3], 1
    %s5631 = scalar_lea.sflag [#allocation3], 1
    %5632 = vsyncpa %s5631, 1
    %5633 = vsyncpa [#allocation5], 1

</llo_original>
